<compile_context>
chip_gen: v5e
topology: v5e:2x2
jax: 0.10.0
libtpu: 0.0.40
codegen_flags: <defaults>
</compile_context>

<pallas_src>
import functools

import jax
import jax.numpy as jnp
from jax.experimental import pallas as pl
from jax.experimental.pallas import tpu as pltpu


def _gru_seq_kernel(gi_ref,      # (K, 3H) hoisted input-side gate pre-activations
                    h0_ref,      # (1, H)  initial hidden (resident)
                    whh_ref,     # (H, 3H) W_hh^T, gate-concatenated (resident)
                    bhh_ref,     # (1, 3H) b_hh (resident)
                    out_ref,     # (K, H)  per-step GRU outputs for this block
                    hfin_ref,    # (1, H)  final hidden; doubles as the carry
                    *, steps_per_block, seq_len, hidden_size):
    K, T, H = steps_per_block, seq_len, hidden_size
    i = pl.program_id(0)

    # Seed the carried hidden state from the initial hidden on the first block.
    @pl.when(i == 0)
    def _():
        hfin_ref[...] = h0_ref[...]

    h = hfin_ref[...]                          # (1, H) f32 carry
    gi_all = gi_ref[...]                       # (K, 3H) single block load
    whh = whh_ref[...]                         # (H, 3H) resident recurrent weights
    bhh = bhh_ref[...]                         # (1, 3H)

    rows = []
    for k in range(K):                         # static unroll over K timesteps
        gi = gi_all[k:k + 1, :]                # (1, 3H) static sublane slice
        # One fused recurrent matmul per step; gate slices are lane-aligned.
        gh = jnp.dot(h.astype(whh.dtype), whh,
                     preferred_element_type=jnp.float32) + bhh    # (1, 3H) f32
        i_r, i_z, i_n = gi[:, 0:H], gi[:, H:2 * H], gi[:, 2 * H:3 * H]
        h_r, h_z, h_n = gh[:, 0:H], gh[:, H:2 * H], gh[:, 2 * H:3 * H]
        # PyTorch nn.GRU gate order (r, z, n); r gates only the hidden proj.
        r = jax.nn.sigmoid(i_r + h_r)
        z = jax.nn.sigmoid(i_z + h_z)
        n = jnp.tanh(i_n + r * h_n)
        h_new = (1.0 - z) * n + z * h
        if T % K != 0 and k >= T % K:
            # This step index can be padding in the last grid block: keep the
            # carry unchanged there so the final hidden equals h_{T-1}.
            h = jnp.where(i * K + k < T, h_new, h)
        else:
            h = h_new
        rows.append(h)

    # Single sublane/lane-dense (K, H) store for the whole block of steps.
    out_ref[...] = jnp.concatenate(rows, axis=0).astype(out_ref.dtype)
    hfin_ref[...] = h                          # carry; HBM writeback once at end


def prepare_encoder_params(params, *, mxu_dtype=jnp.float32):
    """One-time parameter preparation (do NOT redo per call).

    Collapses embedding-lookup + input projection into a single (V, 3H) table
    and stores the recurrent weights pre-transposed / gate-concatenated.
    `mxu_dtype=jnp.bfloat16` halves the recurrent-weight stream on v6e/v7x;
    all elementwise gate math stays f32 in the kernel.
    """
    emb = jnp.asarray(params["embedding"], jnp.float32)             # (V, H)
    V, H = emb.shape
    w_ih_t = jnp.asarray(params["w_ih"], jnp.float32).T             # (H, 3H)
    b_ih = jnp.asarray(params["b_ih"], jnp.float32).reshape(1, 3 * H)
    return {
        "hidden_size": H,
        "vocab_size": V,
        # gi_table[v] = emb[v] @ W_ih^T + b_ih, gate order [r | z | n].
        "gi_table": emb @ w_ih_t + b_ih,                            # (V, 3H) f32
        "w_hh_t": jnp.asarray(params["w_hh"], jnp.float32).T.astype(mxu_dtype),
        "b_hh": jnp.asarray(params["b_hh"], jnp.float32).reshape(1, 3 * H),
    }


def encoder_rnn_sequence(tokens, hidden, prepared, *, steps_per_block=8):
    """Run the encoder over a token sequence in a single pallas_call.

    tokens: int32 (T,)   hidden: (1, 1, H) f32
    returns: outputs (T, 1, H), final hidden (1, 1, H)   (PyTorch conventions)
    """
    H = prepared["hidden_size"]
    V = prepared["vocab_size"]
    T = int(tokens.shape[0])
    K = int(steps_per_block)
    n_blocks = int(pl.cdiv(T, K))
    T_pad = n_blocks * K

    # Clamp ids (PyTorch would raise on out-of-range ids; we clamp instead).
    tokens = jnp.clip(tokens.astype(jnp.int32), 0, V - 1)

    # Hoisted input-side projection: one row-gather of the precomputed table.
    gi = jnp.take(prepared["gi_table"], tokens, axis=0)             # (T, 3H)
    if T_pad != T:
        gi = jnp.pad(gi, ((0, T_pad - T), (0, 0)))

    h0 = hidden.reshape(1, H).astype(jnp.float32)

    kernel = functools.partial(_gru_seq_kernel, steps_per_block=K,
                               seq_len=T, hidden_size=H)

    outputs, h_final = pl.pallas_call(
        kernel,
        grid=(n_blocks,),
        in_specs=[
            pl.BlockSpec((K, 3 * H), lambda i: (i, 0)),     # gi rows for this block
            pl.BlockSpec((1, H), lambda i: (0, 0)),         # h0 (resident)
            pl.BlockSpec((H, 3 * H), lambda i: (0, 0)),     # W_hh^T (resident)
            pl.BlockSpec((1, 3 * H), lambda i: (0, 0)),     # b_hh (resident)
        ],
        out_specs=(
            pl.BlockSpec((K, H), lambda i: (i, 0)),         # dense (K,H) output tile
            pl.BlockSpec((1, H), lambda i: (0, 0)),         # final hidden / carry
        ),
        out_shape=(
            jax.ShapeDtypeStruct((T_pad, H), jnp.float32),
            jax.ShapeDtypeStruct((1, H), jnp.float32),
        ),
        compiler_params=pltpu.CompilerParams(
            dimension_semantics=("arbitrary",),             # sequential carry over time
        ),
    )(gi, h0, prepared["w_hh_t"], prepared["b_hh"])

    return outputs[:T].reshape(T, 1, H), h_final.reshape(1, 1, H)


def encoder_rnn_forward(token, hidden, prepared):
    """Exact PyTorch EncoderRNN.forward parity: one token, one step."""
    H = prepared["hidden_size"]
    outputs, h_final = encoder_rnn_sequence(token.reshape(1), hidden, prepared)
    return outputs.reshape(1, 1, H), h_final


def gru_reference_sequence(tokens, hidden, params):
    """Plain-JAX reference: PyTorch GRU, gate order (r, z, n), over a sequence."""
    H = hidden.shape[-1]
    emb = params["embedding"]
    h = hidden.reshape(1, H)
    outs = []
    for t in range(tokens.shape[0]):
        x = emb[tokens[t]].reshape(1, H)
        gi = x @ params["w_ih"].T + params["b_ih"]
        gh = h @ params["w_hh"].T + params["b_hh"]
        i_r, i_z, i_n = gi[:, :H], gi[:, H:2 * H], gi[:, 2 * H:]
        h_r, h_z, h_n = gh[:, :H], gh[:, H:2 * H], gh[:, 2 * H:]
        r = jax.nn.sigmoid(i_r + h_r)
        z = jax.nn.sigmoid(i_z + h_z)
        n = jnp.tanh(i_n + r * h_n)
        h = (1.0 - z) * n + z * h
        outs.append(h)
    return jnp.concatenate(outs, axis=0), h


if __name__ == "__main__":
    VOCAB = 32            # input_size (vocabulary)
    HIDDEN = 256          # hidden_size (matches the module spec; lane-dense)
    SEQ = 8               # token sequence length

    key = jax.random.PRNGKey(0)
    k_emb, k_wih, k_whh, k_bih, k_bhh, k_tok = jax.random.split(key, 6)
    bound = 1.0 / jnp.sqrt(HIDDEN)

    params = {
        "embedding": jax.random.normal(k_emb, (VOCAB, HIDDEN), jnp.float32),
        "w_ih": jax.random.uniform(k_wih, (3 * HIDDEN, HIDDEN), jnp.float32, -bound, bound),
        "w_hh": jax.random.uniform(k_whh, (3 * HIDDEN, HIDDEN), jnp.float32, -bound, bound),
        "b_ih": jax.random.uniform(k_bih, (3 * HIDDEN,), jnp.float32, -bound, bound),
        "b_hh": jax.random.uniform(k_bhh, (3 * HIDDEN,), jnp.float32, -bound, bound),
    }

    tokens = jax.random.randint(k_tok, (SEQ,), 0, VOCAB, dtype=jnp.int32)
    hidden0 = jnp.zeros((1, 1, HIDDEN), jnp.float32)        # EncoderRNN.initHidden()

    # One-time parameter preparation (f32 MXU operands: exact PyTorch parity).
    prepared = prepare_encoder_params(params)

    # Full-sequence encoder (one pallas_call for all steps).
    outputs, hidden_final = encoder_rnn_sequence(tokens, hidden0, prepared)
    outputs = jax.block_until_ready(outputs)
    hidden_final = jax.block_until_ready(hidden_final)

    # Single-step call (exact PyTorch forward signature / shapes; exercises the
    # padded / masked-carry path since T=1 < steps_per_block).
    out1, hid1 = encoder_rnn_forward(tokens[:1], hidden0, prepared)
    out1 = jax.block_until_ready(out1)
    hid1 = jax.block_until_ready(hid1)

    # Verify against a plain-JAX reference of the same math.
    ref_outs, ref_h = gru_reference_sequence(tokens, hidden0, params)
    assert outputs.shape == (SEQ, 1, HIDDEN)
    assert hidden_final.shape == (1, 1, HIDDEN)
    assert jnp.allclose(outputs.reshape(SEQ, HIDDEN), ref_outs, atol=2e-4)
    assert jnp.allclose(hidden_final.reshape(1, HIDDEN), ref_h, atol=2e-4)
    assert out1.shape == (1, 1, HIDDEN) and hid1.shape == (1, 1, HIDDEN)
    assert jnp.allclose(out1.reshape(1, HIDDEN), ref_outs[0:1], atol=2e-4)
    assert jnp.allclose(hid1.reshape(1, HIDDEN), ref_outs[0:1], atol=2e-4)

    # bf16 recurrent-weight path (native MXU input on v6e/v7x); elementwise
    # gate math stays f32, so only the W_hh stream changes precision.
    prepared_bf16 = prepare_encoder_params(params, mxu_dtype=jnp.bfloat16)
    out_bf16, h_bf16 = encoder_rnn_sequence(tokens, hidden0, prepared_bf16)
    out_bf16 = jax.block_until_ready(out_bf16)
    h_bf16 = jax.block_until_ready(h_bf16)
    assert jnp.allclose(out_bf16.reshape(SEQ, HIDDEN), ref_outs, atol=5e-2)
    assert jnp.allclose(h_bf16.reshape(1, HIDDEN), ref_h, atol=5e-2)

    print("KERNEL_OK")
</pallas_src>

<mosaic_0001>
module attributes {stable_mosaic.version = 11 : i64} {
  func.func @_gru_seq_kernel(%arg0: i32, %arg1: memref<8x768xf32, #tpu.memory_space<vmem>>, %arg2: memref<1x256xf32, #tpu.memory_space<vmem>>, %arg3: memref<256x768xf32, #tpu.memory_space<vmem>>, %arg4: memref<1x768xf32, #tpu.memory_space<vmem>>, %arg5: memref<8x256xf32, #tpu.memory_space<vmem>>, %arg6: memref<1x256xf32, #tpu.memory_space<vmem>>) attributes {dimension_semantics = [#tpu.dimension_semantics<arbitrary>], iteration_bounds = array<i64: 1>, scalar_prefetch = 0 : i64, scratch_operands = 0 : i64, tpu.core_type = #tpu.core_type<tc>, window_params = [{transform_indices = @transform_0, window_bounds = array<i64: 8, 768>}, {pipeline_mode = #tpu.pipeline_mode<synchronous>, transform_indices = @transform_1, window_bounds = array<i64: 1, 256>}, {pipeline_mode = #tpu.pipeline_mode<synchronous>, transform_indices = @transform_2, window_bounds = array<i64: 256, 768>}, {pipeline_mode = #tpu.pipeline_mode<synchronous>, transform_indices = @transform_3, window_bounds = array<i64: 1, 768>}, {transform_indices = @transform_4, window_bounds = array<i64: 8, 256>}, {pipeline_mode = #tpu.pipeline_mode<synchronous>, transform_indices = @transform_5, window_bounds = array<i64: 1, 256>}]} {
    %c0_i32 = arith.constant 0 : i32
    %0 = arith.cmpi eq, %arg0, %c0_i32 : i32
    %1 = arith.extui %0 : i1 to i32
    %c0_i32_0 = arith.constant 0 : i32
    %2 = arith.cmpi ne, %1, %c0_i32_0 : i32
    scf.if %2 {
      %c0_43 = arith.constant 0 : index
      %c0_44 = arith.constant 0 : index
      %242 = vector.load %arg2[%c0_43, %c0_44] : memref<1x256xf32, #tpu.memory_space<vmem>>, vector<1x256xf32>
      %c0_45 = arith.constant 0 : index
      %c0_46 = arith.constant 0 : index
      %243 = vector.load %arg6[%c0_45, %c0_46] : memref<1x256xf32, #tpu.memory_space<vmem>>, vector<1x256xf32>
      tpu.vector_store %arg6[%c0_45, %c0_46], %242 {strides = array<i32>} : memref<1x256xf32, #tpu.memory_space<vmem>>, vector<1x256xf32>,
    } else {
    }
    %c0 = arith.constant 0 : index
    %c0_1 = arith.constant 0 : index
    %3 = vector.load %arg6[%c0, %c0_1] : memref<1x256xf32, #tpu.memory_space<vmem>>, vector<1x256xf32>
    %c0_2 = arith.constant 0 : index
    %c0_3 = arith.constant 0 : index
    %4 = vector.load %arg1[%c0_2, %c0_3] : memref<8x768xf32, #tpu.memory_space<vmem>>, vector<8x768xf32>
    %c0_4 = arith.constant 0 : index
    %c0_5 = arith.constant 0 : index
    %5 = vector.load %arg3[%c0_4, %c0_5] : memref<256x768xf32, #tpu.memory_space<vmem>>, vector<256x768xf32>
    %c0_6 = arith.constant 0 : index
    %c0_7 = arith.constant 0 : index
    %6 = vector.load %arg4[%c0_6, %c0_7] : memref<1x768xf32, #tpu.memory_space<vmem>>, vector<1x768xf32>
    %7 = vector.extract_strided_slice %4 {offsets = [0, 0], sizes = [1, 768], strides = [1, 1]} : vector<8x768xf32> to vector<1x768xf32>
    %cst = arith.constant dense<0.000000e+00> : vector<1x768xf32>
    %8 = tpu.matmul %3, %5, %cst {dimension_numbers = #tpu.dot_dimension_numbers<[1], [0], [0], [1], [0, 0, 1, 1], [], []>} : vector<1x256xf32>, vector<256x768xf32>, vector<1x768xf32> -> vector<1x768xf32>
    %9 = arith.addf %8, %6 : vector<1x768xf32>
    %10 = vector.extract_strided_slice %7 {offsets = [0, 0], sizes = [1, 256], strides = [1, 1]} : vector<1x768xf32> to vector<1x256xf32>
    %11 = vector.extract_strided_slice %7 {offsets = [0, 256], sizes = [1, 256], strides = [1, 1]} : vector<1x768xf32> to vector<1x256xf32>
    %12 = vector.extract_strided_slice %7 {offsets = [0, 512], sizes = [1, 256], strides = [1, 1]} : vector<1x768xf32> to vector<1x256xf32>
    %13 = vector.extract_strided_slice %9 {offsets = [0, 0], sizes = [1, 256], strides = [1, 1]} : vector<1x768xf32> to vector<1x256xf32>
    %14 = vector.extract_strided_slice %9 {offsets = [0, 256], sizes = [1, 256], strides = [1, 1]} : vector<1x768xf32> to vector<1x256xf32>
    %15 = vector.extract_strided_slice %9 {offsets = [0, 512], sizes = [1, 256], strides = [1, 1]} : vector<1x768xf32> to vector<1x256xf32>
    %16 = arith.addf %10, %13 : vector<1x256xf32>
    %17 = arith.negf %16 : vector<1x256xf32>
    %18 = math.exp %17 : vector<1x256xf32>
    %cst_8 = arith.constant 1.000000e+00 : f32
    %19 = vector.broadcast %cst_8 : f32 to vector<1x256xf32>
    %20 = arith.addf %19, %18 : vector<1x256xf32>
    %21 = arith.divf %19, %20 : vector<1x256xf32>
    %22 = arith.addf %11, %14 : vector<1x256xf32>
    %23 = arith.negf %22 : vector<1x256xf32>
    %24 = math.exp %23 : vector<1x256xf32>
    %cst_9 = arith.constant 1.000000e+00 : f32
    %25 = vector.broadcast %cst_9 : f32 to vector<1x256xf32>
    %26 = arith.addf %25, %24 : vector<1x256xf32>
    %27 = arith.divf %25, %26 : vector<1x256xf32>
    %28 = arith.mulf %21, %15 : vector<1x256xf32>
    %29 = arith.addf %12, %28 : vector<1x256xf32>
    %30 = math.tanh %29 : vector<1x256xf32>
    %cst_10 = arith.constant 1.000000e+00 : f32
    %31 = vector.broadcast %cst_10 : f32 to vector<1x256xf32>
    %32 = arith.subf %31, %27 : vector<1x256xf32>
    %33 = arith.mulf %32, %30 : vector<1x256xf32>
    %34 = arith.mulf %27, %3 : vector<1x256xf32>
    %35 = arith.addf %33, %34 : vector<1x256xf32>
    %36 = vector.extract_strided_slice %4 {offsets = [1, 0], sizes = [1, 768], strides = [1, 1]} : vector<8x768xf32> to vector<1x768xf32>
    %cst_11 = arith.constant dense<0.000000e+00> : vector<1x768xf32>
    %37 = tpu.matmul %35, %5, %cst_11 {dimension_numbers = #tpu.dot_dimension_numbers<[1], [0], [0], [1], [0, 0, 1, 1], [], []>} : vector<1x256xf32>, vector<256x768xf32>, vector<1x768xf32> -> vector<1x768xf32>
    %38 = arith.addf %37, %6 : vector<1x768xf32>
    %39 = vector.extract_strided_slice %36 {offsets = [0, 0], sizes = [1, 256], strides = [1, 1]} : vector<1x768xf32> to vector<1x256xf32>
    %40 = vector.extract_strided_slice %36 {offsets = [0, 256], sizes = [1, 256], strides = [1, 1]} : vector<1x768xf32> to vector<1x256xf32>
    %41 = vector.extract_strided_slice %36 {offsets = [0, 512], sizes = [1, 256], strides = [1, 1]} : vector<1x768xf32> to vector<1x256xf32>
    %42 = vector.extract_strided_slice %38 {offsets = [0, 0], sizes = [1, 256], strides = [1, 1]} : vector<1x768xf32> to vector<1x256xf32>
    %43 = vector.extract_strided_slice %38 {offsets = [0, 256], sizes = [1, 256], strides = [1, 1]} : vector<1x768xf32> to vector<1x256xf32>
    %44 = vector.extract_strided_slice %38 {offsets = [0, 512], sizes = [1, 256], strides = [1, 1]} : vector<1x768xf32> to vector<1x256xf32>
    %45 = arith.addf %39, %42 : vector<1x256xf32>
    %46 = arith.negf %45 : vector<1x256xf32>
    %47 = math.exp %46 : vector<1x256xf32>
    %cst_12 = arith.constant 1.000000e+00 : f32
    %48 = vector.broadcast %cst_12 : f32 to vector<1x256xf32>
    %49 = arith.addf %48, %47 : vector<1x256xf32>
    %50 = arith.divf %48, %49 : vector<1x256xf32>
    %51 = arith.addf %40, %43 : vector<1x256xf32>
    %52 = arith.negf %51 : vector<1x256xf32>
    %53 = math.exp %52 : vector<1x256xf32>
    %cst_13 = arith.constant 1.000000e+00 : f32
    %54 = vector.broadcast %cst_13 : f32 to vector<1x256xf32>
    %55 = arith.addf %54, %53 : vector<1x256xf32>
    %56 = arith.divf %54, %55 : vector<1x256xf32>
    %57 = arith.mulf %50, %44 : vector<1x256xf32>
    %58 = arith.addf %41, %57 : vector<1x256xf32>
    %59 = math.tanh %58 : vector<1x256xf32>
    %cst_14 = arith.constant 1.000000e+00 : f32
    %60 = vector.broadcast %cst_14 : f32 to vector<1x256xf32>
    %61 = arith.subf %60, %56 : vector<1x256xf32>
    %62 = arith.mulf %61, %59 : vector<1x256xf32>
    %63 = arith.mulf %56, %35 : vector<1x256xf32>
    %64 = arith.addf %62, %63 : vector<1x256xf32>
    %65 = vector.extract_strided_slice %4 {offsets = [2, 0], sizes = [1, 768], strides = [1, 1]} : vector<8x768xf32> to vector<1x768xf32>
    %cst_15 = arith.constant dense<0.000000e+00> : vector<1x768xf32>
    %66 = tpu.matmul %64, %5, %cst_15 {dimension_numbers = #tpu.dot_dimension_numbers<[1], [0], [0], [1], [0, 0, 1, 1], [], []>} : vector<1x256xf32>, vector<256x768xf32>, vector<1x768xf32> -> vector<1x768xf32>
    %67 = arith.addf %66, %6 : vector<1x768xf32>
    %68 = vector.extract_strided_slice %65 {offsets = [0, 0], sizes = [1, 256], strides = [1, 1]} : vector<1x768xf32> to vector<1x256xf32>
    %69 = vector.extract_strided_slice %65 {offsets = [0, 256], sizes = [1, 256], strides = [1, 1]} : vector<1x768xf32> to vector<1x256xf32>
    %70 = vector.extract_strided_slice %65 {offsets = [0, 512], sizes = [1, 256], strides = [1, 1]} : vector<1x768xf32> to vector<1x256xf32>
    %71 = vector.extract_strided_slice %67 {offsets = [0, 0], sizes = [1, 256], strides = [1, 1]} : vector<1x768xf32> to vector<1x256xf32>
    %72 = vector.extract_strided_slice %67 {offsets = [0, 256], sizes = [1, 256], strides = [1, 1]} : vector<1x768xf32> to vector<1x256xf32>
    %73 = vector.extract_strided_slice %67 {offsets = [0, 512], sizes = [1, 256], strides = [1, 1]} : vector<1x768xf32> to vector<1x256xf32>
    %74 = arith.addf %68, %71 : vector<1x256xf32>
    %75 = arith.negf %74 : vector<1x256xf32>
    %76 = math.exp %75 : vector<1x256xf32>
    %cst_16 = arith.constant 1.000000e+00 : f32
    %77 = vector.broadcast %cst_16 : f32 to vector<1x256xf32>
    %78 = arith.addf %77, %76 : vector<1x256xf32>
    %79 = arith.divf %77, %78 : vector<1x256xf32>
    %80 = arith.addf %69, %72 : vector<1x256xf32>
    %81 = arith.negf %80 : vector<1x256xf32>
    %82 = math.exp %81 : vector<1x256xf32>
    %cst_17 = arith.constant 1.000000e+00 : f32
    %83 = vector.broadcast %cst_17 : f32 to vector<1x256xf32>
    %84 = arith.addf %83, %82 : vector<1x256xf32>
    %85 = arith.divf %83, %84 : vector<1x256xf32>
    %86 = arith.mulf %79, %73 : vector<1x256xf32>
    %87 = arith.addf %70, %86 : vector<1x256xf32>
    %88 = math.tanh %87 : vector<1x256xf32>
    %cst_18 = arith.constant 1.000000e+00 : f32
    %89 = vector.broadcast %cst_18 : f32 to vector<1x256xf32>
    %90 = arith.subf %89, %85 : vector<1x256xf32>
    %91 = arith.mulf %90, %88 : vector<1x256xf32>
    %92 = arith.mulf %85, %64 : vector<1x256xf32>
    %93 = arith.addf %91, %92 : vector<1x256xf32>
    %94 = vector.extract_strided_slice %4 {offsets = [3, 0], sizes = [1, 768], strides = [1, 1]} : vector<8x768xf32> to vector<1x768xf32>
    %cst_19 = arith.constant dense<0.000000e+00> : vector<1x768xf32>
    %95 = tpu.matmul %93, %5, %cst_19 {dimension_numbers = #tpu.dot_dimension_numbers<[1], [0], [0], [1], [0, 0, 1, 1], [], []>} : vector<1x256xf32>, vector<256x768xf32>, vector<1x768xf32> -> vector<1x768xf32>
    %96 = arith.addf %95, %6 : vector<1x768xf32>
    %97 = vector.extract_strided_slice %94 {offsets = [0, 0], sizes = [1, 256], strides = [1, 1]} : vector<1x768xf32> to vector<1x256xf32>
    %98 = vector.extract_strided_slice %94 {offsets = [0, 256], sizes = [1, 256], strides = [1, 1]} : vector<1x768xf32> to vector<1x256xf32>
    %99 = vector.extract_strided_slice %94 {offsets = [0, 512], sizes = [1, 256], strides = [1, 1]} : vector<1x768xf32> to vector<1x256xf32>
    %100 = vector.extract_strided_slice %96 {offsets = [0, 0], sizes = [1, 256], strides = [1, 1]} : vector<1x768xf32> to vector<1x256xf32>
    %101 = vector.extract_strided_slice %96 {offsets = [0, 256], sizes = [1, 256], strides = [1, 1]} : vector<1x768xf32> to vector<1x256xf32>
    %102 = vector.extract_strided_slice %96 {offsets = [0, 512], sizes = [1, 256], strides = [1, 1]} : vector<1x768xf32> to vector<1x256xf32>
    %103 = arith.addf %97, %100 : vector<1x256xf32>
    %104 = arith.negf %103 : vector<1x256xf32>
    %105 = math.exp %104 : vector<1x256xf32>
    %cst_20 = arith.constant 1.000000e+00 : f32
    %106 = vector.broadcast %cst_20 : f32 to vector<1x256xf32>
    %107 = arith.addf %106, %105 : vector<1x256xf32>
    %108 = arith.divf %106, %107 : vector<1x256xf32>
    %109 = arith.addf %98, %101 : vector<1x256xf32>
    %110 = arith.negf %109 : vector<1x256xf32>
    %111 = math.exp %110 : vector<1x256xf32>
    %cst_21 = arith.constant 1.000000e+00 : f32
    %112 = vector.broadcast %cst_21 : f32 to vector<1x256xf32>
    %113 = arith.addf %112, %111 : vector<1x256xf32>
    %114 = arith.divf %112, %113 : vector<1x256xf32>
    %115 = arith.mulf %108, %102 : vector<1x256xf32>
    %116 = arith.addf %99, %115 : vector<1x256xf32>
    %117 = math.tanh %116 : vector<1x256xf32>
    %cst_22 = arith.constant 1.000000e+00 : f32
    %118 = vector.broadcast %cst_22 : f32 to vector<1x256xf32>
    %119 = arith.subf %118, %114 : vector<1x256xf32>
    %120 = arith.mulf %119, %117 : vector<1x256xf32>
    %121 = arith.mulf %114, %93 : vector<1x256xf32>
    %122 = arith.addf %120, %121 : vector<1x256xf32>
    %123 = vector.extract_strided_slice %4 {offsets = [4, 0], sizes = [1, 768], strides = [1, 1]} : vector<8x768xf32> to vector<1x768xf32>
    %cst_23 = arith.constant dense<0.000000e+00> : vector<1x768xf32>
    %124 = tpu.matmul %122, %5, %cst_23 {dimension_numbers = #tpu.dot_dimension_numbers<[1], [0], [0], [1], [0, 0, 1, 1], [], []>} : vector<1x256xf32>, vector<256x768xf32>, vector<1x768xf32> -> vector<1x768xf32>
    %125 = arith.addf %124, %6 : vector<1x768xf32>
    %126 = vector.extract_strided_slice %123 {offsets = [0, 0], sizes = [1, 256], strides = [1, 1]} : vector<1x768xf32> to vector<1x256xf32>
    %127 = vector.extract_strided_slice %123 {offsets = [0, 256], sizes = [1, 256], strides = [1, 1]} : vector<1x768xf32> to vector<1x256xf32>
    %128 = vector.extract_strided_slice %123 {offsets = [0, 512], sizes = [1, 256], strides = [1, 1]} : vector<1x768xf32> to vector<1x256xf32>
    %129 = vector.extract_strided_slice %125 {offsets = [0, 0], sizes = [1, 256], strides = [1, 1]} : vector<1x768xf32> to vector<1x256xf32>
    %130 = vector.extract_strided_slice %125 {offsets = [0, 256], sizes = [1, 256], strides = [1, 1]} : vector<1x768xf32> to vector<1x256xf32>
    %131 = vector.extract_strided_slice %125 {offsets = [0, 512], sizes = [1, 256], strides = [1, 1]} : vector<1x768xf32> to vector<1x256xf32>
    %132 = arith.addf %126, %129 : vector<1x256xf32>
    %133 = arith.negf %132 : vector<1x256xf32>
    %134 = math.exp %133 : vector<1x256xf32>
    %cst_24 = arith.constant 1.000000e+00 : f32
    %135 = vector.broadcast %cst_24 : f32 to vector<1x256xf32>
    %136 = arith.addf %135, %134 : vector<1x256xf32>
    %137 = arith.divf %135, %136 : vector<1x256xf32>
    %138 = arith.addf %127, %130 : vector<1x256xf32>
    %139 = arith.negf %138 : vector<1x256xf32>
    %140 = math.exp %139 : vector<1x256xf32>
    %cst_25 = arith.constant 1.000000e+00 : f32
    %141 = vector.broadcast %cst_25 : f32 to vector<1x256xf32>
    %142 = arith.addf %141, %140 : vector<1x256xf32>
    %143 = arith.divf %141, %142 : vector<1x256xf32>
    %144 = arith.mulf %137, %131 : vector<1x256xf32>
    %145 = arith.addf %128, %144 : vector<1x256xf32>
    %146 = math.tanh %145 : vector<1x256xf32>
    %cst_26 = arith.constant 1.000000e+00 : f32
    %147 = vector.broadcast %cst_26 : f32 to vector<1x256xf32>
    %148 = arith.subf %147, %143 : vector<1x256xf32>
    %149 = arith.mulf %148, %146 : vector<1x256xf32>
    %150 = arith.mulf %143, %122 : vector<1x256xf32>
    %151 = arith.addf %149, %150 : vector<1x256xf32>
    %152 = vector.extract_strided_slice %4 {offsets = [5, 0], sizes = [1, 768], strides = [1, 1]} : vector<8x768xf32> to vector<1x768xf32>
    %cst_27 = arith.constant dense<0.000000e+00> : vector<1x768xf32>
    %153 = tpu.matmul %151, %5, %cst_27 {dimension_numbers = #tpu.dot_dimension_numbers<[1], [0], [0], [1], [0, 0, 1, 1], [], []>} : vector<1x256xf32>, vector<256x768xf32>, vector<1x768xf32> -> vector<1x768xf32>
    %154 = arith.addf %153, %6 : vector<1x768xf32>
    %155 = vector.extract_strided_slice %152 {offsets = [0, 0], sizes = [1, 256], strides = [1, 1]} : vector<1x768xf32> to vector<1x256xf32>
    %156 = vector.extract_strided_slice %152 {offsets = [0, 256], sizes = [1, 256], strides = [1, 1]} : vector<1x768xf32> to vector<1x256xf32>
    %157 = vector.extract_strided_slice %152 {offsets = [0, 512], sizes = [1, 256], strides = [1, 1]} : vector<1x768xf32> to vector<1x256xf32>
    %158 = vector.extract_strided_slice %154 {offsets = [0, 0], sizes = [1, 256], strides = [1, 1]} : vector<1x768xf32> to vector<1x256xf32>
    %159 = vector.extract_strided_slice %154 {offsets = [0, 256], sizes = [1, 256], strides = [1, 1]} : vector<1x768xf32> to vector<1x256xf32>
    %160 = vector.extract_strided_slice %154 {offsets = [0, 512], sizes = [1, 256], strides = [1, 1]} : vector<1x768xf32> to vector<1x256xf32>
    %161 = arith.addf %155, %158 : vector<1x256xf32>
    %162 = arith.negf %161 : vector<1x256xf32>
    %163 = math.exp %162 : vector<1x256xf32>
    %cst_28 = arith.constant 1.000000e+00 : f32
    %164 = vector.broadcast %cst_28 : f32 to vector<1x256xf32>
    %165 = arith.addf %164, %163 : vector<1x256xf32>
    %166 = arith.divf %164, %165 : vector<1x256xf32>
    %167 = arith.addf %156, %159 : vector<1x256xf32>
    %168 = arith.negf %167 : vector<1x256xf32>
    %169 = math.exp %168 : vector<1x256xf32>
    %cst_29 = arith.constant 1.000000e+00 : f32
    %170 = vector.broadcast %cst_29 : f32 to vector<1x256xf32>
    %171 = arith.addf %170, %169 : vector<1x256xf32>
    %172 = arith.divf %170, %171 : vector<1x256xf32>
    %173 = arith.mulf %166, %160 : vector<1x256xf32>
    %174 = arith.addf %157, %173 : vector<1x256xf32>
    %175 = math.tanh %174 : vector<1x256xf32>
    %cst_30 = arith.constant 1.000000e+00 : f32
    %176 = vector.broadcast %cst_30 : f32 to vector<1x256xf32>
    %177 = arith.subf %176, %172 : vector<1x256xf32>
    %178 = arith.mulf %177, %175 : vector<1x256xf32>
    %179 = arith.mulf %172, %151 : vector<1x256xf32>
    %180 = arith.addf %178, %179 : vector<1x256xf32>
    %181 = vector.extract_strided_slice %4 {offsets = [6, 0], sizes = [1, 768], strides = [1, 1]} : vector<8x768xf32> to vector<1x768xf32>
    %cst_31 = arith.constant dense<0.000000e+00> : vector<1x768xf32>
    %182 = tpu.matmul %180, %5, %cst_31 {dimension_numbers = #tpu.dot_dimension_numbers<[1], [0], [0], [1], [0, 0, 1, 1], [], []>} : vector<1x256xf32>, vector<256x768xf32>, vector<1x768xf32> -> vector<1x768xf32>
    %183 = arith.addf %182, %6 : vector<1x768xf32>
    %184 = vector.extract_strided_slice %181 {offsets = [0, 0], sizes = [1, 256], strides = [1, 1]} : vector<1x768xf32> to vector<1x256xf32>
    %185 = vector.extract_strided_slice %181 {offsets = [0, 256], sizes = [1, 256], strides = [1, 1]} : vector<1x768xf32> to vector<1x256xf32>
    %186 = vector.extract_strided_slice %181 {offsets = [0, 512], sizes = [1, 256], strides = [1, 1]} : vector<1x768xf32> to vector<1x256xf32>
    %187 = vector.extract_strided_slice %183 {offsets = [0, 0], sizes = [1, 256], strides = [1, 1]} : vector<1x768xf32> to vector<1x256xf32>
    %188 = vector.extract_strided_slice %183 {offsets = [0, 256], sizes = [1, 256], strides = [1, 1]} : vector<1x768xf32> to vector<1x256xf32>
    %189 = vector.extract_strided_slice %183 {offsets = [0, 512], sizes = [1, 256], strides = [1, 1]} : vector<1x768xf32> to vector<1x256xf32>
    %190 = arith.addf %184, %187 : vector<1x256xf32>
    %191 = arith.negf %190 : vector<1x256xf32>
    %192 = math.exp %191 : vector<1x256xf32>
    %cst_32 = arith.constant 1.000000e+00 : f32
    %193 = vector.broadcast %cst_32 : f32 to vector<1x256xf32>
    %194 = arith.addf %193, %192 : vector<1x256xf32>
    %195 = arith.divf %193, %194 : vector<1x256xf32>
    %196 = arith.addf %185, %188 : vector<1x256xf32>
    %197 = arith.negf %196 : vector<1x256xf32>
    %198 = math.exp %197 : vector<1x256xf32>
    %cst_33 = arith.constant 1.000000e+00 : f32
    %199 = vector.broadcast %cst_33 : f32 to vector<1x256xf32>
    %200 = arith.addf %199, %198 : vector<1x256xf32>
    %201 = arith.divf %199, %200 : vector<1x256xf32>
    %202 = arith.mulf %195, %189 : vector<1x256xf32>
    %203 = arith.addf %186, %202 : vector<1x256xf32>
    %204 = math.tanh %203 : vector<1x256xf32>
    %cst_34 = arith.constant 1.000000e+00 : f32
    %205 = vector.broadcast %cst_34 : f32 to vector<1x256xf32>
    %206 = arith.subf %205, %201 : vector<1x256xf32>
    %207 = arith.mulf %206, %204 : vector<1x256xf32>
    %208 = arith.mulf %201, %180 : vector<1x256xf32>
    %209 = arith.addf %207, %208 : vector<1x256xf32>
    %210 = vector.extract_strided_slice %4 {offsets = [7, 0], sizes = [1, 768], strides = [1, 1]} : vector<8x768xf32> to vector<1x768xf32>
    %cst_35 = arith.constant dense<0.000000e+00> : vector<1x768xf32>
    %211 = tpu.matmul %209, %5, %cst_35 {dimension_numbers = #tpu.dot_dimension_numbers<[1], [0], [0], [1], [0, 0, 1, 1], [], []>} : vector<1x256xf32>, vector<256x768xf32>, vector<1x768xf32> -> vector<1x768xf32>
    %212 = arith.addf %211, %6 : vector<1x768xf32>
    %213 = vector.extract_strided_slice %210 {offsets = [0, 0], sizes = [1, 256], strides = [1, 1]} : vector<1x768xf32> to vector<1x256xf32>
    %214 = vector.extract_strided_slice %210 {offsets = [0, 256], sizes = [1, 256], strides = [1, 1]} : vector<1x768xf32> to vector<1x256xf32>
    %215 = vector.extract_strided_slice %210 {offsets = [0, 512], sizes = [1, 256], strides = [1, 1]} : vector<1x768xf32> to vector<1x256xf32>
    %216 = vector.extract_strided_slice %212 {offsets = [0, 0], sizes = [1, 256], strides = [1, 1]} : vector<1x768xf32> to vector<1x256xf32>
    %217 = vector.extract_strided_slice %212 {offsets = [0, 256], sizes = [1, 256], strides = [1, 1]} : vector<1x768xf32> to vector<1x256xf32>
    %218 = vector.extract_strided_slice %212 {offsets = [0, 512], sizes = [1, 256], strides = [1, 1]} : vector<1x768xf32> to vector<1x256xf32>
    %219 = arith.addf %213, %216 : vector<1x256xf32>
    %220 = arith.negf %219 : vector<1x256xf32>
    %221 = math.exp %220 : vector<1x256xf32>
    %cst_36 = arith.constant 1.000000e+00 : f32
    %222 = vector.broadcast %cst_36 : f32 to vector<1x256xf32>
    %223 = arith.addf %222, %221 : vector<1x256xf32>
    %224 = arith.divf %222, %223 : vector<1x256xf32>
    %225 = arith.addf %214, %217 : vector<1x256xf32>
    %226 = arith.negf %225 : vector<1x256xf32>
    %227 = math.exp %226 : vector<1x256xf32>
    %cst_37 = arith.constant 1.000000e+00 : f32
    %228 = vector.broadcast %cst_37 : f32 to vector<1x256xf32>
    %229 = arith.addf %228, %227 : vector<1x256xf32>
    %230 = arith.divf %228, %229 : vector<1x256xf32>
    %231 = arith.mulf %224, %218 : vector<1x256xf32>
    %232 = arith.addf %215, %231 : vector<1x256xf32>
    %233 = math.tanh %232 : vector<1x256xf32>
    %cst_38 = arith.constant 1.000000e+00 : f32
    %234 = vector.broadcast %cst_38 : f32 to vector<1x256xf32>
    %235 = arith.subf %234, %230 : vector<1x256xf32>
    %236 = arith.mulf %235, %233 : vector<1x256xf32>
    %237 = arith.mulf %230, %209 : vector<1x256xf32>
    %238 = arith.addf %236, %237 : vector<1x256xf32>
    %239 = tpu.concatenate %35, %64, %93, %122, %151, %180, %209, %238 in 0 : vector<1x256xf32>, vector<1x256xf32>, vector<1x256xf32>, vector<1x256xf32>, vector<1x256xf32>, vector<1x256xf32>, vector<1x256xf32>, vector<1x256xf32> -> vector<8x256xf32>
    %c0_39 = arith.constant 0 : index
    %c0_40 = arith.constant 0 : index
    %240 = vector.load %arg5[%c0_39, %c0_40] : memref<8x256xf32, #tpu.memory_space<vmem>>, vector<8x256xf32>
    tpu.vector_store %arg5[%c0_39, %c0_40], %239 {strides = array<i32>} : memref<8x256xf32, #tpu.memory_space<vmem>>, vector<8x256xf32>,
    %c0_41 = arith.constant 0 : index
    %c0_42 = arith.constant 0 : index
    %241 = vector.load %arg6[%c0_41, %c0_42] : memref<1x256xf32, #tpu.memory_space<vmem>>, vector<1x256xf32>
    tpu.vector_store %arg6[%c0_41, %c0_42], %238 {strides = array<i32>} : memref<1x256xf32, #tpu.memory_space<vmem>>, vector<1x256xf32>,
    return
  }
  func.func @transform_0(%arg0: i32) -> (i32, i32) {
    %c0_i32 = arith.constant 0 : i32
    %c0_i32_0 = arith.constant 0 : i32
    return %arg0, %c0_i32 : i32, i32
  }
  func.func @transform_1(%arg0: i32) -> (i32, i32) {
    %c0_i32 = arith.constant 0 : i32
    %c0_i32_0 = arith.constant 0 : i32
    %c0_i32_1 = arith.constant 0 : i32
    return %c0_i32, %c0_i32_0 : i32, i32
  }
  func.func @transform_2(%arg0: i32) -> (i32, i32) {
    %c0_i32 = arith.constant 0 : i32
    %c0_i32_0 = arith.constant 0 : i32
    %c0_i32_1 = arith.constant 0 : i32
    return %c0_i32, %c0_i32_0 : i32, i32
  }
  func.func @transform_3(%arg0: i32) -> (i32, i32) {
    %c0_i32 = arith.constant 0 : i32
    %c0_i32_0 = arith.constant 0 : i32
    %c0_i32_1 = arith.constant 0 : i32
    return %c0_i32, %c0_i32_0 : i32, i32
  }
  func.func @transform_4(%arg0: i32) -> (i32, i32) {
    %c0_i32 = arith.constant 0 : i32
    %c0_i32_0 = arith.constant 0 : i32
    return %arg0, %c0_i32 : i32, i32
  }
  func.func @transform_5(%arg0: i32) -> (i32, i32) {
    %c0_i32 = arith.constant 0 : i32
    %c0_i32_0 = arith.constant 0 : i32
    %c0_i32_1 = arith.constant 0 : i32
    return %c0_i32, %c0_i32_0 : i32, i32
  }
}

</mosaic_0001>

<llo_original>
// kernel: tpu_custom_call.1
$region0: #{tpu_custom_call.1}
  #allocation0 [shape = 'u32[]', space=smem, size = 0x4, offset = 0x4, fixed_abs, tag = 'smem constant byte address 0x4 - core index']
  #allocation1 [shape = 'u32[72,128]{1,0:T(1,128)}', space=vmem, size = 0x9000, scoped, tag = 'internal scratch']
  %s0 = inlined_call_operand.hbm [shape: f32[8,768], index: 0, kind: input, shape index: {}]
  %s1 = inlined_call_operand.hbm [shape: f32[1,256], index: 1, kind: input, shape index: {}]
  %s2 = inlined_call_operand.hbm [shape: f32[256,768], index: 2, kind: input, shape index: {}]
  %s3 = inlined_call_operand.hbm [shape: f32[1,768], index: 3, kind: input, shape index: {}]
  %s4 = inlined_call_operand.hbm [shape: f32[8,256], index: 4, kind: output, shape index: {0}]
  %s5 = inlined_call_operand.hbm [shape: f32[1,256], index: 5, kind: output, shape index: {1}]
  %6 = xla_tuple %s4, %s5
  %s7 = sld [smem:[#allocation0]]
  $region54: #{tpu_custom_call.1} parent=0
    _
  %s9 = ssub.s32 1, %s7
  %s10 = scalar_select 0, %s9, %s7
  $region1: #{tpu_custom_call.1} parent=0
    #allocation2 [shape = 'u8[24576]{0}', space=vmem, size = 0x6000, scoped, tag = 'input window, operand 0, single buffered']
    #allocation3 [shape = 's32[1]{0}', space=sflag, size = 0x4, scoped, tag = 'scoped memory for tpu_custom_call.1']
    #allocation4 [shape = 's32[1]{0}', space=sflag, size = 0x4, scoped, tag = 'scoped memory for tpu_custom_call.1']
    #allocation5 [shape = 'u8[1024]{0}', space=vmem, size = 0x400, scoped, tag = 'input window, operand 1, single buffered']
    #allocation6 [shape = 's32[1]{0}', space=sflag, size = 0x4, scoped, tag = 'scoped memory for tpu_custom_call.1']
    #allocation7 [shape = 'u8[786432]{0}', space=vmem, size = 0xc0000, scoped, tag = 'input window, operand 2, single buffered']
    #allocation8 [shape = 'u8[3072]{0}', space=vmem, size = 0xc00, scoped, tag = 'input window, operand 3, single buffered']
    #allocation9 [shape = 's32[1]{0}', space=sflag, size = 0x4, scoped, tag = 'scoped memory for tpu_custom_call.1']
    #allocation10 [shape = 'u8[8192]{0}', space=vmem, size = 0x2000, scoped, tag = 'output window, operand 0, single buffered']
    #allocation11 [shape = 'u8[1024]{0}', space=vmem, size = 0x400, scoped, tag = 'output window, operand 1, single buffered']
    #allocation12 [shape = 's32[1]{0}', space=sflag, size = 0x4, scoped, tag = 'scoped memory for tpu_custom_call.1']
    %11 = vsyncpa [#allocation3], 0
    %12 = vsyncpa [#allocation6], 0
    %13 = vsyncpa [#allocation9], 0
    %14 = vsyncpa [#allocation4], 0
    %15 = vsyncpa [#allocation12], 0
    // Predicated region
    $region2: #{tpu_custom_call.1} parent=1 // pred_check
      _
    $region3: #{tpu_custom_call.1} parent=1 // pred_check_branch
      %17 = sbr.rel (0) target = $region5
    $region4: #{tpu_custom_call.1} parent=1 // pred_region
      %19 = vsyncadd [#allocation3], 0
      %s21 = sshll.u32 %s0, 4
      %s22 = int_to_ptr.hbm [resolvable:$true] %s21
      %s23 = sshll.u32 [#allocation2], 4
      %s24 = int_to_ptr.vmem [resolvable:$true] %s23
      %26 = dma.hbm_to_vmem [thread:$0]  %s22, 768, %s24, [#allocation3]
    $region5: #{tpu_custom_call.1} parent=1 // pred_fallthru
      _
    // Predicated region
    $region6: #{tpu_custom_call.1} parent=1 // pred_check
      _
    $region7: #{tpu_custom_call.1} parent=1 // pred_check_branch
      %28 = sbr.rel (0) target = $region9
    $region8: #{tpu_custom_call.1} parent=1 // pred_region
      %30 = vsyncadd [#allocation6], 0
      %s32 = sshll.u32 %s1, 4
      %s33 = int_to_ptr.hbm [resolvable:$true] %s32
      %s34 = sshll.u32 [#allocation5], 4
      %s35 = int_to_ptr.vmem [resolvable:$true] %s34
      %37 = dma.hbm_to_vmem [thread:$0]  %s33, 32, %s35, [#allocation6]
    $region9: #{tpu_custom_call.1} parent=1 // pred_fallthru
      _
    // Predicated region
    $region10: #{tpu_custom_call.1} parent=1 // pred_check
      _
    $region11: #{tpu_custom_call.1} parent=1 // pred_check_branch
      %39 = sbr.rel (0) target = $region13
    $region12: #{tpu_custom_call.1} parent=1 // pred_region
      %41 = vsyncadd [#allocation6], 0
      %s42 = sshll.u32 %s2, 4
      %s43 = int_to_ptr.hbm [resolvable:$true] %s42
      %s44 = sshll.u32 [#allocation7], 4
      %s45 = int_to_ptr.vmem [resolvable:$true] %s44
      %50 = dma.hbm_to_vmem [thread:$0]  %s43, 24576, %s45, [#allocation6], 768, 768, 48
    $region13: #{tpu_custom_call.1} parent=1 // pred_fallthru
      _
    // Predicated region
    $region14: #{tpu_custom_call.1} parent=1 // pred_check
      _
    $region15: #{tpu_custom_call.1} parent=1 // pred_check_branch
      %52 = sbr.rel (0) target = $region17
    $region16: #{tpu_custom_call.1} parent=1 // pred_region
      %54 = vsyncadd [#allocation9], 0
      %s56 = sshll.u32 %s3, 4
      %s57 = int_to_ptr.hbm [resolvable:$true] %s56
      %s58 = sshll.u32 [#allocation8], 4
      %s59 = int_to_ptr.vmem [resolvable:$true] %s58
      %61 = dma.hbm_to_vmem [thread:$0]  %s57, 96, %s59, [#allocation9]
    $region17: #{tpu_custom_call.1} parent=1 // pred_fallthru
      _
    // Predicated region
    $region18: #{tpu_custom_call.1} parent=1 // pred_check
      _
    $region19: #{tpu_custom_call.1} parent=1 // pred_check_branch
      %63 = sbr.rel (0) target = $region21
    $region20: #{tpu_custom_call.1} parent=1 // pred_region
      %65 = dma.done [#allocation3], 768
    $region21: #{tpu_custom_call.1} parent=1 // pred_fallthru
      _
    // Predicated region
    $region22: #{tpu_custom_call.1} parent=1 // pred_check
      _
    $region23: #{tpu_custom_call.1} parent=1 // pred_check_branch
      %67 = sbr.rel (0) target = $region25
    $region24: #{tpu_custom_call.1} parent=1 // pred_region
      %69 = dma.done [#allocation6], 32
    $region25: #{tpu_custom_call.1} parent=1 // pred_fallthru
      _
    // Predicated region
    $region26: #{tpu_custom_call.1} parent=1 // pred_check
      _
    $region27: #{tpu_custom_call.1} parent=1 // pred_check_branch
      %71 = sbr.rel (0) target = $region29
    $region28: #{tpu_custom_call.1} parent=1 // pred_region
      %73 = dma.done [#allocation6], 24576
    $region29: #{tpu_custom_call.1} parent=1 // pred_fallthru
      _
    // Predicated region
    $region30: #{tpu_custom_call.1} parent=1 // pred_check
      _
    $region31: #{tpu_custom_call.1} parent=1 // pred_check_branch
      %75 = sbr.rel (0) target = $region33
    $region32: #{tpu_custom_call.1} parent=1 // pred_region
      %77 = dma.done [#allocation9], 96
    $region33: #{tpu_custom_call.1} parent=1 // pred_fallthru
      _
    %p78 = scmp.eq.s32.totalorder 0, 0
    // Predicated region
    $region34: #{tpu_custom_call.1} parent=1 // pred_check
      %p79 = pneg %p78
    $region35: #{tpu_custom_call.1} parent=1 // pred_check_branch
      %81 = sbr.rel (%p79) target = $region37
    $region36: #{tpu_custom_call.1} parent=1 // pred_region
      %v82 = vld [vmem:[#allocation5] sm:$0x3]
      %v83 = vlaneseq
      %vm84 = vcmp.ge.s32.totalorder %v83, 0
      %vm85 = vcmp.lt.s32.totalorder %v83, 256
      %vm86 = vmand %vm84, %vm85
      %87 = vst.msk [vmem:[#allocation11] sm:$0x3] %vm86, %v82
    $region37: #{tpu_custom_call.1} parent=1 // pred_fallthru
      _
    %v88 = vld [vmem:[#allocation11] sm:$0x3]
    %v89 = vld [vmem:[#allocation2] sm:$0xff]
    %v90 = vld [vmem:[#allocation2 + $0x8] sm:$0xff]
    %v91 = vld [vmem:[#allocation2 + $0x10] sm:$0xff]
    %v92 = vld [vmem:[#allocation2 + $0x18] sm:$0xff]
    %v93 = vld [vmem:[#allocation2 + $0x20] sm:$0xff]
    %v94 = vld [vmem:[#allocation2 + $0x28] sm:$0xff]
    %v95 = vld [vmem:[#allocation7] sm:$0xff]
    %v96 = vld [vmem:[#allocation7 + $0x8] sm:$0xff]
    %v97 = vld [vmem:[#allocation7 + $0x10] sm:$0xff]
    %v98 = vld [vmem:[#allocation7 + $0x18] sm:$0xff]
    %v99 = vld [vmem:[#allocation7 + $0x20] sm:$0xff]
    %v100 = vld [vmem:[#allocation7 + $0x28] sm:$0xff]
    %v101 = vld [vmem:[#allocation7 + $0x30] sm:$0xff]
    %v102 = vld [vmem:[#allocation7 + $0x38] sm:$0xff]
    %v103 = vld [vmem:[#allocation7 + $0x40] sm:$0xff]
    %v104 = vld [vmem:[#allocation7 + $0x48] sm:$0xff]
    %v105 = vld [vmem:[#allocation7 + $0x50] sm:$0xff]
    %v106 = vld [vmem:[#allocation7 + $0x58] sm:$0xff]
    %v107 = vld [vmem:[#allocation7 + $0x60] sm:$0xff]
    %v108 = vld [vmem:[#allocation7 + $0x68] sm:$0xff]
    %v109 = vld [vmem:[#allocation7 + $0x70] sm:$0xff]
    %v110 = vld [vmem:[#allocation7 + $0x78] sm:$0xff]
    %v111 = vld [vmem:[#allocation7 + $0x80] sm:$0xff]
    %v112 = vld [vmem:[#allocation7 + $0x88] sm:$0xff]
    %v113 = vld [vmem:[#allocation7 + $0x90] sm:$0xff]
    %v114 = vld [vmem:[#allocation7 + $0x98] sm:$0xff]
    %v115 = vld [vmem:[#allocation7 + $0xa0] sm:$0xff]
    %v116 = vld [vmem:[#allocation7 + $0xa8] sm:$0xff]
    %v117 = vld [vmem:[#allocation7 + $0xb0] sm:$0xff]
    %v118 = vld [vmem:[#allocation7 + $0xb8] sm:$0xff]
    %v119 = vld [vmem:[#allocation7 + $0xc0] sm:$0xff]
    %v120 = vld [vmem:[#allocation7 + $0xc8] sm:$0xff]
    %v121 = vld [vmem:[#allocation7 + $0xd0] sm:$0xff]
    %v122 = vld [vmem:[#allocation7 + $0xd8] sm:$0xff]
    %v123 = vld [vmem:[#allocation7 + $0xe0] sm:$0xff]
    %v124 = vld [vmem:[#allocation7 + $0xe8] sm:$0xff]
    %v125 = vld [vmem:[#allocation7 + $0xf0] sm:$0xff]
    %v126 = vld [vmem:[#allocation7 + $0xf8] sm:$0xff]
    %v127 = vld [vmem:[#allocation7 + $0x100] sm:$0xff]
    %v128 = vld [vmem:[#allocation7 + $0x108] sm:$0xff]
    %v129 = vld [vmem:[#allocation7 + $0x110] sm:$0xff]
    %v130 = vld [vmem:[#allocation7 + $0x118] sm:$0xff]
    %v131 = vld [vmem:[#allocation7 + $0x120] sm:$0xff]
    %v132 = vld [vmem:[#allocation7 + $0x128] sm:$0xff]
    %v133 = vld [vmem:[#allocation7 + $0x130] sm:$0xff]
    %v134 = vld [vmem:[#allocation7 + $0x138] sm:$0xff]
    %v135 = vld [vmem:[#allocation7 + $0x140] sm:$0xff]
    %v136 = vld [vmem:[#allocation7 + $0x148] sm:$0xff]
    %v137 = vld [vmem:[#allocation7 + $0x150] sm:$0xff]
    %v138 = vld [vmem:[#allocation7 + $0x158] sm:$0xff]
    %v139 = vld [vmem:[#allocation7 + $0x160] sm:$0xff]
    %v140 = vld [vmem:[#allocation7 + $0x168] sm:$0xff]
    %v141 = vld [vmem:[#allocation7 + $0x170] sm:$0xff]
    %v142 = vld [vmem:[#allocation7 + $0x178] sm:$0xff]
    %v143 = vld [vmem:[#allocation7 + $0x180] sm:$0xff]
    %v144 = vld [vmem:[#allocation7 + $0x188] sm:$0xff]
    %v145 = vld [vmem:[#allocation7 + $0x190] sm:$0xff]
    %v146 = vld [vmem:[#allocation7 + $0x198] sm:$0xff]
    %v147 = vld [vmem:[#allocation7 + $0x1a0] sm:$0xff]
    %v148 = vld [vmem:[#allocation7 + $0x1a8] sm:$0xff]
    %v149 = vld [vmem:[#allocation7 + $0x1b0] sm:$0xff]
    %v150 = vld [vmem:[#allocation7 + $0x1b8] sm:$0xff]
    %v151 = vld [vmem:[#allocation7 + $0x1c0] sm:$0xff]
    %v152 = vld [vmem:[#allocation7 + $0x1c8] sm:$0xff]
    %v153 = vld [vmem:[#allocation7 + $0x1d0] sm:$0xff]
    %v154 = vld [vmem:[#allocation7 + $0x1d8] sm:$0xff]
    %v155 = vld [vmem:[#allocation7 + $0x1e0] sm:$0xff]
    %v156 = vld [vmem:[#allocation7 + $0x1e8] sm:$0xff]
    %v157 = vld [vmem:[#allocation7 + $0x1f0] sm:$0xff]
    %v158 = vld [vmem:[#allocation7 + $0x1f8] sm:$0xff]
    %v159 = vld [vmem:[#allocation7 + $0x200] sm:$0xff]
    %v160 = vld [vmem:[#allocation7 + $0x208] sm:$0xff]
    %v161 = vld [vmem:[#allocation7 + $0x210] sm:$0xff]
    %v162 = vld [vmem:[#allocation7 + $0x218] sm:$0xff]
    %v163 = vld [vmem:[#allocation7 + $0x220] sm:$0xff]
    %v164 = vld [vmem:[#allocation7 + $0x228] sm:$0xff]
    %v165 = vld [vmem:[#allocation7 + $0x230] sm:$0xff]
    %v166 = vld [vmem:[#allocation7 + $0x238] sm:$0xff]
    %v167 = vld [vmem:[#allocation7 + $0x240] sm:$0xff]
    %v168 = vld [vmem:[#allocation7 + $0x248] sm:$0xff]
    %v169 = vld [vmem:[#allocation7 + $0x250] sm:$0xff]
    %v170 = vld [vmem:[#allocation7 + $0x258] sm:$0xff]
    %v171 = vld [vmem:[#allocation7 + $0x260] sm:$0xff]
    %v172 = vld [vmem:[#allocation7 + $0x268] sm:$0xff]
    %v173 = vld [vmem:[#allocation7 + $0x270] sm:$0xff]
    %v174 = vld [vmem:[#allocation7 + $0x278] sm:$0xff]
    %v175 = vld [vmem:[#allocation7 + $0x280] sm:$0xff]
    %v176 = vld [vmem:[#allocation7 + $0x288] sm:$0xff]
    %v177 = vld [vmem:[#allocation7 + $0x290] sm:$0xff]
    %v178 = vld [vmem:[#allocation7 + $0x298] sm:$0xff]
    %v179 = vld [vmem:[#allocation7 + $0x2a0] sm:$0xff]
    %v180 = vld [vmem:[#allocation7 + $0x2a8] sm:$0xff]
    %v181 = vld [vmem:[#allocation7 + $0x2b0] sm:$0xff]
    %v182 = vld [vmem:[#allocation7 + $0x2b8] sm:$0xff]
    %v183 = vld [vmem:[#allocation7 + $0x2c0] sm:$0xff]
    %v184 = vld [vmem:[#allocation7 + $0x2c8] sm:$0xff]
    %v185 = vld [vmem:[#allocation7 + $0x2d0] sm:$0xff]
    %v186 = vld [vmem:[#allocation7 + $0x2d8] sm:$0xff]
    %v187 = vld [vmem:[#allocation7 + $0x2e0] sm:$0xff]
    %v188 = vld [vmem:[#allocation7 + $0x2e8] sm:$0xff]
    %v189 = vld [vmem:[#allocation7 + $0x2f0] sm:$0xff]
    %v190 = vld [vmem:[#allocation7 + $0x2f8] sm:$0xff]
    %v191 = vld [vmem:[#allocation7 + $0x300] sm:$0xff]
    %v192 = vld [vmem:[#allocation7 + $0x308] sm:$0xff]
    %v193 = vld [vmem:[#allocation7 + $0x310] sm:$0xff]
    %v194 = vld [vmem:[#allocation7 + $0x318] sm:$0xff]
    %v195 = vld [vmem:[#allocation7 + $0x320] sm:$0xff]
    %v196 = vld [vmem:[#allocation7 + $0x328] sm:$0xff]
    %v197 = vld [vmem:[#allocation7 + $0x330] sm:$0xff]
    %v198 = vld [vmem:[#allocation7 + $0x338] sm:$0xff]
    %v199 = vld [vmem:[#allocation7 + $0x340] sm:$0xff]
    %v200 = vld [vmem:[#allocation7 + $0x348] sm:$0xff]
    %v201 = vld [vmem:[#allocation7 + $0x350] sm:$0xff]
    %v202 = vld [vmem:[#allocation7 + $0x358] sm:$0xff]
    %v203 = vld [vmem:[#allocation7 + $0x360] sm:$0xff]
    %v204 = vld [vmem:[#allocation7 + $0x368] sm:$0xff]
    %v205 = vld [vmem:[#allocation7 + $0x370] sm:$0xff]
    %v206 = vld [vmem:[#allocation7 + $0x378] sm:$0xff]
    %v207 = vld [vmem:[#allocation7 + $0x380] sm:$0xff]
    %v208 = vld [vmem:[#allocation7 + $0x388] sm:$0xff]
    %v209 = vld [vmem:[#allocation7 + $0x390] sm:$0xff]
    %v210 = vld [vmem:[#allocation7 + $0x398] sm:$0xff]
    %v211 = vld [vmem:[#allocation7 + $0x3a0] sm:$0xff]
    %v212 = vld [vmem:[#allocation7 + $0x3a8] sm:$0xff]
    %v213 = vld [vmem:[#allocation7 + $0x3b0] sm:$0xff]
    %v214 = vld [vmem:[#allocation7 + $0x3b8] sm:$0xff]
    %v215 = vld [vmem:[#allocation7 + $0x3c0] sm:$0xff]
    %v216 = vld [vmem:[#allocation7 + $0x3c8] sm:$0xff]
    %v217 = vld [vmem:[#allocation7 + $0x3d0] sm:$0xff]
    %v218 = vld [vmem:[#allocation7 + $0x3d8] sm:$0xff]
    %v219 = vld [vmem:[#allocation7 + $0x3e0] sm:$0xff]
    %v220 = vld [vmem:[#allocation7 + $0x3e8] sm:$0xff]
    %v221 = vld [vmem:[#allocation7 + $0x3f0] sm:$0xff]
    %v222 = vld [vmem:[#allocation7 + $0x3f8] sm:$0xff]
    %v223 = vld [vmem:[#allocation7 + $0x400] sm:$0xff]
    %v224 = vld [vmem:[#allocation7 + $0x408] sm:$0xff]
    %v225 = vld [vmem:[#allocation7 + $0x410] sm:$0xff]
    %v226 = vld [vmem:[#allocation7 + $0x418] sm:$0xff]
    %v227 = vld [vmem:[#allocation7 + $0x420] sm:$0xff]
    %v228 = vld [vmem:[#allocation7 + $0x428] sm:$0xff]
    %v229 = vld [vmem:[#allocation7 + $0x430] sm:$0xff]
    %v230 = vld [vmem:[#allocation7 + $0x438] sm:$0xff]
    %v231 = vld [vmem:[#allocation7 + $0x440] sm:$0xff]
    %v232 = vld [vmem:[#allocation7 + $0x448] sm:$0xff]
    %v233 = vld [vmem:[#allocation7 + $0x450] sm:$0xff]
    %v234 = vld [vmem:[#allocation7 + $0x458] sm:$0xff]
    %v235 = vld [vmem:[#allocation7 + $0x460] sm:$0xff]
    %v236 = vld [vmem:[#allocation7 + $0x468] sm:$0xff]
    %v237 = vld [vmem:[#allocation7 + $0x470] sm:$0xff]
    %v238 = vld [vmem:[#allocation7 + $0x478] sm:$0xff]
    %v239 = vld [vmem:[#allocation7 + $0x480] sm:$0xff]
    %v240 = vld [vmem:[#allocation7 + $0x488] sm:$0xff]
    %v241 = vld [vmem:[#allocation7 + $0x490] sm:$0xff]
    %v242 = vld [vmem:[#allocation7 + $0x498] sm:$0xff]
    %v243 = vld [vmem:[#allocation7 + $0x4a0] sm:$0xff]
    %v244 = vld [vmem:[#allocation7 + $0x4a8] sm:$0xff]
    %v245 = vld [vmem:[#allocation7 + $0x4b0] sm:$0xff]
    %v246 = vld [vmem:[#allocation7 + $0x4b8] sm:$0xff]
    %v247 = vld [vmem:[#allocation7 + $0x4c0] sm:$0xff]
    %v248 = vld [vmem:[#allocation7 + $0x4c8] sm:$0xff]
    %v249 = vld [vmem:[#allocation7 + $0x4d0] sm:$0xff]
    %v250 = vld [vmem:[#allocation7 + $0x4d8] sm:$0xff]
    %v251 = vld [vmem:[#allocation7 + $0x4e0] sm:$0xff]
    %v252 = vld [vmem:[#allocation7 + $0x4e8] sm:$0xff]
    %v253 = vld [vmem:[#allocation7 + $0x4f0] sm:$0xff]
    %v254 = vld [vmem:[#allocation7 + $0x4f8] sm:$0xff]
    %v255 = vld [vmem:[#allocation7 + $0x500] sm:$0xff]
    %v256 = vld [vmem:[#allocation7 + $0x508] sm:$0xff]
    %v257 = vld [vmem:[#allocation7 + $0x510] sm:$0xff]
    %v258 = vld [vmem:[#allocation7 + $0x518] sm:$0xff]
    %v259 = vld [vmem:[#allocation7 + $0x520] sm:$0xff]
    %v260 = vld [vmem:[#allocation7 + $0x528] sm:$0xff]
    %v261 = vld [vmem:[#allocation7 + $0x530] sm:$0xff]
    %v262 = vld [vmem:[#allocation7 + $0x538] sm:$0xff]
    %v263 = vld [vmem:[#allocation7 + $0x540] sm:$0xff]
    %v264 = vld [vmem:[#allocation7 + $0x548] sm:$0xff]
    %v265 = vld [vmem:[#allocation7 + $0x550] sm:$0xff]
    %v266 = vld [vmem:[#allocation7 + $0x558] sm:$0xff]
    %v267 = vld [vmem:[#allocation7 + $0x560] sm:$0xff]
    %v268 = vld [vmem:[#allocation7 + $0x568] sm:$0xff]
    %v269 = vld [vmem:[#allocation7 + $0x570] sm:$0xff]
    %v270 = vld [vmem:[#allocation7 + $0x578] sm:$0xff]
    %v271 = vld [vmem:[#allocation7 + $0x580] sm:$0xff]
    %v272 = vld [vmem:[#allocation7 + $0x588] sm:$0xff]
    %v273 = vld [vmem:[#allocation7 + $0x590] sm:$0xff]
    %v274 = vld [vmem:[#allocation7 + $0x598] sm:$0xff]
    %v275 = vld [vmem:[#allocation7 + $0x5a0] sm:$0xff]
    %v276 = vld [vmem:[#allocation7 + $0x5a8] sm:$0xff]
    %v277 = vld [vmem:[#allocation7 + $0x5b0] sm:$0xff]
    %v278 = vld [vmem:[#allocation7 + $0x5b8] sm:$0xff]
    %v279 = vld [vmem:[#allocation7 + $0x5c0] sm:$0xff]
    %v280 = vld [vmem:[#allocation7 + $0x5c8] sm:$0xff]
    %v281 = vld [vmem:[#allocation7 + $0x5d0] sm:$0xff]
    %v282 = vld [vmem:[#allocation7 + $0x5d8] sm:$0xff]
    %v283 = vld [vmem:[#allocation7 + $0x5e0] sm:$0xff]
    %v284 = vld [vmem:[#allocation7 + $0x5e8] sm:$0xff]
    %v285 = vld [vmem:[#allocation7 + $0x5f0] sm:$0xff]
    %v286 = vld [vmem:[#allocation7 + $0x5f8] sm:$0xff]
    %v287 = vld [vmem:[#allocation8] sm:$0x3f]
    %v289 = vperm.slane %v88, 0
    %v290 = vperm.slane %v88, 1
    %v294 = vperm.slane %v287, 0
    %v295 = vperm.slane %v287, 1
    %v296 = vperm.slane %v287, 2
    %v297 = vperm.slane %v287, 3
    %v298 = vperm.slane %v287, 4
    %v299 = vperm.slane %v287, 5
    %306 = vmatpush.msra.mxu0 %v185
    %307 = vmatpush.msra.mxu0 %v179
    %308 = vmatpush.msra.mxu0 %v173
    %309 = vmatpush.msra.mxu0 %v167
    %310 = vmatpush.msra.mxu0 %v161
    %311 = vmatpush.msra.mxu0 %v155
    %312 = vmatpush.msra.mxu0 %v149
    %313 = vmatpush.msra.mxu0 %v143
    %314 = vmatpush.msra.mxu0 %v137
    %315 = vmatpush.msra.mxu0 %v131
    %316 = vmatpush.msra.mxu0 %v125
    %317 = vmatpush.msra.mxu0 %v119
    %318 = vmatpush.msra.mxu0 %v113
    %319 = vmatpush.msra.mxu0 %v107
    %320 = vmatpush.msra.mxu0 %v101
    %321 = vmatpush.msra.mxu0 %v95
    %322 = vmatmul.f32.gmra.mxu0 %v289
    %v323 = vpop.f32.mrf.mxu0
    %v324 = vadd.f32 %v294, %v323
    %325 = vdwg.mxu0
    %326 = vmatpush.msra.mxu0 %v281
    %327 = vmatpush.msra.mxu0 %v275
    %328 = vmatpush.msra.mxu0 %v269
    %329 = vmatpush.msra.mxu0 %v263
    %330 = vmatpush.msra.mxu0 %v257
    %331 = vmatpush.msra.mxu0 %v251
    %332 = vmatpush.msra.mxu0 %v245
    %333 = vmatpush.msra.mxu0 %v239
    %334 = vmatpush.msra.mxu0 %v233
    %335 = vmatpush.msra.mxu0 %v227
    %336 = vmatpush.msra.mxu0 %v221
    %337 = vmatpush.msra.mxu0 %v215
    %338 = vmatpush.msra.mxu0 %v209
    %339 = vmatpush.msra.mxu0 %v203
    %340 = vmatpush.msra.mxu0 %v197
    %341 = vmatpush.msra.mxu0 %v191
    %342 = vmatmul.f32.gmra.mxu0 %v290
    %v343 = vpop.f32.mrf.mxu0
    %v344 = vadd.f32 %v324, %v343
    %345 = vdwg.mxu0
    %346 = vmatpush.msra.mxu0 %v186
    %347 = vmatpush.msra.mxu0 %v180
    %348 = vmatpush.msra.mxu0 %v174
    %349 = vmatpush.msra.mxu0 %v168
    %350 = vmatpush.msra.mxu0 %v162
    %351 = vmatpush.msra.mxu0 %v156
    %352 = vmatpush.msra.mxu0 %v150
    %353 = vmatpush.msra.mxu0 %v144
    %354 = vmatpush.msra.mxu0 %v138
    %355 = vmatpush.msra.mxu0 %v132
    %356 = vmatpush.msra.mxu0 %v126
    %357 = vmatpush.msra.mxu0 %v120
    %358 = vmatpush.msra.mxu0 %v114
    %359 = vmatpush.msra.mxu0 %v108
    %360 = vmatpush.msra.mxu0 %v102
    %361 = vmatpush.msra.mxu0 %v96
    %362 = vmatmul.f32.gmra.mxu0 %v289
    %v363 = vpop.f32.mrf.mxu0
    %v364 = vadd.f32 %v295, %v363
    %365 = vdwg.mxu0
    %366 = vmatpush.msra.mxu0 %v282
    %367 = vmatpush.msra.mxu0 %v276
    %368 = vmatpush.msra.mxu0 %v270
    %369 = vmatpush.msra.mxu0 %v264
    %370 = vmatpush.msra.mxu0 %v258
    %371 = vmatpush.msra.mxu0 %v252
    %372 = vmatpush.msra.mxu0 %v246
    %373 = vmatpush.msra.mxu0 %v240
    %374 = vmatpush.msra.mxu0 %v234
    %375 = vmatpush.msra.mxu0 %v228
    %376 = vmatpush.msra.mxu0 %v222
    %377 = vmatpush.msra.mxu0 %v216
    %378 = vmatpush.msra.mxu0 %v210
    %379 = vmatpush.msra.mxu0 %v204
    %380 = vmatpush.msra.mxu0 %v198
    %381 = vmatpush.msra.mxu0 %v192
    %382 = vmatmul.f32.gmra.mxu0 %v290
    %v383 = vpop.f32.mrf.mxu0
    %v384 = vadd.f32 %v364, %v383
    %385 = vdwg.mxu0
    %386 = vmatpush.msra.mxu0 %v187
    %387 = vmatpush.msra.mxu0 %v181
    %388 = vmatpush.msra.mxu0 %v175
    %389 = vmatpush.msra.mxu0 %v169
    %390 = vmatpush.msra.mxu0 %v163
    %391 = vmatpush.msra.mxu0 %v157
    %392 = vmatpush.msra.mxu0 %v151
    %393 = vmatpush.msra.mxu0 %v145
    %394 = vmatpush.msra.mxu0 %v139
    %395 = vmatpush.msra.mxu0 %v133
    %396 = vmatpush.msra.mxu0 %v127
    %397 = vmatpush.msra.mxu0 %v121
    %398 = vmatpush.msra.mxu0 %v115
    %399 = vmatpush.msra.mxu0 %v109
    %400 = vmatpush.msra.mxu0 %v103
    %401 = vmatpush.msra.mxu0 %v97
    %402 = vmatmul.f32.gmra.mxu0 %v289
    %v403 = vpop.f32.mrf.mxu0
    %v404 = vadd.f32 %v296, %v403
    %405 = vdwg.mxu0
    %406 = vmatpush.msra.mxu0 %v283
    %407 = vmatpush.msra.mxu0 %v277
    %408 = vmatpush.msra.mxu0 %v271
    %409 = vmatpush.msra.mxu0 %v265
    %410 = vmatpush.msra.mxu0 %v259
    %411 = vmatpush.msra.mxu0 %v253
    %412 = vmatpush.msra.mxu0 %v247
    %413 = vmatpush.msra.mxu0 %v241
    %414 = vmatpush.msra.mxu0 %v235
    %415 = vmatpush.msra.mxu0 %v229
    %416 = vmatpush.msra.mxu0 %v223
    %417 = vmatpush.msra.mxu0 %v217
    %418 = vmatpush.msra.mxu0 %v211
    %419 = vmatpush.msra.mxu0 %v205
    %420 = vmatpush.msra.mxu0 %v199
    %421 = vmatpush.msra.mxu0 %v193
    %422 = vmatmul.f32.gmra.mxu0 %v290
    %v423 = vpop.f32.mrf.mxu0
    %v424 = vadd.f32 %v404, %v423
    %425 = vdwg.mxu0
    %426 = vmatpush.msra.mxu0 %v188
    %427 = vmatpush.msra.mxu0 %v182
    %428 = vmatpush.msra.mxu0 %v176
    %429 = vmatpush.msra.mxu0 %v170
    %430 = vmatpush.msra.mxu0 %v164
    %431 = vmatpush.msra.mxu0 %v158
    %432 = vmatpush.msra.mxu0 %v152
    %433 = vmatpush.msra.mxu0 %v146
    %434 = vmatpush.msra.mxu0 %v140
    %435 = vmatpush.msra.mxu0 %v134
    %436 = vmatpush.msra.mxu0 %v128
    %437 = vmatpush.msra.mxu0 %v122
    %438 = vmatpush.msra.mxu0 %v116
    %439 = vmatpush.msra.mxu0 %v110
    %440 = vmatpush.msra.mxu0 %v104
    %441 = vmatpush.msra.mxu0 %v98
    %442 = vmatmul.f32.gmra.mxu0 %v289
    %v443 = vpop.f32.mrf.mxu0
    %v444 = vadd.f32 %v297, %v443
    %445 = vdwg.mxu0
    %446 = vmatpush.msra.mxu0 %v284
    %447 = vmatpush.msra.mxu0 %v278
    %448 = vmatpush.msra.mxu0 %v272
    %449 = vmatpush.msra.mxu0 %v266
    %450 = vmatpush.msra.mxu0 %v260
    %451 = vmatpush.msra.mxu0 %v254
    %452 = vmatpush.msra.mxu0 %v248
    %453 = vmatpush.msra.mxu0 %v242
    %454 = vmatpush.msra.mxu0 %v236
    %455 = vmatpush.msra.mxu0 %v230
    %456 = vmatpush.msra.mxu0 %v224
    %457 = vmatpush.msra.mxu0 %v218
    %458 = vmatpush.msra.mxu0 %v212
    %459 = vmatpush.msra.mxu0 %v206
    %460 = vmatpush.msra.mxu0 %v200
    %461 = vmatpush.msra.mxu0 %v194
    %462 = vmatmul.f32.gmra.mxu0 %v290
    %v463 = vpop.f32.mrf.mxu0
    %v464 = vadd.f32 %v444, %v463
    %465 = vdwg.mxu0
    %466 = vmatpush.msra.mxu0 %v189
    %467 = vmatpush.msra.mxu0 %v183
    %468 = vmatpush.msra.mxu0 %v177
    %469 = vmatpush.msra.mxu0 %v171
    %470 = vmatpush.msra.mxu0 %v165
    %471 = vmatpush.msra.mxu0 %v159
    %472 = vmatpush.msra.mxu0 %v153
    %473 = vmatpush.msra.mxu0 %v147
    %474 = vmatpush.msra.mxu0 %v141
    %475 = vmatpush.msra.mxu0 %v135
    %476 = vmatpush.msra.mxu0 %v129
    %477 = vmatpush.msra.mxu0 %v123
    %478 = vmatpush.msra.mxu0 %v117
    %479 = vmatpush.msra.mxu0 %v111
    %480 = vmatpush.msra.mxu0 %v105
    %481 = vmatpush.msra.mxu0 %v99
    %482 = vmatmul.f32.gmra.mxu0 %v289
    %v483 = vpop.f32.mrf.mxu0
    %v484 = vadd.f32 %v298, %v483
    %485 = vdwg.mxu0
    %486 = vmatpush.msra.mxu0 %v285
    %487 = vmatpush.msra.mxu0 %v279
    %488 = vmatpush.msra.mxu0 %v273
    %489 = vmatpush.msra.mxu0 %v267
    %490 = vmatpush.msra.mxu0 %v261
    %491 = vmatpush.msra.mxu0 %v255
    %492 = vmatpush.msra.mxu0 %v249
    %493 = vmatpush.msra.mxu0 %v243
    %494 = vmatpush.msra.mxu0 %v237
    %495 = vmatpush.msra.mxu0 %v231
    %496 = vmatpush.msra.mxu0 %v225
    %497 = vmatpush.msra.mxu0 %v219
    %498 = vmatpush.msra.mxu0 %v213
    %499 = vmatpush.msra.mxu0 %v207
    %500 = vmatpush.msra.mxu0 %v201
    %501 = vmatpush.msra.mxu0 %v195
    %502 = vmatmul.f32.gmra.mxu0 %v290
    %v503 = vpop.f32.mrf.mxu0
    %v504 = vadd.f32 %v484, %v503
    %505 = vdwg.mxu0
    %506 = vmatpush.msra.mxu0 %v190
    %507 = vmatpush.msra.mxu0 %v184
    %508 = vmatpush.msra.mxu0 %v178
    %509 = vmatpush.msra.mxu0 %v172
    %510 = vmatpush.msra.mxu0 %v166
    %511 = vmatpush.msra.mxu0 %v160
    %512 = vmatpush.msra.mxu0 %v154
    %513 = vmatpush.msra.mxu0 %v148
    %514 = vmatpush.msra.mxu0 %v142
    %515 = vmatpush.msra.mxu0 %v136
    %516 = vmatpush.msra.mxu0 %v130
    %517 = vmatpush.msra.mxu0 %v124
    %518 = vmatpush.msra.mxu0 %v118
    %519 = vmatpush.msra.mxu0 %v112
    %520 = vmatpush.msra.mxu0 %v106
    %521 = vmatpush.msra.mxu0 %v100
    %522 = vmatmul.f32.gmra.mxu0 %v289
    %v523 = vpop.f32.mrf.mxu0
    %v524 = vadd.f32 %v299, %v523
    %525 = vdwg.mxu0
    %526 = vmatpush.msra.mxu0 %v286
    %527 = vmatpush.msra.mxu0 %v280
    %528 = vmatpush.msra.mxu0 %v274
    %529 = vmatpush.msra.mxu0 %v268
    %530 = vmatpush.msra.mxu0 %v262
    %531 = vmatpush.msra.mxu0 %v256
    %532 = vmatpush.msra.mxu0 %v250
    %533 = vmatpush.msra.mxu0 %v244
    %534 = vmatpush.msra.mxu0 %v238
    %535 = vmatpush.msra.mxu0 %v232
    %536 = vmatpush.msra.mxu0 %v226
    %537 = vmatpush.msra.mxu0 %v220
    %538 = vmatpush.msra.mxu0 %v214
    %539 = vmatpush.msra.mxu0 %v208
    %540 = vmatpush.msra.mxu0 %v202
    %541 = vmatpush.msra.mxu0 %v196
    %542 = vmatmul.f32.gmra.mxu0 %v290
    %v543 = vpop.f32.mrf.mxu0
    %v544 = vadd.f32 %v524, %v543
    %545 = vdwg.mxu0
    %v546 = vadd.f32 %v89, %v344
    %v547 = vadd.f32 %v90, %v384
    %v548 = vxor.u32 %v546, 2147483648
    %v549 = vxor.u32 %v547, 2147483648
    %v550 = vmul.f32 %v548, 1.442695
    %v551 = vpow.pop %v550
    %v552 = vmul.f32 %v549, 1.442695
    %v553 = vpow.pop %v552
    %v554 = vadd.f32 %v551, 1.0
    %v555 = vadd.f32 %v553, 1.0
    %v556 = vrcp.pop %v554
    %v557 = vmul.f32 %v554, %v556
    %v558 = vsub.f32 1.0, %v557
    %v559 = vmul.f32 %v556, %v558
    %v560 = vadd.f32 %v556, %v559
    %vm561 = vweird.f32 %v554
    %vm562 = vweird.f32 %v556
    %vm563 = vmor %vm561, %vm562
    %v564 = vsel %vm563, %v556, %v560
    %v565 = vand.u32 2147483647, %v554
    %vm566 = vcmp.eq.f32.partialorder %v565, 8.507059e+37
    %v567 = vand.u32 %v554, 2147483648
    %v568 = vor.u32 1.1754944e-38, %v567
    %v569 = vsel %vm566, %v568, %v564
    %v570 = vmul.f32 1.0, %v569
    %v571 = vrcp.pop %v555
    %v572 = vmul.f32 %v555, %v571
    %v573 = vsub.f32 1.0, %v572
    %v574 = vmul.f32 %v571, %v573
    %v575 = vadd.f32 %v571, %v574
    %vm576 = vweird.f32 %v555
    %vm577 = vweird.f32 %v571
    %vm578 = vmor %vm576, %vm577
    %v579 = vsel %vm578, %v571, %v575
    %v580 = vand.u32 2147483647, %v555
    %vm581 = vcmp.eq.f32.partialorder %v580, 8.507059e+37
    %v582 = vand.u32 %v555, 2147483648
    %v583 = vor.u32 1.1754944e-38, %v582
    %v584 = vsel %vm581, %v583, %v579
    %v585 = vmul.f32 1.0, %v584
    %v586 = vadd.f32 %v91, %v424
    %v587 = vadd.f32 %v92, %v464
    %v588 = vxor.u32 %v586, 2147483648
    %v589 = vxor.u32 %v587, 2147483648
    %v590 = vmul.f32 %v588, 1.442695
    %v591 = vpow.pop %v590
    %v592 = vmul.f32 %v589, 1.442695
    %v593 = vpow.pop %v592
    %v594 = vadd.f32 %v591, 1.0
    %v595 = vadd.f32 %v593, 1.0
    %v596 = vrcp.pop %v594
    %v597 = vmul.f32 %v594, %v596
    %v598 = vsub.f32 1.0, %v597
    %v599 = vmul.f32 %v596, %v598
    %v600 = vadd.f32 %v596, %v599
    %vm601 = vweird.f32 %v594
    %vm602 = vweird.f32 %v596
    %vm603 = vmor %vm601, %vm602
    %v604 = vsel %vm603, %v596, %v600
    %v605 = vand.u32 2147483647, %v594
    %vm606 = vcmp.eq.f32.partialorder %v605, 8.507059e+37
    %v607 = vand.u32 %v594, 2147483648
    %v608 = vor.u32 1.1754944e-38, %v607
    %v609 = vsel %vm606, %v608, %v604
    %v610 = vmul.f32 1.0, %v609
    %v611 = vrcp.pop %v595
    %v612 = vmul.f32 %v595, %v611
    %v613 = vsub.f32 1.0, %v612
    %v614 = vmul.f32 %v611, %v613
    %v615 = vadd.f32 %v611, %v614
    %vm616 = vweird.f32 %v595
    %vm617 = vweird.f32 %v611
    %vm618 = vmor %vm616, %vm617
    %v619 = vsel %vm618, %v611, %v615
    %v620 = vand.u32 2147483647, %v595
    %vm621 = vcmp.eq.f32.partialorder %v620, 8.507059e+37
    %v622 = vand.u32 %v595, 2147483648
    %v623 = vor.u32 1.1754944e-38, %v622
    %v624 = vsel %vm621, %v623, %v619
    %v625 = vmul.f32 1.0, %v624
    %v626 = vmul.f32 %v570, %v504
    %v627 = vmul.f32 %v585, %v544
    %v628 = vadd.f32 %v93, %v626
    %v629 = vadd.f32 %v94, %v627
    %v630 = vtanh.pop %v628
    %v631 = vtanh.pop %v629
    %v632 = vsub.f32 1.0, %v610
    %v633 = vsub.f32 1.0, %v625
    %v634 = vmul.f32 %v632, %v630
    %v635 = vmul.f32 %v633, %v631
    %v636 = vmul.f32 %v610, %v289
    %v637 = vmul.f32 %v625, %v290
    %v638 = vadd.f32 %v634, %v636
    %v639 = vadd.f32 %v635, %v637
    %640 = vmatpush.msra.mxu0 %v185
    %641 = vmatpush.msra.mxu0 %v179
    %642 = vmatpush.msra.mxu0 %v173
    %643 = vmatpush.msra.mxu0 %v167
    %644 = vmatpush.msra.mxu0 %v161
    %645 = vmatpush.msra.mxu0 %v155
    %646 = vmatpush.msra.mxu0 %v149
    %647 = vmatpush.msra.mxu0 %v143
    %648 = vmatpush.msra.mxu0 %v137
    %649 = vmatpush.msra.mxu0 %v131
    %650 = vmatpush.msra.mxu0 %v125
    %651 = vmatpush.msra.mxu0 %v119
    %652 = vmatpush.msra.mxu0 %v113
    %653 = vmatpush.msra.mxu0 %v107
    %654 = vmatpush.msra.mxu0 %v101
    %655 = vmatpush.msra.mxu0 %v95
    %656 = vmatmul.f32.gmra.mxu0 %v638
    %v657 = vpop.f32.mrf.mxu0
    %v658 = vadd.f32 %v294, %v657
    %659 = vdwg.mxu0
    %660 = vmatpush.msra.mxu0 %v281
    %661 = vmatpush.msra.mxu0 %v275
    %662 = vmatpush.msra.mxu0 %v269
    %663 = vmatpush.msra.mxu0 %v263
    %664 = vmatpush.msra.mxu0 %v257
    %665 = vmatpush.msra.mxu0 %v251
    %666 = vmatpush.msra.mxu0 %v245
    %667 = vmatpush.msra.mxu0 %v239
    %668 = vmatpush.msra.mxu0 %v233
    %669 = vmatpush.msra.mxu0 %v227
    %670 = vmatpush.msra.mxu0 %v221
    %671 = vmatpush.msra.mxu0 %v215
    %672 = vmatpush.msra.mxu0 %v209
    %673 = vmatpush.msra.mxu0 %v203
    %674 = vmatpush.msra.mxu0 %v197
    %675 = vmatpush.msra.mxu0 %v191
    %676 = vmatmul.f32.gmra.mxu0 %v639
    %v677 = vpop.f32.mrf.mxu0
    %v678 = vadd.f32 %v658, %v677
    %679 = vdwg.mxu0
    %680 = vmatpush.msra.mxu0 %v186
    %681 = vmatpush.msra.mxu0 %v180
    %682 = vmatpush.msra.mxu0 %v174
    %683 = vmatpush.msra.mxu0 %v168
    %684 = vmatpush.msra.mxu0 %v162
    %685 = vmatpush.msra.mxu0 %v156
    %686 = vmatpush.msra.mxu0 %v150
    %687 = vmatpush.msra.mxu0 %v144
    %688 = vmatpush.msra.mxu0 %v138
    %689 = vmatpush.msra.mxu0 %v132
    %690 = vmatpush.msra.mxu0 %v126
    %691 = vmatpush.msra.mxu0 %v120
    %692 = vmatpush.msra.mxu0 %v114
    %693 = vmatpush.msra.mxu0 %v108
    %694 = vmatpush.msra.mxu0 %v102
    %695 = vmatpush.msra.mxu0 %v96
    %696 = vmatmul.f32.gmra.mxu0 %v638
    %v697 = vpop.f32.mrf.mxu0
    %v698 = vadd.f32 %v295, %v697
    %699 = vdwg.mxu0
    %700 = vmatpush.msra.mxu0 %v282
    %701 = vmatpush.msra.mxu0 %v276
    %702 = vmatpush.msra.mxu0 %v270
    %703 = vmatpush.msra.mxu0 %v264
    %704 = vmatpush.msra.mxu0 %v258
    %705 = vmatpush.msra.mxu0 %v252
    %706 = vmatpush.msra.mxu0 %v246
    %707 = vmatpush.msra.mxu0 %v240
    %708 = vmatpush.msra.mxu0 %v234
    %709 = vmatpush.msra.mxu0 %v228
    %710 = vmatpush.msra.mxu0 %v222
    %711 = vmatpush.msra.mxu0 %v216
    %712 = vmatpush.msra.mxu0 %v210
    %713 = vmatpush.msra.mxu0 %v204
    %714 = vmatpush.msra.mxu0 %v198
    %715 = vmatpush.msra.mxu0 %v192
    %716 = vmatmul.f32.gmra.mxu0 %v639
    %v717 = vpop.f32.mrf.mxu0
    %v718 = vadd.f32 %v698, %v717
    %719 = vdwg.mxu0
    %720 = vmatpush.msra.mxu0 %v187
    %721 = vmatpush.msra.mxu0 %v181
    %722 = vmatpush.msra.mxu0 %v175
    %723 = vmatpush.msra.mxu0 %v169
    %724 = vmatpush.msra.mxu0 %v163
    %725 = vmatpush.msra.mxu0 %v157
    %726 = vmatpush.msra.mxu0 %v151
    %727 = vmatpush.msra.mxu0 %v145
    %728 = vmatpush.msra.mxu0 %v139
    %729 = vmatpush.msra.mxu0 %v133
    %730 = vmatpush.msra.mxu0 %v127
    %731 = vmatpush.msra.mxu0 %v121
    %732 = vmatpush.msra.mxu0 %v115
    %733 = vmatpush.msra.mxu0 %v109
    %734 = vmatpush.msra.mxu0 %v103
    %735 = vmatpush.msra.mxu0 %v97
    %736 = vmatmul.f32.gmra.mxu0 %v638
    %v737 = vpop.f32.mrf.mxu0
    %v738 = vadd.f32 %v296, %v737
    %739 = vdwg.mxu0
    %740 = vmatpush.msra.mxu0 %v283
    %741 = vmatpush.msra.mxu0 %v277
    %742 = vmatpush.msra.mxu0 %v271
    %743 = vmatpush.msra.mxu0 %v265
    %744 = vmatpush.msra.mxu0 %v259
    %745 = vmatpush.msra.mxu0 %v253
    %746 = vmatpush.msra.mxu0 %v247
    %747 = vmatpush.msra.mxu0 %v241
    %748 = vmatpush.msra.mxu0 %v235
    %749 = vmatpush.msra.mxu0 %v229
    %750 = vmatpush.msra.mxu0 %v223
    %751 = vmatpush.msra.mxu0 %v217
    %752 = vmatpush.msra.mxu0 %v211
    %753 = vmatpush.msra.mxu0 %v205
    %754 = vmatpush.msra.mxu0 %v199
    %755 = vmatpush.msra.mxu0 %v193
    %756 = vmatmul.f32.gmra.mxu0 %v639
    %v757 = vpop.f32.mrf.mxu0
    %v758 = vadd.f32 %v738, %v757
    %759 = vdwg.mxu0
    %760 = vmatpush.msra.mxu0 %v188
    %761 = vmatpush.msra.mxu0 %v182
    %762 = vmatpush.msra.mxu0 %v176
    %763 = vmatpush.msra.mxu0 %v170
    %764 = vmatpush.msra.mxu0 %v164
    %765 = vmatpush.msra.mxu0 %v158
    %766 = vmatpush.msra.mxu0 %v152
    %767 = vmatpush.msra.mxu0 %v146
    %768 = vmatpush.msra.mxu0 %v140
    %769 = vmatpush.msra.mxu0 %v134
    %770 = vmatpush.msra.mxu0 %v128
    %771 = vmatpush.msra.mxu0 %v122
    %772 = vmatpush.msra.mxu0 %v116
    %773 = vmatpush.msra.mxu0 %v110
    %774 = vmatpush.msra.mxu0 %v104
    %775 = vmatpush.msra.mxu0 %v98
    %776 = vmatmul.f32.gmra.mxu0 %v638
    %v777 = vpop.f32.mrf.mxu0
    %v778 = vadd.f32 %v297, %v777
    %779 = vdwg.mxu0
    %780 = vmatpush.msra.mxu0 %v284
    %781 = vmatpush.msra.mxu0 %v278
    %782 = vmatpush.msra.mxu0 %v272
    %783 = vmatpush.msra.mxu0 %v266
    %784 = vmatpush.msra.mxu0 %v260
    %785 = vmatpush.msra.mxu0 %v254
    %786 = vmatpush.msra.mxu0 %v248
    %787 = vmatpush.msra.mxu0 %v242
    %788 = vmatpush.msra.mxu0 %v236
    %789 = vmatpush.msra.mxu0 %v230
    %790 = vmatpush.msra.mxu0 %v224
    %791 = vmatpush.msra.mxu0 %v218
    %792 = vmatpush.msra.mxu0 %v212
    %793 = vmatpush.msra.mxu0 %v206
    %794 = vmatpush.msra.mxu0 %v200
    %795 = vmatpush.msra.mxu0 %v194
    %796 = vmatmul.f32.gmra.mxu0 %v639
    %v797 = vpop.f32.mrf.mxu0
    %v798 = vadd.f32 %v778, %v797
    %799 = vdwg.mxu0
    %800 = vmatpush.msra.mxu0 %v189
    %801 = vmatpush.msra.mxu0 %v183
    %802 = vmatpush.msra.mxu0 %v177
    %803 = vmatpush.msra.mxu0 %v171
    %804 = vmatpush.msra.mxu0 %v165
    %805 = vmatpush.msra.mxu0 %v159
    %806 = vmatpush.msra.mxu0 %v153
    %807 = vmatpush.msra.mxu0 %v147
    %808 = vmatpush.msra.mxu0 %v141
    %809 = vmatpush.msra.mxu0 %v135
    %810 = vmatpush.msra.mxu0 %v129
    %811 = vmatpush.msra.mxu0 %v123
    %812 = vmatpush.msra.mxu0 %v117
    %813 = vmatpush.msra.mxu0 %v111
    %814 = vmatpush.msra.mxu0 %v105
    %815 = vmatpush.msra.mxu0 %v99
    %816 = vmatmul.f32.gmra.mxu0 %v638
    %v817 = vpop.f32.mrf.mxu0
    %v818 = vadd.f32 %v298, %v817
    %819 = vdwg.mxu0
    %820 = vmatpush.msra.mxu0 %v285
    %821 = vmatpush.msra.mxu0 %v279
    %822 = vmatpush.msra.mxu0 %v273
    %823 = vmatpush.msra.mxu0 %v267
    %824 = vmatpush.msra.mxu0 %v261
    %825 = vmatpush.msra.mxu0 %v255
    %826 = vmatpush.msra.mxu0 %v249
    %827 = vmatpush.msra.mxu0 %v243
    %828 = vmatpush.msra.mxu0 %v237
    %829 = vmatpush.msra.mxu0 %v231
    %830 = vmatpush.msra.mxu0 %v225
    %831 = vmatpush.msra.mxu0 %v219
    %832 = vmatpush.msra.mxu0 %v213
    %833 = vmatpush.msra.mxu0 %v207
    %834 = vmatpush.msra.mxu0 %v201
    %835 = vmatpush.msra.mxu0 %v195
    %836 = vmatmul.f32.gmra.mxu0 %v639
    %v837 = vpop.f32.mrf.mxu0
    %v838 = vadd.f32 %v818, %v837
    %839 = vdwg.mxu0
    %840 = vmatpush.msra.mxu0 %v190
    %841 = vmatpush.msra.mxu0 %v184
    %842 = vmatpush.msra.mxu0 %v178
    %843 = vmatpush.msra.mxu0 %v172
    %844 = vmatpush.msra.mxu0 %v166
    %845 = vmatpush.msra.mxu0 %v160
    %846 = vmatpush.msra.mxu0 %v154
    %847 = vmatpush.msra.mxu0 %v148
    %848 = vmatpush.msra.mxu0 %v142
    %849 = vmatpush.msra.mxu0 %v136
    %850 = vmatpush.msra.mxu0 %v130
    %851 = vmatpush.msra.mxu0 %v124
    %852 = vmatpush.msra.mxu0 %v118
    %853 = vmatpush.msra.mxu0 %v112
    %854 = vmatpush.msra.mxu0 %v106
    %855 = vmatpush.msra.mxu0 %v100
    %856 = vmatmul.f32.gmra.mxu0 %v638
    %v857 = vpop.f32.mrf.mxu0
    %v858 = vadd.f32 %v299, %v857
    %859 = vdwg.mxu0
    %860 = vmatpush.msra.mxu0 %v286
    %861 = vmatpush.msra.mxu0 %v280
    %862 = vmatpush.msra.mxu0 %v274
    %863 = vmatpush.msra.mxu0 %v268
    %864 = vmatpush.msra.mxu0 %v262
    %865 = vmatpush.msra.mxu0 %v256
    %866 = vmatpush.msra.mxu0 %v250
    %867 = vmatpush.msra.mxu0 %v244
    %868 = vmatpush.msra.mxu0 %v238
    %869 = vmatpush.msra.mxu0 %v232
    %870 = vmatpush.msra.mxu0 %v226
    %871 = vmatpush.msra.mxu0 %v220
    %872 = vmatpush.msra.mxu0 %v214
    %873 = vmatpush.msra.mxu0 %v208
    %874 = vmatpush.msra.mxu0 %v202
    %875 = vmatpush.msra.mxu0 %v196
    %876 = vmatmul.f32.gmra.mxu0 %v639
    %v877 = vpop.f32.mrf.mxu0
    %v878 = vadd.f32 %v858, %v877
    %879 = vdwg.mxu0
    %v882 = vrot.slane %v678, 7
    %v883 = vrot.slane %v718, 7
    %v886 = vadd.f32 %v89, %v882
    %v887 = vadd.f32 %v90, %v883
    %v888 = vxor.u32 %v886, 2147483648
    %v889 = vxor.u32 %v887, 2147483648
    %v890 = vmul.f32 %v888, 1.442695
    %v891 = vpow.pop %v890
    %v892 = vmul.f32 %v889, 1.442695
    %v893 = vpow.pop %v892
    %v894 = vadd.f32 %v891, 1.0
    %v895 = vadd.f32 %v893, 1.0
    %v896 = vrcp.pop %v894
    %v897 = vmul.f32 %v894, %v896
    %v898 = vsub.f32 1.0, %v897
    %v899 = vmul.f32 %v896, %v898
    %v900 = vadd.f32 %v896, %v899
    %vm901 = vweird.f32 %v894
    %vm902 = vweird.f32 %v896
    %vm903 = vmor %vm901, %vm902
    %v904 = vsel %vm903, %v896, %v900
    %v905 = vand.u32 2147483647, %v894
    %vm906 = vcmp.eq.f32.partialorder %v905, 8.507059e+37
    %v907 = vand.u32 %v894, 2147483648
    %v908 = vor.u32 1.1754944e-38, %v907
    %v909 = vsel %vm906, %v908, %v904
    %v910 = vmul.f32 1.0, %v909
    %v911 = vrcp.pop %v895
    %v912 = vmul.f32 %v895, %v911
    %v913 = vsub.f32 1.0, %v912
    %v914 = vmul.f32 %v911, %v913
    %v915 = vadd.f32 %v911, %v914
    %vm916 = vweird.f32 %v895
    %vm917 = vweird.f32 %v911
    %vm918 = vmor %vm916, %vm917
    %v919 = vsel %vm918, %v911, %v915
    %v920 = vand.u32 2147483647, %v895
    %vm921 = vcmp.eq.f32.partialorder %v920, 8.507059e+37
    %v922 = vand.u32 %v895, 2147483648
    %v923 = vor.u32 1.1754944e-38, %v922
    %v924 = vsel %vm921, %v923, %v919
    %v925 = vmul.f32 1.0, %v924
    %v928 = vrot.slane %v758, 7
    %v929 = vrot.slane %v798, 7
    %v932 = vadd.f32 %v91, %v928
    %v933 = vadd.f32 %v92, %v929
    %v934 = vxor.u32 %v932, 2147483648
    %v935 = vxor.u32 %v933, 2147483648
    %v936 = vmul.f32 %v934, 1.442695
    %v937 = vpow.pop %v936
    %v938 = vmul.f32 %v935, 1.442695
    %v939 = vpow.pop %v938
    %v940 = vadd.f32 %v937, 1.0
    %v941 = vadd.f32 %v939, 1.0
    %v942 = vrcp.pop %v940
    %v943 = vmul.f32 %v940, %v942
    %v944 = vsub.f32 1.0, %v943
    %v945 = vmul.f32 %v942, %v944
    %v946 = vadd.f32 %v942, %v945
    %vm947 = vweird.f32 %v940
    %vm948 = vweird.f32 %v942
    %vm949 = vmor %vm947, %vm948
    %v950 = vsel %vm949, %v942, %v946
    %v951 = vand.u32 2147483647, %v940
    %vm952 = vcmp.eq.f32.partialorder %v951, 8.507059e+37
    %v953 = vand.u32 %v940, 2147483648
    %v954 = vor.u32 1.1754944e-38, %v953
    %v955 = vsel %vm952, %v954, %v950
    %v956 = vmul.f32 1.0, %v955
    %v957 = vrcp.pop %v941
    %v958 = vmul.f32 %v941, %v957
    %v959 = vsub.f32 1.0, %v958
    %v960 = vmul.f32 %v957, %v959
    %v961 = vadd.f32 %v957, %v960
    %vm962 = vweird.f32 %v941
    %vm963 = vweird.f32 %v957
    %vm964 = vmor %vm962, %vm963
    %v965 = vsel %vm964, %v957, %v961
    %v966 = vand.u32 2147483647, %v941
    %vm967 = vcmp.eq.f32.partialorder %v966, 8.507059e+37
    %v968 = vand.u32 %v941, 2147483648
    %v969 = vor.u32 1.1754944e-38, %v968
    %v970 = vsel %vm967, %v969, %v965
    %v971 = vmul.f32 1.0, %v970
    %v974 = vrot.slane %v838, 7
    %v975 = vrot.slane %v878, 7
    %v978 = vmul.f32 %v910, %v974
    %v979 = vmul.f32 %v925, %v975
    %v980 = vadd.f32 %v93, %v978
    %v981 = vadd.f32 %v94, %v979
    %v982 = vtanh.pop %v980
    %v983 = vtanh.pop %v981
    %v984 = vsub.f32 1.0, %v956
    %v985 = vsub.f32 1.0, %v971
    %v986 = vmul.f32 %v984, %v982
    %v987 = vmul.f32 %v985, %v983
    %v990 = vrot.slane %v638, 7
    %v991 = vrot.slane %v639, 7
    %v994 = vmul.f32 %v956, %v990
    %v995 = vmul.f32 %v971, %v991
    %v996 = vadd.f32 %v986, %v994
    %v997 = vadd.f32 %v987, %v995
    %v1000 = vrot.slane %v996, 1
    %v1001 = vrot.slane %v997, 1
    %1004 = vmatpush.msra.mxu0 %v185
    %1005 = vmatpush.msra.mxu0 %v179
    %1006 = vmatpush.msra.mxu0 %v173
    %1007 = vmatpush.msra.mxu0 %v167
    %1008 = vmatpush.msra.mxu0 %v161
    %1009 = vmatpush.msra.mxu0 %v155
    %1010 = vmatpush.msra.mxu0 %v149
    %1011 = vmatpush.msra.mxu0 %v143
    %1012 = vmatpush.msra.mxu0 %v137
    %1013 = vmatpush.msra.mxu0 %v131
    %1014 = vmatpush.msra.mxu0 %v125
    %1015 = vmatpush.msra.mxu0 %v119
    %1016 = vmatpush.msra.mxu0 %v113
    %1017 = vmatpush.msra.mxu0 %v107
    %1018 = vmatpush.msra.mxu0 %v101
    %1019 = vmatpush.msra.mxu0 %v95
    %1020 = vmatmul.f32.gmra.mxu0 %v1000
    %v1021 = vpop.f32.mrf.mxu0
    %v1022 = vadd.f32 %v294, %v1021
    %1023 = vdwg.mxu0
    %1024 = vmatpush.msra.mxu0 %v281
    %1025 = vmatpush.msra.mxu0 %v275
    %1026 = vmatpush.msra.mxu0 %v269
    %1027 = vmatpush.msra.mxu0 %v263
    %1028 = vmatpush.msra.mxu0 %v257
    %1029 = vmatpush.msra.mxu0 %v251
    %1030 = vmatpush.msra.mxu0 %v245
    %1031 = vmatpush.msra.mxu0 %v239
    %1032 = vmatpush.msra.mxu0 %v233
    %1033 = vmatpush.msra.mxu0 %v227
    %1034 = vmatpush.msra.mxu0 %v221
    %1035 = vmatpush.msra.mxu0 %v215
    %1036 = vmatpush.msra.mxu0 %v209
    %1037 = vmatpush.msra.mxu0 %v203
    %1038 = vmatpush.msra.mxu0 %v197
    %1039 = vmatpush.msra.mxu0 %v191
    %1040 = vmatmul.f32.gmra.mxu0 %v1001
    %v1041 = vpop.f32.mrf.mxu0
    %v1042 = vadd.f32 %v1022, %v1041
    %1043 = vdwg.mxu0
    %1044 = vmatpush.msra.mxu0 %v186
    %1045 = vmatpush.msra.mxu0 %v180
    %1046 = vmatpush.msra.mxu0 %v174
    %1047 = vmatpush.msra.mxu0 %v168
    %1048 = vmatpush.msra.mxu0 %v162
    %1049 = vmatpush.msra.mxu0 %v156
    %1050 = vmatpush.msra.mxu0 %v150
    %1051 = vmatpush.msra.mxu0 %v144
    %1052 = vmatpush.msra.mxu0 %v138
    %1053 = vmatpush.msra.mxu0 %v132
    %1054 = vmatpush.msra.mxu0 %v126
    %1055 = vmatpush.msra.mxu0 %v120
    %1056 = vmatpush.msra.mxu0 %v114
    %1057 = vmatpush.msra.mxu0 %v108
    %1058 = vmatpush.msra.mxu0 %v102
    %1059 = vmatpush.msra.mxu0 %v96
    %1060 = vmatmul.f32.gmra.mxu0 %v1000
    %v1061 = vpop.f32.mrf.mxu0
    %v1062 = vadd.f32 %v295, %v1061
    %1063 = vdwg.mxu0
    %1064 = vmatpush.msra.mxu0 %v282
    %1065 = vmatpush.msra.mxu0 %v276
    %1066 = vmatpush.msra.mxu0 %v270
    %1067 = vmatpush.msra.mxu0 %v264
    %1068 = vmatpush.msra.mxu0 %v258
    %1069 = vmatpush.msra.mxu0 %v252
    %1070 = vmatpush.msra.mxu0 %v246
    %1071 = vmatpush.msra.mxu0 %v240
    %1072 = vmatpush.msra.mxu0 %v234
    %1073 = vmatpush.msra.mxu0 %v228
    %1074 = vmatpush.msra.mxu0 %v222
    %1075 = vmatpush.msra.mxu0 %v216
    %1076 = vmatpush.msra.mxu0 %v210
    %1077 = vmatpush.msra.mxu0 %v204
    %1078 = vmatpush.msra.mxu0 %v198
    %1079 = vmatpush.msra.mxu0 %v192
    %1080 = vmatmul.f32.gmra.mxu0 %v1001
    %v1081 = vpop.f32.mrf.mxu0
    %v1082 = vadd.f32 %v1062, %v1081
    %1083 = vdwg.mxu0
    %1084 = vmatpush.msra.mxu0 %v187
    %1085 = vmatpush.msra.mxu0 %v181
    %1086 = vmatpush.msra.mxu0 %v175
    %1087 = vmatpush.msra.mxu0 %v169
    %1088 = vmatpush.msra.mxu0 %v163
    %1089 = vmatpush.msra.mxu0 %v157
    %1090 = vmatpush.msra.mxu0 %v151
    %1091 = vmatpush.msra.mxu0 %v145
    %1092 = vmatpush.msra.mxu0 %v139
    %1093 = vmatpush.msra.mxu0 %v133
    %1094 = vmatpush.msra.mxu0 %v127
    %1095 = vmatpush.msra.mxu0 %v121
    %1096 = vmatpush.msra.mxu0 %v115
    %1097 = vmatpush.msra.mxu0 %v109
    %1098 = vmatpush.msra.mxu0 %v103
    %1099 = vmatpush.msra.mxu0 %v97
    %1100 = vmatmul.f32.gmra.mxu0 %v1000
    %v1101 = vpop.f32.mrf.mxu0
    %v1102 = vadd.f32 %v296, %v1101
    %1103 = vdwg.mxu0
    %1104 = vmatpush.msra.mxu0 %v283
    %1105 = vmatpush.msra.mxu0 %v277
    %1106 = vmatpush.msra.mxu0 %v271
    %1107 = vmatpush.msra.mxu0 %v265
    %1108 = vmatpush.msra.mxu0 %v259
    %1109 = vmatpush.msra.mxu0 %v253
    %1110 = vmatpush.msra.mxu0 %v247
    %1111 = vmatpush.msra.mxu0 %v241
    %1112 = vmatpush.msra.mxu0 %v235
    %1113 = vmatpush.msra.mxu0 %v229
    %1114 = vmatpush.msra.mxu0 %v223
    %1115 = vmatpush.msra.mxu0 %v217
    %1116 = vmatpush.msra.mxu0 %v211
    %1117 = vmatpush.msra.mxu0 %v205
    %1118 = vmatpush.msra.mxu0 %v199
    %1119 = vmatpush.msra.mxu0 %v193
    %1120 = vmatmul.f32.gmra.mxu0 %v1001
    %v1121 = vpop.f32.mrf.mxu0
    %v1122 = vadd.f32 %v1102, %v1121
    %1123 = vdwg.mxu0
    %1124 = vmatpush.msra.mxu0 %v188
    %1125 = vmatpush.msra.mxu0 %v182
    %1126 = vmatpush.msra.mxu0 %v176
    %1127 = vmatpush.msra.mxu0 %v170
    %1128 = vmatpush.msra.mxu0 %v164
    %1129 = vmatpush.msra.mxu0 %v158
    %1130 = vmatpush.msra.mxu0 %v152
    %1131 = vmatpush.msra.mxu0 %v146
    %1132 = vmatpush.msra.mxu0 %v140
    %1133 = vmatpush.msra.mxu0 %v134
    %1134 = vmatpush.msra.mxu0 %v128
    %1135 = vmatpush.msra.mxu0 %v122
    %1136 = vmatpush.msra.mxu0 %v116
    %1137 = vmatpush.msra.mxu0 %v110
    %1138 = vmatpush.msra.mxu0 %v104
    %1139 = vmatpush.msra.mxu0 %v98
    %1140 = vmatmul.f32.gmra.mxu0 %v1000
    %v1141 = vpop.f32.mrf.mxu0
    %v1142 = vadd.f32 %v297, %v1141
    %1143 = vdwg.mxu0
    %1144 = vmatpush.msra.mxu0 %v284
    %1145 = vmatpush.msra.mxu0 %v278
    %1146 = vmatpush.msra.mxu0 %v272
    %1147 = vmatpush.msra.mxu0 %v266
    %1148 = vmatpush.msra.mxu0 %v260
    %1149 = vmatpush.msra.mxu0 %v254
    %1150 = vmatpush.msra.mxu0 %v248
    %1151 = vmatpush.msra.mxu0 %v242
    %1152 = vmatpush.msra.mxu0 %v236
    %1153 = vmatpush.msra.mxu0 %v230
    %1154 = vmatpush.msra.mxu0 %v224
    %1155 = vmatpush.msra.mxu0 %v218
    %1156 = vmatpush.msra.mxu0 %v212
    %1157 = vmatpush.msra.mxu0 %v206
    %1158 = vmatpush.msra.mxu0 %v200
    %1159 = vmatpush.msra.mxu0 %v194
    %1160 = vmatmul.f32.gmra.mxu0 %v1001
    %v1161 = vpop.f32.mrf.mxu0
    %v1162 = vadd.f32 %v1142, %v1161
    %1163 = vdwg.mxu0
    %1164 = vmatpush.msra.mxu0 %v189
    %1165 = vmatpush.msra.mxu0 %v183
    %1166 = vmatpush.msra.mxu0 %v177
    %1167 = vmatpush.msra.mxu0 %v171
    %1168 = vmatpush.msra.mxu0 %v165
    %1169 = vmatpush.msra.mxu0 %v159
    %1170 = vmatpush.msra.mxu0 %v153
    %1171 = vmatpush.msra.mxu0 %v147
    %1172 = vmatpush.msra.mxu0 %v141
    %1173 = vmatpush.msra.mxu0 %v135
    %1174 = vmatpush.msra.mxu0 %v129
    %1175 = vmatpush.msra.mxu0 %v123
    %1176 = vmatpush.msra.mxu0 %v117
    %1177 = vmatpush.msra.mxu0 %v111
    %1178 = vmatpush.msra.mxu0 %v105
    %1179 = vmatpush.msra.mxu0 %v99
    %1180 = vmatmul.f32.gmra.mxu0 %v1000
    %v1181 = vpop.f32.mrf.mxu0
    %v1182 = vadd.f32 %v298, %v1181
    %1183 = vdwg.mxu0
    %1184 = vmatpush.msra.mxu0 %v285
    %1185 = vmatpush.msra.mxu0 %v279
    %1186 = vmatpush.msra.mxu0 %v273
    %1187 = vmatpush.msra.mxu0 %v267
    %1188 = vmatpush.msra.mxu0 %v261
    %1189 = vmatpush.msra.mxu0 %v255
    %1190 = vmatpush.msra.mxu0 %v249
    %1191 = vmatpush.msra.mxu0 %v243
    %1192 = vmatpush.msra.mxu0 %v237
    %1193 = vmatpush.msra.mxu0 %v231
    %1194 = vmatpush.msra.mxu0 %v225
    %1195 = vmatpush.msra.mxu0 %v219
    %1196 = vmatpush.msra.mxu0 %v213
    %1197 = vmatpush.msra.mxu0 %v207
    %1198 = vmatpush.msra.mxu0 %v201
    %1199 = vmatpush.msra.mxu0 %v195
    %1200 = vmatmul.f32.gmra.mxu0 %v1001
    %v1201 = vpop.f32.mrf.mxu0
    %v1202 = vadd.f32 %v1182, %v1201
    %1203 = vdwg.mxu0
    %1204 = vmatpush.msra.mxu0 %v190
    %1205 = vmatpush.msra.mxu0 %v184
    %1206 = vmatpush.msra.mxu0 %v178
    %1207 = vmatpush.msra.mxu0 %v172
    %1208 = vmatpush.msra.mxu0 %v166
    %1209 = vmatpush.msra.mxu0 %v160
    %1210 = vmatpush.msra.mxu0 %v154
    %1211 = vmatpush.msra.mxu0 %v148
    %1212 = vmatpush.msra.mxu0 %v142
    %1213 = vmatpush.msra.mxu0 %v136
    %1214 = vmatpush.msra.mxu0 %v130
    %1215 = vmatpush.msra.mxu0 %v124
    %1216 = vmatpush.msra.mxu0 %v118
    %1217 = vmatpush.msra.mxu0 %v112
    %1218 = vmatpush.msra.mxu0 %v106
    %1219 = vmatpush.msra.mxu0 %v100
    %1220 = vmatmul.f32.gmra.mxu0 %v1000
    %v1221 = vpop.f32.mrf.mxu0
    %v1222 = vadd.f32 %v299, %v1221
    %1223 = vdwg.mxu0
    %1224 = vmatpush.msra.mxu0 %v286
    %1225 = vmatpush.msra.mxu0 %v280
    %1226 = vmatpush.msra.mxu0 %v274
    %1227 = vmatpush.msra.mxu0 %v268
    %1228 = vmatpush.msra.mxu0 %v262
    %1229 = vmatpush.msra.mxu0 %v256
    %1230 = vmatpush.msra.mxu0 %v250
    %1231 = vmatpush.msra.mxu0 %v244
    %1232 = vmatpush.msra.mxu0 %v238
    %1233 = vmatpush.msra.mxu0 %v232
    %1234 = vmatpush.msra.mxu0 %v226
    %1235 = vmatpush.msra.mxu0 %v220
    %1236 = vmatpush.msra.mxu0 %v214
    %1237 = vmatpush.msra.mxu0 %v208
    %1238 = vmatpush.msra.mxu0 %v202
    %1239 = vmatpush.msra.mxu0 %v196
    %1240 = vmatmul.f32.gmra.mxu0 %v1001
    %v1241 = vpop.f32.mrf.mxu0
    %v1242 = vadd.f32 %v1222, %v1241
    %1243 = vdwg.mxu0
    %v1246 = vrot.slane %v1042, 6
    %v1247 = vrot.slane %v1082, 6
    %v1250 = vadd.f32 %v89, %v1246
    %v1251 = vadd.f32 %v90, %v1247
    %v1252 = vxor.u32 %v1250, 2147483648
    %v1253 = vxor.u32 %v1251, 2147483648
    %v1254 = vmul.f32 %v1252, 1.442695
    %v1255 = vpow.pop %v1254
    %v1256 = vmul.f32 %v1253, 1.442695
    %v1257 = vpow.pop %v1256
    %v1258 = vadd.f32 %v1255, 1.0
    %v1259 = vadd.f32 %v1257, 1.0
    %v1260 = vrcp.pop %v1258
    %v1261 = vmul.f32 %v1258, %v1260
    %v1262 = vsub.f32 1.0, %v1261
    %v1263 = vmul.f32 %v1260, %v1262
    %v1264 = vadd.f32 %v1260, %v1263
    %vm1265 = vweird.f32 %v1258
    %vm1266 = vweird.f32 %v1260
    %vm1267 = vmor %vm1265, %vm1266
    %v1268 = vsel %vm1267, %v1260, %v1264
    %v1269 = vand.u32 2147483647, %v1258
    %vm1270 = vcmp.eq.f32.partialorder %v1269, 8.507059e+37
    %v1271 = vand.u32 %v1258, 2147483648
    %v1272 = vor.u32 1.1754944e-38, %v1271
    %v1273 = vsel %vm1270, %v1272, %v1268
    %v1274 = vmul.f32 1.0, %v1273
    %v1275 = vrcp.pop %v1259
    %v1276 = vmul.f32 %v1259, %v1275
    %v1277 = vsub.f32 1.0, %v1276
    %v1278 = vmul.f32 %v1275, %v1277
    %v1279 = vadd.f32 %v1275, %v1278
    %vm1280 = vweird.f32 %v1259
    %vm1281 = vweird.f32 %v1275
    %vm1282 = vmor %vm1280, %vm1281
    %v1283 = vsel %vm1282, %v1275, %v1279
    %v1284 = vand.u32 2147483647, %v1259
    %vm1285 = vcmp.eq.f32.partialorder %v1284, 8.507059e+37
    %v1286 = vand.u32 %v1259, 2147483648
    %v1287 = vor.u32 1.1754944e-38, %v1286
    %v1288 = vsel %vm1285, %v1287, %v1283
    %v1289 = vmul.f32 1.0, %v1288
    %v1292 = vrot.slane %v1122, 6
    %v1293 = vrot.slane %v1162, 6
    %v1296 = vadd.f32 %v91, %v1292
    %v1297 = vadd.f32 %v92, %v1293
    %v1298 = vxor.u32 %v1296, 2147483648
    %v1299 = vxor.u32 %v1297, 2147483648
    %v1300 = vmul.f32 %v1298, 1.442695
    %v1301 = vpow.pop %v1300
    %v1302 = vmul.f32 %v1299, 1.442695
    %v1303 = vpow.pop %v1302
    %v1304 = vadd.f32 %v1301, 1.0
    %v1305 = vadd.f32 %v1303, 1.0
    %v1306 = vrcp.pop %v1304
    %v1307 = vmul.f32 %v1304, %v1306
    %v1308 = vsub.f32 1.0, %v1307
    %v1309 = vmul.f32 %v1306, %v1308
    %v1310 = vadd.f32 %v1306, %v1309
    %vm1311 = vweird.f32 %v1304
    %vm1312 = vweird.f32 %v1306
    %vm1313 = vmor %vm1311, %vm1312
    %v1314 = vsel %vm1313, %v1306, %v1310
    %v1315 = vand.u32 2147483647, %v1304
    %vm1316 = vcmp.eq.f32.partialorder %v1315, 8.507059e+37
    %v1317 = vand.u32 %v1304, 2147483648
    %v1318 = vor.u32 1.1754944e-38, %v1317
    %v1319 = vsel %vm1316, %v1318, %v1314
    %v1320 = vmul.f32 1.0, %v1319
    %v1321 = vrcp.pop %v1305
    %v1322 = vmul.f32 %v1305, %v1321
    %v1323 = vsub.f32 1.0, %v1322
    %v1324 = vmul.f32 %v1321, %v1323
    %v1325 = vadd.f32 %v1321, %v1324
    %vm1326 = vweird.f32 %v1305
    %vm1327 = vweird.f32 %v1321
    %vm1328 = vmor %vm1326, %vm1327
    %v1329 = vsel %vm1328, %v1321, %v1325
    %v1330 = vand.u32 2147483647, %v1305
    %vm1331 = vcmp.eq.f32.partialorder %v1330, 8.507059e+37
    %v1332 = vand.u32 %v1305, 2147483648
    %v1333 = vor.u32 1.1754944e-38, %v1332
    %v1334 = vsel %vm1331, %v1333, %v1329
    %v1335 = vmul.f32 1.0, %v1334
    %v1338 = vrot.slane %v1202, 6
    %v1339 = vrot.slane %v1242, 6
    %v1342 = vmul.f32 %v1274, %v1338
    %v1343 = vmul.f32 %v1289, %v1339
    %v1344 = vadd.f32 %v93, %v1342
    %v1345 = vadd.f32 %v94, %v1343
    %v1346 = vtanh.pop %v1344
    %v1347 = vtanh.pop %v1345
    %v1348 = vsub.f32 1.0, %v1320
    %v1349 = vsub.f32 1.0, %v1335
    %v1350 = vmul.f32 %v1348, %v1346
    %v1351 = vmul.f32 %v1349, %v1347
    %v1352 = vrot.slane %v996, 7
    %v1353 = vrot.slane %v997, 7
    %v1356 = vmul.f32 %v1320, %v1352
    %v1357 = vmul.f32 %v1335, %v1353
    %v1358 = vadd.f32 %v1350, %v1356
    %v1359 = vadd.f32 %v1351, %v1357
    %v1362 = vrot.slane %v1358, 2
    %v1363 = vrot.slane %v1359, 2
    %1366 = vmatpush.msra.mxu0 %v185
    %1367 = vmatpush.msra.mxu0 %v179
    %1368 = vmatpush.msra.mxu0 %v173
    %1369 = vmatpush.msra.mxu0 %v167
    %1370 = vmatpush.msra.mxu0 %v161
    %1371 = vmatpush.msra.mxu0 %v155
    %1372 = vmatpush.msra.mxu0 %v149
    %1373 = vmatpush.msra.mxu0 %v143
    %1374 = vmatpush.msra.mxu0 %v137
    %1375 = vmatpush.msra.mxu0 %v131
    %1376 = vmatpush.msra.mxu0 %v125
    %1377 = vmatpush.msra.mxu0 %v119
    %1378 = vmatpush.msra.mxu0 %v113
    %1379 = vmatpush.msra.mxu0 %v107
    %1380 = vmatpush.msra.mxu0 %v101
    %1381 = vmatpush.msra.mxu0 %v95
    %1382 = vmatmul.f32.gmra.mxu0 %v1362
    %v1383 = vpop.f32.mrf.mxu0
    %v1384 = vadd.f32 %v294, %v1383
    %1385 = vdwg.mxu0
    %1386 = vmatpush.msra.mxu0 %v281
    %1387 = vmatpush.msra.mxu0 %v275
    %1388 = vmatpush.msra.mxu0 %v269
    %1389 = vmatpush.msra.mxu0 %v263
    %1390 = vmatpush.msra.mxu0 %v257
    %1391 = vmatpush.msra.mxu0 %v251
    %1392 = vmatpush.msra.mxu0 %v245
    %1393 = vmatpush.msra.mxu0 %v239
    %1394 = vmatpush.msra.mxu0 %v233
    %1395 = vmatpush.msra.mxu0 %v227
    %1396 = vmatpush.msra.mxu0 %v221
    %1397 = vmatpush.msra.mxu0 %v215
    %1398 = vmatpush.msra.mxu0 %v209
    %1399 = vmatpush.msra.mxu0 %v203
    %1400 = vmatpush.msra.mxu0 %v197
    %1401 = vmatpush.msra.mxu0 %v191
    %1402 = vmatmul.f32.gmra.mxu0 %v1363
    %v1403 = vpop.f32.mrf.mxu0
    %v1404 = vadd.f32 %v1384, %v1403
    %1405 = vdwg.mxu0
    %1406 = vmatpush.msra.mxu0 %v186
    %1407 = vmatpush.msra.mxu0 %v180
    %1408 = vmatpush.msra.mxu0 %v174
    %1409 = vmatpush.msra.mxu0 %v168
    %1410 = vmatpush.msra.mxu0 %v162
    %1411 = vmatpush.msra.mxu0 %v156
    %1412 = vmatpush.msra.mxu0 %v150
    %1413 = vmatpush.msra.mxu0 %v144
    %1414 = vmatpush.msra.mxu0 %v138
    %1415 = vmatpush.msra.mxu0 %v132
    %1416 = vmatpush.msra.mxu0 %v126
    %1417 = vmatpush.msra.mxu0 %v120
    %1418 = vmatpush.msra.mxu0 %v114
    %1419 = vmatpush.msra.mxu0 %v108
    %1420 = vmatpush.msra.mxu0 %v102
    %1421 = vmatpush.msra.mxu0 %v96
    %1422 = vmatmul.f32.gmra.mxu0 %v1362
    %v1423 = vpop.f32.mrf.mxu0
    %v1424 = vadd.f32 %v295, %v1423
    %1425 = vdwg.mxu0
    %1426 = vmatpush.msra.mxu0 %v282
    %1427 = vmatpush.msra.mxu0 %v276
    %1428 = vmatpush.msra.mxu0 %v270
    %1429 = vmatpush.msra.mxu0 %v264
    %1430 = vmatpush.msra.mxu0 %v258
    %1431 = vmatpush.msra.mxu0 %v252
    %1432 = vmatpush.msra.mxu0 %v246
    %1433 = vmatpush.msra.mxu0 %v240
    %1434 = vmatpush.msra.mxu0 %v234
    %1435 = vmatpush.msra.mxu0 %v228
    %1436 = vmatpush.msra.mxu0 %v222
    %1437 = vmatpush.msra.mxu0 %v216
    %1438 = vmatpush.msra.mxu0 %v210
    %1439 = vmatpush.msra.mxu0 %v204
    %1440 = vmatpush.msra.mxu0 %v198
    %1441 = vmatpush.msra.mxu0 %v192
    %1442 = vmatmul.f32.gmra.mxu0 %v1363
    %v1443 = vpop.f32.mrf.mxu0
    %v1444 = vadd.f32 %v1424, %v1443
    %1445 = vdwg.mxu0
    %1446 = vmatpush.msra.mxu0 %v187
    %1447 = vmatpush.msra.mxu0 %v181
    %1448 = vmatpush.msra.mxu0 %v175
    %1449 = vmatpush.msra.mxu0 %v169
    %1450 = vmatpush.msra.mxu0 %v163
    %1451 = vmatpush.msra.mxu0 %v157
    %1452 = vmatpush.msra.mxu0 %v151
    %1453 = vmatpush.msra.mxu0 %v145
    %1454 = vmatpush.msra.mxu0 %v139
    %1455 = vmatpush.msra.mxu0 %v133
    %1456 = vmatpush.msra.mxu0 %v127
    %1457 = vmatpush.msra.mxu0 %v121
    %1458 = vmatpush.msra.mxu0 %v115
    %1459 = vmatpush.msra.mxu0 %v109
    %1460 = vmatpush.msra.mxu0 %v103
    %1461 = vmatpush.msra.mxu0 %v97
    %1462 = vmatmul.f32.gmra.mxu0 %v1362
    %v1463 = vpop.f32.mrf.mxu0
    %v1464 = vadd.f32 %v296, %v1463
    %1465 = vdwg.mxu0
    %1466 = vmatpush.msra.mxu0 %v283
    %1467 = vmatpush.msra.mxu0 %v277
    %1468 = vmatpush.msra.mxu0 %v271
    %1469 = vmatpush.msra.mxu0 %v265
    %1470 = vmatpush.msra.mxu0 %v259
    %1471 = vmatpush.msra.mxu0 %v253
    %1472 = vmatpush.msra.mxu0 %v247
    %1473 = vmatpush.msra.mxu0 %v241
    %1474 = vmatpush.msra.mxu0 %v235
    %1475 = vmatpush.msra.mxu0 %v229
    %1476 = vmatpush.msra.mxu0 %v223
    %1477 = vmatpush.msra.mxu0 %v217
    %1478 = vmatpush.msra.mxu0 %v211
    %1479 = vmatpush.msra.mxu0 %v205
    %1480 = vmatpush.msra.mxu0 %v199
    %1481 = vmatpush.msra.mxu0 %v193
    %1482 = vmatmul.f32.gmra.mxu0 %v1363
    %v1483 = vpop.f32.mrf.mxu0
    %v1484 = vadd.f32 %v1464, %v1483
    %1485 = vdwg.mxu0
    %1486 = vmatpush.msra.mxu0 %v188
    %1487 = vmatpush.msra.mxu0 %v182
    %1488 = vmatpush.msra.mxu0 %v176
    %1489 = vmatpush.msra.mxu0 %v170
    %1490 = vmatpush.msra.mxu0 %v164
    %1491 = vmatpush.msra.mxu0 %v158
    %1492 = vmatpush.msra.mxu0 %v152
    %1493 = vmatpush.msra.mxu0 %v146
    %1494 = vmatpush.msra.mxu0 %v140
    %1495 = vmatpush.msra.mxu0 %v134
    %1496 = vmatpush.msra.mxu0 %v128
    %1497 = vmatpush.msra.mxu0 %v122
    %1498 = vmatpush.msra.mxu0 %v116
    %1499 = vmatpush.msra.mxu0 %v110
    %1500 = vmatpush.msra.mxu0 %v104
    %1501 = vmatpush.msra.mxu0 %v98
    %1502 = vmatmul.f32.gmra.mxu0 %v1362
    %v1503 = vpop.f32.mrf.mxu0
    %v1504 = vadd.f32 %v297, %v1503
    %1505 = vdwg.mxu0
    %1506 = vmatpush.msra.mxu0 %v284
    %1507 = vmatpush.msra.mxu0 %v278
    %1508 = vmatpush.msra.mxu0 %v272
    %1509 = vmatpush.msra.mxu0 %v266
    %1510 = vmatpush.msra.mxu0 %v260
    %1511 = vmatpush.msra.mxu0 %v254
    %1512 = vmatpush.msra.mxu0 %v248
    %1513 = vmatpush.msra.mxu0 %v242
    %1514 = vmatpush.msra.mxu0 %v236
    %1515 = vmatpush.msra.mxu0 %v230
    %1516 = vmatpush.msra.mxu0 %v224
    %1517 = vmatpush.msra.mxu0 %v218
    %1518 = vmatpush.msra.mxu0 %v212
    %1519 = vmatpush.msra.mxu0 %v206
    %1520 = vmatpush.msra.mxu0 %v200
    %1521 = vmatpush.msra.mxu0 %v194
    %1522 = vmatmul.f32.gmra.mxu0 %v1363
    %v1523 = vpop.f32.mrf.mxu0
    %v1524 = vadd.f32 %v1504, %v1523
    %1525 = vdwg.mxu0
    %1526 = vmatpush.msra.mxu0 %v189
    %1527 = vmatpush.msra.mxu0 %v183
    %1528 = vmatpush.msra.mxu0 %v177
    %1529 = vmatpush.msra.mxu0 %v171
    %1530 = vmatpush.msra.mxu0 %v165
    %1531 = vmatpush.msra.mxu0 %v159
    %1532 = vmatpush.msra.mxu0 %v153
    %1533 = vmatpush.msra.mxu0 %v147
    %1534 = vmatpush.msra.mxu0 %v141
    %1535 = vmatpush.msra.mxu0 %v135
    %1536 = vmatpush.msra.mxu0 %v129
    %1537 = vmatpush.msra.mxu0 %v123
    %1538 = vmatpush.msra.mxu0 %v117
    %1539 = vmatpush.msra.mxu0 %v111
    %1540 = vmatpush.msra.mxu0 %v105
    %1541 = vmatpush.msra.mxu0 %v99
    %1542 = vmatmul.f32.gmra.mxu0 %v1362
    %v1543 = vpop.f32.mrf.mxu0
    %v1544 = vadd.f32 %v298, %v1543
    %1545 = vdwg.mxu0
    %1546 = vmatpush.msra.mxu0 %v285
    %1547 = vmatpush.msra.mxu0 %v279
    %1548 = vmatpush.msra.mxu0 %v273
    %1549 = vmatpush.msra.mxu0 %v267
    %1550 = vmatpush.msra.mxu0 %v261
    %1551 = vmatpush.msra.mxu0 %v255
    %1552 = vmatpush.msra.mxu0 %v249
    %1553 = vmatpush.msra.mxu0 %v243
    %1554 = vmatpush.msra.mxu0 %v237
    %1555 = vmatpush.msra.mxu0 %v231
    %1556 = vmatpush.msra.mxu0 %v225
    %1557 = vmatpush.msra.mxu0 %v219
    %1558 = vmatpush.msra.mxu0 %v213
    %1559 = vmatpush.msra.mxu0 %v207
    %1560 = vmatpush.msra.mxu0 %v201
    %1561 = vmatpush.msra.mxu0 %v195
    %1562 = vmatmul.f32.gmra.mxu0 %v1363
    %v1563 = vpop.f32.mrf.mxu0
    %v1564 = vadd.f32 %v1544, %v1563
    %1565 = vdwg.mxu0
    %1566 = vmatpush.msra.mxu0 %v190
    %1567 = vmatpush.msra.mxu0 %v184
    %1568 = vmatpush.msra.mxu0 %v178
    %1569 = vmatpush.msra.mxu0 %v172
    %1570 = vmatpush.msra.mxu0 %v166
    %1571 = vmatpush.msra.mxu0 %v160
    %1572 = vmatpush.msra.mxu0 %v154
    %1573 = vmatpush.msra.mxu0 %v148
    %1574 = vmatpush.msra.mxu0 %v142
    %1575 = vmatpush.msra.mxu0 %v136
    %1576 = vmatpush.msra.mxu0 %v130
    %1577 = vmatpush.msra.mxu0 %v124
    %1578 = vmatpush.msra.mxu0 %v118
    %1579 = vmatpush.msra.mxu0 %v112
    %1580 = vmatpush.msra.mxu0 %v106
    %1581 = vmatpush.msra.mxu0 %v100
    %1582 = vmatmul.f32.gmra.mxu0 %v1362
    %v1583 = vpop.f32.mrf.mxu0
    %v1584 = vadd.f32 %v299, %v1583
    %1585 = vdwg.mxu0
    %1586 = vmatpush.msra.mxu0 %v286
    %1587 = vmatpush.msra.mxu0 %v280
    %1588 = vmatpush.msra.mxu0 %v274
    %1589 = vmatpush.msra.mxu0 %v268
    %1590 = vmatpush.msra.mxu0 %v262
    %1591 = vmatpush.msra.mxu0 %v256
    %1592 = vmatpush.msra.mxu0 %v250
    %1593 = vmatpush.msra.mxu0 %v244
    %1594 = vmatpush.msra.mxu0 %v238
    %1595 = vmatpush.msra.mxu0 %v232
    %1596 = vmatpush.msra.mxu0 %v226
    %1597 = vmatpush.msra.mxu0 %v220
    %1598 = vmatpush.msra.mxu0 %v214
    %1599 = vmatpush.msra.mxu0 %v208
    %1600 = vmatpush.msra.mxu0 %v202
    %1601 = vmatpush.msra.mxu0 %v196
    %1602 = vmatmul.f32.gmra.mxu0 %v1363
    %v1603 = vpop.f32.mrf.mxu0
    %v1604 = vadd.f32 %v1584, %v1603
    %1605 = vdwg.mxu0
    %v1608 = vrot.slane %v1404, 5
    %v1609 = vrot.slane %v1444, 5
    %v1612 = vadd.f32 %v89, %v1608
    %v1613 = vadd.f32 %v90, %v1609
    %v1614 = vxor.u32 %v1612, 2147483648
    %v1615 = vxor.u32 %v1613, 2147483648
    %v1616 = vmul.f32 %v1614, 1.442695
    %v1617 = vpow.pop %v1616
    %v1618 = vmul.f32 %v1615, 1.442695
    %v1619 = vpow.pop %v1618
    %v1620 = vadd.f32 %v1617, 1.0
    %v1621 = vadd.f32 %v1619, 1.0
    %v1622 = vrcp.pop %v1620
    %v1623 = vmul.f32 %v1620, %v1622
    %v1624 = vsub.f32 1.0, %v1623
    %v1625 = vmul.f32 %v1622, %v1624
    %v1626 = vadd.f32 %v1622, %v1625
    %vm1627 = vweird.f32 %v1620
    %vm1628 = vweird.f32 %v1622
    %vm1629 = vmor %vm1627, %vm1628
    %v1630 = vsel %vm1629, %v1622, %v1626
    %v1631 = vand.u32 2147483647, %v1620
    %vm1632 = vcmp.eq.f32.partialorder %v1631, 8.507059e+37
    %v1633 = vand.u32 %v1620, 2147483648
    %v1634 = vor.u32 1.1754944e-38, %v1633
    %v1635 = vsel %vm1632, %v1634, %v1630
    %v1636 = vmul.f32 1.0, %v1635
    %v1637 = vrcp.pop %v1621
    %v1638 = vmul.f32 %v1621, %v1637
    %v1639 = vsub.f32 1.0, %v1638
    %v1640 = vmul.f32 %v1637, %v1639
    %v1641 = vadd.f32 %v1637, %v1640
    %vm1642 = vweird.f32 %v1621
    %vm1643 = vweird.f32 %v1637
    %vm1644 = vmor %vm1642, %vm1643
    %v1645 = vsel %vm1644, %v1637, %v1641
    %v1646 = vand.u32 2147483647, %v1621
    %vm1647 = vcmp.eq.f32.partialorder %v1646, 8.507059e+37
    %v1648 = vand.u32 %v1621, 2147483648
    %v1649 = vor.u32 1.1754944e-38, %v1648
    %v1650 = vsel %vm1647, %v1649, %v1645
    %v1651 = vmul.f32 1.0, %v1650
    %v1654 = vrot.slane %v1484, 5
    %v1655 = vrot.slane %v1524, 5
    %v1658 = vadd.f32 %v91, %v1654
    %v1659 = vadd.f32 %v92, %v1655
    %v1660 = vxor.u32 %v1658, 2147483648
    %v1661 = vxor.u32 %v1659, 2147483648
    %v1662 = vmul.f32 %v1660, 1.442695
    %v1663 = vpow.pop %v1662
    %v1664 = vmul.f32 %v1661, 1.442695
    %v1665 = vpow.pop %v1664
    %v1666 = vadd.f32 %v1663, 1.0
    %v1667 = vadd.f32 %v1665, 1.0
    %v1668 = vrcp.pop %v1666
    %v1669 = vmul.f32 %v1666, %v1668
    %v1670 = vsub.f32 1.0, %v1669
    %v1671 = vmul.f32 %v1668, %v1670
    %v1672 = vadd.f32 %v1668, %v1671
    %vm1673 = vweird.f32 %v1666
    %vm1674 = vweird.f32 %v1668
    %vm1675 = vmor %vm1673, %vm1674
    %v1676 = vsel %vm1675, %v1668, %v1672
    %v1677 = vand.u32 2147483647, %v1666
    %vm1678 = vcmp.eq.f32.partialorder %v1677, 8.507059e+37
    %v1679 = vand.u32 %v1666, 2147483648
    %v1680 = vor.u32 1.1754944e-38, %v1679
    %v1681 = vsel %vm1678, %v1680, %v1676
    %v1682 = vmul.f32 1.0, %v1681
    %v1683 = vrcp.pop %v1667
    %v1684 = vmul.f32 %v1667, %v1683
    %v1685 = vsub.f32 1.0, %v1684
    %v1686 = vmul.f32 %v1683, %v1685
    %v1687 = vadd.f32 %v1683, %v1686
    %vm1688 = vweird.f32 %v1667
    %vm1689 = vweird.f32 %v1683
    %vm1690 = vmor %vm1688, %vm1689
    %v1691 = vsel %vm1690, %v1683, %v1687
    %v1692 = vand.u32 2147483647, %v1667
    %vm1693 = vcmp.eq.f32.partialorder %v1692, 8.507059e+37
    %v1694 = vand.u32 %v1667, 2147483648
    %v1695 = vor.u32 1.1754944e-38, %v1694
    %v1696 = vsel %vm1693, %v1695, %v1691
    %v1697 = vmul.f32 1.0, %v1696
    %v1700 = vrot.slane %v1564, 5
    %v1701 = vrot.slane %v1604, 5
    %v1704 = vmul.f32 %v1636, %v1700
    %v1705 = vmul.f32 %v1651, %v1701
    %v1706 = vadd.f32 %v93, %v1704
    %v1707 = vadd.f32 %v94, %v1705
    %v1708 = vtanh.pop %v1706
    %v1709 = vtanh.pop %v1707
    %v1710 = vsub.f32 1.0, %v1682
    %v1711 = vsub.f32 1.0, %v1697
    %v1712 = vmul.f32 %v1710, %v1708
    %v1713 = vmul.f32 %v1711, %v1709
    %v1714 = vrot.slane %v1358, 7
    %v1715 = vrot.slane %v1359, 7
    %v1718 = vmul.f32 %v1682, %v1714
    %v1719 = vmul.f32 %v1697, %v1715
    %v1720 = vadd.f32 %v1712, %v1718
    %v1721 = vadd.f32 %v1713, %v1719
    %v1724 = vrot.slane %v1720, 3
    %v1725 = vrot.slane %v1721, 3
    %1728 = vmatpush.msra.mxu0 %v185
    %1729 = vmatpush.msra.mxu0 %v179
    %1730 = vmatpush.msra.mxu0 %v173
    %1731 = vmatpush.msra.mxu0 %v167
    %1732 = vmatpush.msra.mxu0 %v161
    %1733 = vmatpush.msra.mxu0 %v155
    %1734 = vmatpush.msra.mxu0 %v149
    %1735 = vmatpush.msra.mxu0 %v143
    %1736 = vmatpush.msra.mxu0 %v137
    %1737 = vmatpush.msra.mxu0 %v131
    %1738 = vmatpush.msra.mxu0 %v125
    %1739 = vmatpush.msra.mxu0 %v119
    %1740 = vmatpush.msra.mxu0 %v113
    %1741 = vmatpush.msra.mxu0 %v107
    %1742 = vmatpush.msra.mxu0 %v101
    %1743 = vmatpush.msra.mxu0 %v95
    %1744 = vmatmul.f32.gmra.mxu0 %v1724
    %v1745 = vpop.f32.mrf.mxu0
    %v1746 = vadd.f32 %v294, %v1745
    %1747 = vdwg.mxu0
    %1748 = vmatpush.msra.mxu0 %v281
    %1749 = vmatpush.msra.mxu0 %v275
    %1750 = vmatpush.msra.mxu0 %v269
    %1751 = vmatpush.msra.mxu0 %v263
    %1752 = vmatpush.msra.mxu0 %v257
    %1753 = vmatpush.msra.mxu0 %v251
    %1754 = vmatpush.msra.mxu0 %v245
    %1755 = vmatpush.msra.mxu0 %v239
    %1756 = vmatpush.msra.mxu0 %v233
    %1757 = vmatpush.msra.mxu0 %v227
    %1758 = vmatpush.msra.mxu0 %v221
    %1759 = vmatpush.msra.mxu0 %v215
    %1760 = vmatpush.msra.mxu0 %v209
    %1761 = vmatpush.msra.mxu0 %v203
    %1762 = vmatpush.msra.mxu0 %v197
    %1763 = vmatpush.msra.mxu0 %v191
    %1764 = vmatmul.f32.gmra.mxu0 %v1725
    %v1765 = vpop.f32.mrf.mxu0
    %v1766 = vadd.f32 %v1746, %v1765
    %1767 = vdwg.mxu0
    %1768 = vmatpush.msra.mxu0 %v186
    %1769 = vmatpush.msra.mxu0 %v180
    %1770 = vmatpush.msra.mxu0 %v174
    %1771 = vmatpush.msra.mxu0 %v168
    %1772 = vmatpush.msra.mxu0 %v162
    %1773 = vmatpush.msra.mxu0 %v156
    %1774 = vmatpush.msra.mxu0 %v150
    %1775 = vmatpush.msra.mxu0 %v144
    %1776 = vmatpush.msra.mxu0 %v138
    %1777 = vmatpush.msra.mxu0 %v132
    %1778 = vmatpush.msra.mxu0 %v126
    %1779 = vmatpush.msra.mxu0 %v120
    %1780 = vmatpush.msra.mxu0 %v114
    %1781 = vmatpush.msra.mxu0 %v108
    %1782 = vmatpush.msra.mxu0 %v102
    %1783 = vmatpush.msra.mxu0 %v96
    %1784 = vmatmul.f32.gmra.mxu0 %v1724
    %v1785 = vpop.f32.mrf.mxu0
    %v1786 = vadd.f32 %v295, %v1785
    %1787 = vdwg.mxu0
    %1788 = vmatpush.msra.mxu0 %v282
    %1789 = vmatpush.msra.mxu0 %v276
    %1790 = vmatpush.msra.mxu0 %v270
    %1791 = vmatpush.msra.mxu0 %v264
    %1792 = vmatpush.msra.mxu0 %v258
    %1793 = vmatpush.msra.mxu0 %v252
    %1794 = vmatpush.msra.mxu0 %v246
    %1795 = vmatpush.msra.mxu0 %v240
    %1796 = vmatpush.msra.mxu0 %v234
    %1797 = vmatpush.msra.mxu0 %v228
    %1798 = vmatpush.msra.mxu0 %v222
    %1799 = vmatpush.msra.mxu0 %v216
    %1800 = vmatpush.msra.mxu0 %v210
    %1801 = vmatpush.msra.mxu0 %v204
    %1802 = vmatpush.msra.mxu0 %v198
    %1803 = vmatpush.msra.mxu0 %v192
    %1804 = vmatmul.f32.gmra.mxu0 %v1725
    %v1805 = vpop.f32.mrf.mxu0
    %v1806 = vadd.f32 %v1786, %v1805
    %1807 = vdwg.mxu0
    %1808 = vmatpush.msra.mxu0 %v187
    %1809 = vmatpush.msra.mxu0 %v181
    %1810 = vmatpush.msra.mxu0 %v175
    %1811 = vmatpush.msra.mxu0 %v169
    %1812 = vmatpush.msra.mxu0 %v163
    %1813 = vmatpush.msra.mxu0 %v157
    %1814 = vmatpush.msra.mxu0 %v151
    %1815 = vmatpush.msra.mxu0 %v145
    %1816 = vmatpush.msra.mxu0 %v139
    %1817 = vmatpush.msra.mxu0 %v133
    %1818 = vmatpush.msra.mxu0 %v127
    %1819 = vmatpush.msra.mxu0 %v121
    %1820 = vmatpush.msra.mxu0 %v115
    %1821 = vmatpush.msra.mxu0 %v109
    %1822 = vmatpush.msra.mxu0 %v103
    %1823 = vmatpush.msra.mxu0 %v97
    %1824 = vmatmul.f32.gmra.mxu0 %v1724
    %v1825 = vpop.f32.mrf.mxu0
    %v1826 = vadd.f32 %v296, %v1825
    %1827 = vdwg.mxu0
    %1828 = vmatpush.msra.mxu0 %v283
    %1829 = vmatpush.msra.mxu0 %v277
    %1830 = vmatpush.msra.mxu0 %v271
    %1831 = vmatpush.msra.mxu0 %v265
    %1832 = vmatpush.msra.mxu0 %v259
    %1833 = vmatpush.msra.mxu0 %v253
    %1834 = vmatpush.msra.mxu0 %v247
    %1835 = vmatpush.msra.mxu0 %v241
    %1836 = vmatpush.msra.mxu0 %v235
    %1837 = vmatpush.msra.mxu0 %v229
    %1838 = vmatpush.msra.mxu0 %v223
    %1839 = vmatpush.msra.mxu0 %v217
    %1840 = vmatpush.msra.mxu0 %v211
    %1841 = vmatpush.msra.mxu0 %v205
    %1842 = vmatpush.msra.mxu0 %v199
    %1843 = vmatpush.msra.mxu0 %v193
    %1844 = vmatmul.f32.gmra.mxu0 %v1725
    %v1845 = vpop.f32.mrf.mxu0
    %v1846 = vadd.f32 %v1826, %v1845
    %1847 = vdwg.mxu0
    %1848 = vmatpush.msra.mxu0 %v188
    %1849 = vmatpush.msra.mxu0 %v182
    %1850 = vmatpush.msra.mxu0 %v176
    %1851 = vmatpush.msra.mxu0 %v170
    %1852 = vmatpush.msra.mxu0 %v164
    %1853 = vmatpush.msra.mxu0 %v158
    %1854 = vmatpush.msra.mxu0 %v152
    %1855 = vmatpush.msra.mxu0 %v146
    %1856 = vmatpush.msra.mxu0 %v140
    %1857 = vmatpush.msra.mxu0 %v134
    %1858 = vmatpush.msra.mxu0 %v128
    %1859 = vmatpush.msra.mxu0 %v122
    %1860 = vmatpush.msra.mxu0 %v116
    %1861 = vmatpush.msra.mxu0 %v110
    %1862 = vmatpush.msra.mxu0 %v104
    %1863 = vmatpush.msra.mxu0 %v98
    %1864 = vmatmul.f32.gmra.mxu0 %v1724
    %v1865 = vpop.f32.mrf.mxu0
    %v1866 = vadd.f32 %v297, %v1865
    %1867 = vdwg.mxu0
    %1868 = vmatpush.msra.mxu0 %v284
    %1869 = vmatpush.msra.mxu0 %v278
    %1870 = vmatpush.msra.mxu0 %v272
    %1871 = vmatpush.msra.mxu0 %v266
    %1872 = vmatpush.msra.mxu0 %v260
    %1873 = vmatpush.msra.mxu0 %v254
    %1874 = vmatpush.msra.mxu0 %v248
    %1875 = vmatpush.msra.mxu0 %v242
    %1876 = vmatpush.msra.mxu0 %v236
    %1877 = vmatpush.msra.mxu0 %v230
    %1878 = vmatpush.msra.mxu0 %v224
    %1879 = vmatpush.msra.mxu0 %v218
    %1880 = vmatpush.msra.mxu0 %v212
    %1881 = vmatpush.msra.mxu0 %v206
    %1882 = vmatpush.msra.mxu0 %v200
    %1883 = vmatpush.msra.mxu0 %v194
    %1884 = vmatmul.f32.gmra.mxu0 %v1725
    %v1885 = vpop.f32.mrf.mxu0
    %v1886 = vadd.f32 %v1866, %v1885
    %1887 = vdwg.mxu0
    %1888 = vmatpush.msra.mxu0 %v189
    %1889 = vmatpush.msra.mxu0 %v183
    %1890 = vmatpush.msra.mxu0 %v177
    %1891 = vmatpush.msra.mxu0 %v171
    %1892 = vmatpush.msra.mxu0 %v165
    %1893 = vmatpush.msra.mxu0 %v159
    %1894 = vmatpush.msra.mxu0 %v153
    %1895 = vmatpush.msra.mxu0 %v147
    %1896 = vmatpush.msra.mxu0 %v141
    %1897 = vmatpush.msra.mxu0 %v135
    %1898 = vmatpush.msra.mxu0 %v129
    %1899 = vmatpush.msra.mxu0 %v123
    %1900 = vmatpush.msra.mxu0 %v117
    %1901 = vmatpush.msra.mxu0 %v111
    %1902 = vmatpush.msra.mxu0 %v105
    %1903 = vmatpush.msra.mxu0 %v99
    %1904 = vmatmul.f32.gmra.mxu0 %v1724
    %v1905 = vpop.f32.mrf.mxu0
    %v1906 = vadd.f32 %v298, %v1905
    %1907 = vdwg.mxu0
    %1908 = vmatpush.msra.mxu0 %v285
    %1909 = vmatpush.msra.mxu0 %v279
    %1910 = vmatpush.msra.mxu0 %v273
    %1911 = vmatpush.msra.mxu0 %v267
    %1912 = vmatpush.msra.mxu0 %v261
    %1913 = vmatpush.msra.mxu0 %v255
    %1914 = vmatpush.msra.mxu0 %v249
    %1915 = vmatpush.msra.mxu0 %v243
    %1916 = vmatpush.msra.mxu0 %v237
    %1917 = vmatpush.msra.mxu0 %v231
    %1918 = vmatpush.msra.mxu0 %v225
    %1919 = vmatpush.msra.mxu0 %v219
    %1920 = vmatpush.msra.mxu0 %v213
    %1921 = vmatpush.msra.mxu0 %v207
    %1922 = vmatpush.msra.mxu0 %v201
    %1923 = vmatpush.msra.mxu0 %v195
    %1924 = vmatmul.f32.gmra.mxu0 %v1725
    %v1925 = vpop.f32.mrf.mxu0
    %v1926 = vadd.f32 %v1906, %v1925
    %1927 = vdwg.mxu0
    %1928 = vmatpush.msra.mxu0 %v190
    %1929 = vmatpush.msra.mxu0 %v184
    %1930 = vmatpush.msra.mxu0 %v178
    %1931 = vmatpush.msra.mxu0 %v172
    %1932 = vmatpush.msra.mxu0 %v166
    %1933 = vmatpush.msra.mxu0 %v160
    %1934 = vmatpush.msra.mxu0 %v154
    %1935 = vmatpush.msra.mxu0 %v148
    %1936 = vmatpush.msra.mxu0 %v142
    %1937 = vmatpush.msra.mxu0 %v136
    %1938 = vmatpush.msra.mxu0 %v130
    %1939 = vmatpush.msra.mxu0 %v124
    %1940 = vmatpush.msra.mxu0 %v118
    %1941 = vmatpush.msra.mxu0 %v112
    %1942 = vmatpush.msra.mxu0 %v106
    %1943 = vmatpush.msra.mxu0 %v100
    %1944 = vmatmul.f32.gmra.mxu0 %v1724
    %v1945 = vpop.f32.mrf.mxu0
    %v1946 = vadd.f32 %v299, %v1945
    %1947 = vdwg.mxu0
    %1948 = vmatpush.msra.mxu0 %v286
    %1949 = vmatpush.msra.mxu0 %v280
    %1950 = vmatpush.msra.mxu0 %v274
    %1951 = vmatpush.msra.mxu0 %v268
    %1952 = vmatpush.msra.mxu0 %v262
    %1953 = vmatpush.msra.mxu0 %v256
    %1954 = vmatpush.msra.mxu0 %v250
    %1955 = vmatpush.msra.mxu0 %v244
    %1956 = vmatpush.msra.mxu0 %v238
    %1957 = vmatpush.msra.mxu0 %v232
    %1958 = vmatpush.msra.mxu0 %v226
    %1959 = vmatpush.msra.mxu0 %v220
    %1960 = vmatpush.msra.mxu0 %v214
    %1961 = vmatpush.msra.mxu0 %v208
    %1962 = vmatpush.msra.mxu0 %v202
    %1963 = vmatpush.msra.mxu0 %v196
    %1964 = vmatmul.f32.gmra.mxu0 %v1725
    %v1965 = vpop.f32.mrf.mxu0
    %v1966 = vadd.f32 %v1946, %v1965
    %1967 = vdwg.mxu0
    %v1970 = vrot.slane %v1766, 4
    %v1971 = vrot.slane %v1806, 4
    %v1974 = vadd.f32 %v89, %v1970
    %v1975 = vadd.f32 %v90, %v1971
    %v1976 = vxor.u32 %v1974, 2147483648
    %v1977 = vxor.u32 %v1975, 2147483648
    %v1978 = vmul.f32 %v1976, 1.442695
    %v1979 = vpow.pop %v1978
    %v1980 = vmul.f32 %v1977, 1.442695
    %v1981 = vpow.pop %v1980
    %v1982 = vadd.f32 %v1979, 1.0
    %v1983 = vadd.f32 %v1981, 1.0
    %v1984 = vrcp.pop %v1982
    %v1985 = vmul.f32 %v1982, %v1984
    %v1986 = vsub.f32 1.0, %v1985
    %v1987 = vmul.f32 %v1984, %v1986
    %v1988 = vadd.f32 %v1984, %v1987
    %vm1989 = vweird.f32 %v1982
    %vm1990 = vweird.f32 %v1984
    %vm1991 = vmor %vm1989, %vm1990
    %v1992 = vsel %vm1991, %v1984, %v1988
    %v1993 = vand.u32 2147483647, %v1982
    %vm1994 = vcmp.eq.f32.partialorder %v1993, 8.507059e+37
    %v1995 = vand.u32 %v1982, 2147483648
    %v1996 = vor.u32 1.1754944e-38, %v1995
    %v1997 = vsel %vm1994, %v1996, %v1992
    %v1998 = vmul.f32 1.0, %v1997
    %v1999 = vrcp.pop %v1983
    %v2000 = vmul.f32 %v1983, %v1999
    %v2001 = vsub.f32 1.0, %v2000
    %v2002 = vmul.f32 %v1999, %v2001
    %v2003 = vadd.f32 %v1999, %v2002
    %vm2004 = vweird.f32 %v1983
    %vm2005 = vweird.f32 %v1999
    %vm2006 = vmor %vm2004, %vm2005
    %v2007 = vsel %vm2006, %v1999, %v2003
    %v2008 = vand.u32 2147483647, %v1983
    %vm2009 = vcmp.eq.f32.partialorder %v2008, 8.507059e+37
    %v2010 = vand.u32 %v1983, 2147483648
    %v2011 = vor.u32 1.1754944e-38, %v2010
    %v2012 = vsel %vm2009, %v2011, %v2007
    %v2013 = vmul.f32 1.0, %v2012
    %v2016 = vrot.slane %v1846, 4
    %v2017 = vrot.slane %v1886, 4
    %v2020 = vadd.f32 %v91, %v2016
    %v2021 = vadd.f32 %v92, %v2017
    %v2022 = vxor.u32 %v2020, 2147483648
    %v2023 = vxor.u32 %v2021, 2147483648
    %v2024 = vmul.f32 %v2022, 1.442695
    %v2025 = vpow.pop %v2024
    %v2026 = vmul.f32 %v2023, 1.442695
    %v2027 = vpow.pop %v2026
    %v2028 = vadd.f32 %v2025, 1.0
    %v2029 = vadd.f32 %v2027, 1.0
    %v2030 = vrcp.pop %v2028
    %v2031 = vmul.f32 %v2028, %v2030
    %v2032 = vsub.f32 1.0, %v2031
    %v2033 = vmul.f32 %v2030, %v2032
    %v2034 = vadd.f32 %v2030, %v2033
    %vm2035 = vweird.f32 %v2028
    %vm2036 = vweird.f32 %v2030
    %vm2037 = vmor %vm2035, %vm2036
    %v2038 = vsel %vm2037, %v2030, %v2034
    %v2039 = vand.u32 2147483647, %v2028
    %vm2040 = vcmp.eq.f32.partialorder %v2039, 8.507059e+37
    %v2041 = vand.u32 %v2028, 2147483648
    %v2042 = vor.u32 1.1754944e-38, %v2041
    %v2043 = vsel %vm2040, %v2042, %v2038
    %v2044 = vmul.f32 1.0, %v2043
    %v2045 = vrcp.pop %v2029
    %v2046 = vmul.f32 %v2029, %v2045
    %v2047 = vsub.f32 1.0, %v2046
    %v2048 = vmul.f32 %v2045, %v2047
    %v2049 = vadd.f32 %v2045, %v2048
    %vm2050 = vweird.f32 %v2029
    %vm2051 = vweird.f32 %v2045
    %vm2052 = vmor %vm2050, %vm2051
    %v2053 = vsel %vm2052, %v2045, %v2049
    %v2054 = vand.u32 2147483647, %v2029
    %vm2055 = vcmp.eq.f32.partialorder %v2054, 8.507059e+37
    %v2056 = vand.u32 %v2029, 2147483648
    %v2057 = vor.u32 1.1754944e-38, %v2056
    %v2058 = vsel %vm2055, %v2057, %v2053
    %v2059 = vmul.f32 1.0, %v2058
    %v2062 = vrot.slane %v1926, 4
    %v2063 = vrot.slane %v1966, 4
    %v2066 = vmul.f32 %v1998, %v2062
    %v2067 = vmul.f32 %v2013, %v2063
    %v2068 = vadd.f32 %v93, %v2066
    %v2069 = vadd.f32 %v94, %v2067
    %v2070 = vtanh.pop %v2068
    %v2071 = vtanh.pop %v2069
    %v2072 = vsub.f32 1.0, %v2044
    %v2073 = vsub.f32 1.0, %v2059
    %v2074 = vmul.f32 %v2072, %v2070
    %v2075 = vmul.f32 %v2073, %v2071
    %v2076 = vrot.slane %v1720, 7
    %v2077 = vrot.slane %v1721, 7
    %v2080 = vmul.f32 %v2044, %v2076
    %v2081 = vmul.f32 %v2059, %v2077
    %v2082 = vadd.f32 %v2074, %v2080
    %v2083 = vadd.f32 %v2075, %v2081
    %v2086 = vrot.slane %v2082, 4
    %v2087 = vrot.slane %v2083, 4
    %2090 = vmatpush.msra.mxu0 %v185
    %2091 = vmatpush.msra.mxu0 %v179
    %2092 = vmatpush.msra.mxu0 %v173
    %2093 = vmatpush.msra.mxu0 %v167
    %2094 = vmatpush.msra.mxu0 %v161
    %2095 = vmatpush.msra.mxu0 %v155
    %2096 = vmatpush.msra.mxu0 %v149
    %2097 = vmatpush.msra.mxu0 %v143
    %2098 = vmatpush.msra.mxu0 %v137
    %2099 = vmatpush.msra.mxu0 %v131
    %2100 = vmatpush.msra.mxu0 %v125
    %2101 = vmatpush.msra.mxu0 %v119
    %2102 = vmatpush.msra.mxu0 %v113
    %2103 = vmatpush.msra.mxu0 %v107
    %2104 = vmatpush.msra.mxu0 %v101
    %2105 = vmatpush.msra.mxu0 %v95
    %2106 = vmatmul.f32.gmra.mxu0 %v2086
    %v2107 = vpop.f32.mrf.mxu0
    %v2108 = vadd.f32 %v294, %v2107
    %2109 = vdwg.mxu0
    %2110 = vmatpush.msra.mxu0 %v281
    %2111 = vmatpush.msra.mxu0 %v275
    %2112 = vmatpush.msra.mxu0 %v269
    %2113 = vmatpush.msra.mxu0 %v263
    %2114 = vmatpush.msra.mxu0 %v257
    %2115 = vmatpush.msra.mxu0 %v251
    %2116 = vmatpush.msra.mxu0 %v245
    %2117 = vmatpush.msra.mxu0 %v239
    %2118 = vmatpush.msra.mxu0 %v233
    %2119 = vmatpush.msra.mxu0 %v227
    %2120 = vmatpush.msra.mxu0 %v221
    %2121 = vmatpush.msra.mxu0 %v215
    %2122 = vmatpush.msra.mxu0 %v209
    %2123 = vmatpush.msra.mxu0 %v203
    %2124 = vmatpush.msra.mxu0 %v197
    %2125 = vmatpush.msra.mxu0 %v191
    %2126 = vmatmul.f32.gmra.mxu0 %v2087
    %v2127 = vpop.f32.mrf.mxu0
    %v2128 = vadd.f32 %v2108, %v2127
    %2129 = vdwg.mxu0
    %2130 = vmatpush.msra.mxu0 %v186
    %2131 = vmatpush.msra.mxu0 %v180
    %2132 = vmatpush.msra.mxu0 %v174
    %2133 = vmatpush.msra.mxu0 %v168
    %2134 = vmatpush.msra.mxu0 %v162
    %2135 = vmatpush.msra.mxu0 %v156
    %2136 = vmatpush.msra.mxu0 %v150
    %2137 = vmatpush.msra.mxu0 %v144
    %2138 = vmatpush.msra.mxu0 %v138
    %2139 = vmatpush.msra.mxu0 %v132
    %2140 = vmatpush.msra.mxu0 %v126
    %2141 = vmatpush.msra.mxu0 %v120
    %2142 = vmatpush.msra.mxu0 %v114
    %2143 = vmatpush.msra.mxu0 %v108
    %2144 = vmatpush.msra.mxu0 %v102
    %2145 = vmatpush.msra.mxu0 %v96
    %2146 = vmatmul.f32.gmra.mxu0 %v2086
    %v2147 = vpop.f32.mrf.mxu0
    %v2148 = vadd.f32 %v295, %v2147
    %2149 = vdwg.mxu0
    %2150 = vmatpush.msra.mxu0 %v282
    %2151 = vmatpush.msra.mxu0 %v276
    %2152 = vmatpush.msra.mxu0 %v270
    %2153 = vmatpush.msra.mxu0 %v264
    %2154 = vmatpush.msra.mxu0 %v258
    %2155 = vmatpush.msra.mxu0 %v252
    %2156 = vmatpush.msra.mxu0 %v246
    %2157 = vmatpush.msra.mxu0 %v240
    %2158 = vmatpush.msra.mxu0 %v234
    %2159 = vmatpush.msra.mxu0 %v228
    %2160 = vmatpush.msra.mxu0 %v222
    %2161 = vmatpush.msra.mxu0 %v216
    %2162 = vmatpush.msra.mxu0 %v210
    %2163 = vmatpush.msra.mxu0 %v204
    %2164 = vmatpush.msra.mxu0 %v198
    %2165 = vmatpush.msra.mxu0 %v192
    %2166 = vmatmul.f32.gmra.mxu0 %v2087
    %v2167 = vpop.f32.mrf.mxu0
    %v2168 = vadd.f32 %v2148, %v2167
    %2169 = vdwg.mxu0
    %2170 = vmatpush.msra.mxu0 %v187
    %2171 = vmatpush.msra.mxu0 %v181
    %2172 = vmatpush.msra.mxu0 %v175
    %2173 = vmatpush.msra.mxu0 %v169
    %2174 = vmatpush.msra.mxu0 %v163
    %2175 = vmatpush.msra.mxu0 %v157
    %2176 = vmatpush.msra.mxu0 %v151
    %2177 = vmatpush.msra.mxu0 %v145
    %2178 = vmatpush.msra.mxu0 %v139
    %2179 = vmatpush.msra.mxu0 %v133
    %2180 = vmatpush.msra.mxu0 %v127
    %2181 = vmatpush.msra.mxu0 %v121
    %2182 = vmatpush.msra.mxu0 %v115
    %2183 = vmatpush.msra.mxu0 %v109
    %2184 = vmatpush.msra.mxu0 %v103
    %2185 = vmatpush.msra.mxu0 %v97
    %2186 = vmatmul.f32.gmra.mxu0 %v2086
    %v2187 = vpop.f32.mrf.mxu0
    %v2188 = vadd.f32 %v296, %v2187
    %2189 = vdwg.mxu0
    %2190 = vmatpush.msra.mxu0 %v283
    %2191 = vmatpush.msra.mxu0 %v277
    %2192 = vmatpush.msra.mxu0 %v271
    %2193 = vmatpush.msra.mxu0 %v265
    %2194 = vmatpush.msra.mxu0 %v259
    %2195 = vmatpush.msra.mxu0 %v253
    %2196 = vmatpush.msra.mxu0 %v247
    %2197 = vmatpush.msra.mxu0 %v241
    %2198 = vmatpush.msra.mxu0 %v235
    %2199 = vmatpush.msra.mxu0 %v229
    %2200 = vmatpush.msra.mxu0 %v223
    %2201 = vmatpush.msra.mxu0 %v217
    %2202 = vmatpush.msra.mxu0 %v211
    %2203 = vmatpush.msra.mxu0 %v205
    %2204 = vmatpush.msra.mxu0 %v199
    %2205 = vmatpush.msra.mxu0 %v193
    %2206 = vmatmul.f32.gmra.mxu0 %v2087
    %v2207 = vpop.f32.mrf.mxu0
    %v2208 = vadd.f32 %v2188, %v2207
    %2209 = vdwg.mxu0
    %2210 = vmatpush.msra.mxu0 %v188
    %2211 = vmatpush.msra.mxu0 %v182
    %2212 = vmatpush.msra.mxu0 %v176
    %2213 = vmatpush.msra.mxu0 %v170
    %2214 = vmatpush.msra.mxu0 %v164
    %2215 = vmatpush.msra.mxu0 %v158
    %2216 = vmatpush.msra.mxu0 %v152
    %2217 = vmatpush.msra.mxu0 %v146
    %2218 = vmatpush.msra.mxu0 %v140
    %2219 = vmatpush.msra.mxu0 %v134
    %2220 = vmatpush.msra.mxu0 %v128
    %2221 = vmatpush.msra.mxu0 %v122
    %2222 = vmatpush.msra.mxu0 %v116
    %2223 = vmatpush.msra.mxu0 %v110
    %2224 = vmatpush.msra.mxu0 %v104
    %2225 = vmatpush.msra.mxu0 %v98
    %2226 = vmatmul.f32.gmra.mxu0 %v2086
    %v2227 = vpop.f32.mrf.mxu0
    %v2228 = vadd.f32 %v297, %v2227
    %2229 = vdwg.mxu0
    %2230 = vmatpush.msra.mxu0 %v284
    %2231 = vmatpush.msra.mxu0 %v278
    %2232 = vmatpush.msra.mxu0 %v272
    %2233 = vmatpush.msra.mxu0 %v266
    %2234 = vmatpush.msra.mxu0 %v260
    %2235 = vmatpush.msra.mxu0 %v254
    %2236 = vmatpush.msra.mxu0 %v248
    %2237 = vmatpush.msra.mxu0 %v242
    %2238 = vmatpush.msra.mxu0 %v236
    %2239 = vmatpush.msra.mxu0 %v230
    %2240 = vmatpush.msra.mxu0 %v224
    %2241 = vmatpush.msra.mxu0 %v218
    %2242 = vmatpush.msra.mxu0 %v212
    %2243 = vmatpush.msra.mxu0 %v206
    %2244 = vmatpush.msra.mxu0 %v200
    %2245 = vmatpush.msra.mxu0 %v194
    %2246 = vmatmul.f32.gmra.mxu0 %v2087
    %v2247 = vpop.f32.mrf.mxu0
    %v2248 = vadd.f32 %v2228, %v2247
    %2249 = vdwg.mxu0
    %2250 = vmatpush.msra.mxu0 %v189
    %2251 = vmatpush.msra.mxu0 %v183
    %2252 = vmatpush.msra.mxu0 %v177
    %2253 = vmatpush.msra.mxu0 %v171
    %2254 = vmatpush.msra.mxu0 %v165
    %2255 = vmatpush.msra.mxu0 %v159
    %2256 = vmatpush.msra.mxu0 %v153
    %2257 = vmatpush.msra.mxu0 %v147
    %2258 = vmatpush.msra.mxu0 %v141
    %2259 = vmatpush.msra.mxu0 %v135
    %2260 = vmatpush.msra.mxu0 %v129
    %2261 = vmatpush.msra.mxu0 %v123
    %2262 = vmatpush.msra.mxu0 %v117
    %2263 = vmatpush.msra.mxu0 %v111
    %2264 = vmatpush.msra.mxu0 %v105
    %2265 = vmatpush.msra.mxu0 %v99
    %2266 = vmatmul.f32.gmra.mxu0 %v2086
    %v2267 = vpop.f32.mrf.mxu0
    %v2268 = vadd.f32 %v298, %v2267
    %2269 = vdwg.mxu0
    %2270 = vmatpush.msra.mxu0 %v285
    %2271 = vmatpush.msra.mxu0 %v279
    %2272 = vmatpush.msra.mxu0 %v273
    %2273 = vmatpush.msra.mxu0 %v267
    %2274 = vmatpush.msra.mxu0 %v261
    %2275 = vmatpush.msra.mxu0 %v255
    %2276 = vmatpush.msra.mxu0 %v249
    %2277 = vmatpush.msra.mxu0 %v243
    %2278 = vmatpush.msra.mxu0 %v237
    %2279 = vmatpush.msra.mxu0 %v231
    %2280 = vmatpush.msra.mxu0 %v225
    %2281 = vmatpush.msra.mxu0 %v219
    %2282 = vmatpush.msra.mxu0 %v213
    %2283 = vmatpush.msra.mxu0 %v207
    %2284 = vmatpush.msra.mxu0 %v201
    %2285 = vmatpush.msra.mxu0 %v195
    %2286 = vmatmul.f32.gmra.mxu0 %v2087
    %v2287 = vpop.f32.mrf.mxu0
    %v2288 = vadd.f32 %v2268, %v2287
    %2289 = vdwg.mxu0
    %2290 = vmatpush.msra.mxu0 %v190
    %2291 = vmatpush.msra.mxu0 %v184
    %2292 = vmatpush.msra.mxu0 %v178
    %2293 = vmatpush.msra.mxu0 %v172
    %2294 = vmatpush.msra.mxu0 %v166
    %2295 = vmatpush.msra.mxu0 %v160
    %2296 = vmatpush.msra.mxu0 %v154
    %2297 = vmatpush.msra.mxu0 %v148
    %2298 = vmatpush.msra.mxu0 %v142
    %2299 = vmatpush.msra.mxu0 %v136
    %2300 = vmatpush.msra.mxu0 %v130
    %2301 = vmatpush.msra.mxu0 %v124
    %2302 = vmatpush.msra.mxu0 %v118
    %2303 = vmatpush.msra.mxu0 %v112
    %2304 = vmatpush.msra.mxu0 %v106
    %2305 = vmatpush.msra.mxu0 %v100
    %2306 = vmatmul.f32.gmra.mxu0 %v2086
    %v2307 = vpop.f32.mrf.mxu0
    %v2308 = vadd.f32 %v299, %v2307
    %2309 = vdwg.mxu0
    %2310 = vmatpush.msra.mxu0 %v286
    %2311 = vmatpush.msra.mxu0 %v280
    %2312 = vmatpush.msra.mxu0 %v274
    %2313 = vmatpush.msra.mxu0 %v268
    %2314 = vmatpush.msra.mxu0 %v262
    %2315 = vmatpush.msra.mxu0 %v256
    %2316 = vmatpush.msra.mxu0 %v250
    %2317 = vmatpush.msra.mxu0 %v244
    %2318 = vmatpush.msra.mxu0 %v238
    %2319 = vmatpush.msra.mxu0 %v232
    %2320 = vmatpush.msra.mxu0 %v226
    %2321 = vmatpush.msra.mxu0 %v220
    %2322 = vmatpush.msra.mxu0 %v214
    %2323 = vmatpush.msra.mxu0 %v208
    %2324 = vmatpush.msra.mxu0 %v202
    %2325 = vmatpush.msra.mxu0 %v196
    %2326 = vmatmul.f32.gmra.mxu0 %v2087
    %v2327 = vpop.f32.mrf.mxu0
    %v2328 = vadd.f32 %v2308, %v2327
    %2329 = vdwg.mxu0
    %v2332 = vrot.slane %v2128, 3
    %v2333 = vrot.slane %v2168, 3
    %v2336 = vadd.f32 %v89, %v2332
    %v2337 = vadd.f32 %v90, %v2333
    %v2338 = vxor.u32 %v2336, 2147483648
    %v2339 = vxor.u32 %v2337, 2147483648
    %v2340 = vmul.f32 %v2338, 1.442695
    %v2341 = vpow.pop %v2340
    %v2342 = vmul.f32 %v2339, 1.442695
    %v2343 = vpow.pop %v2342
    %v2344 = vadd.f32 %v2341, 1.0
    %v2345 = vadd.f32 %v2343, 1.0
    %v2346 = vrcp.pop %v2344
    %v2347 = vmul.f32 %v2344, %v2346
    %v2348 = vsub.f32 1.0, %v2347
    %v2349 = vmul.f32 %v2346, %v2348
    %v2350 = vadd.f32 %v2346, %v2349
    %vm2351 = vweird.f32 %v2344
    %vm2352 = vweird.f32 %v2346
    %vm2353 = vmor %vm2351, %vm2352
    %v2354 = vsel %vm2353, %v2346, %v2350
    %v2355 = vand.u32 2147483647, %v2344
    %vm2356 = vcmp.eq.f32.partialorder %v2355, 8.507059e+37
    %v2357 = vand.u32 %v2344, 2147483648
    %v2358 = vor.u32 1.1754944e-38, %v2357
    %v2359 = vsel %vm2356, %v2358, %v2354
    %v2360 = vmul.f32 1.0, %v2359
    %v2361 = vrcp.pop %v2345
    %v2362 = vmul.f32 %v2345, %v2361
    %v2363 = vsub.f32 1.0, %v2362
    %v2364 = vmul.f32 %v2361, %v2363
    %v2365 = vadd.f32 %v2361, %v2364
    %vm2366 = vweird.f32 %v2345
    %vm2367 = vweird.f32 %v2361
    %vm2368 = vmor %vm2366, %vm2367
    %v2369 = vsel %vm2368, %v2361, %v2365
    %v2370 = vand.u32 2147483647, %v2345
    %vm2371 = vcmp.eq.f32.partialorder %v2370, 8.507059e+37
    %v2372 = vand.u32 %v2345, 2147483648
    %v2373 = vor.u32 1.1754944e-38, %v2372
    %v2374 = vsel %vm2371, %v2373, %v2369
    %v2375 = vmul.f32 1.0, %v2374
    %v2378 = vrot.slane %v2208, 3
    %v2379 = vrot.slane %v2248, 3
    %v2382 = vadd.f32 %v91, %v2378
    %v2383 = vadd.f32 %v92, %v2379
    %v2384 = vxor.u32 %v2382, 2147483648
    %v2385 = vxor.u32 %v2383, 2147483648
    %v2386 = vmul.f32 %v2384, 1.442695
    %v2387 = vpow.pop %v2386
    %v2388 = vmul.f32 %v2385, 1.442695
    %v2389 = vpow.pop %v2388
    %v2390 = vadd.f32 %v2387, 1.0
    %v2391 = vadd.f32 %v2389, 1.0
    %v2392 = vrcp.pop %v2390
    %v2393 = vmul.f32 %v2390, %v2392
    %v2394 = vsub.f32 1.0, %v2393
    %v2395 = vmul.f32 %v2392, %v2394
    %v2396 = vadd.f32 %v2392, %v2395
    %vm2397 = vweird.f32 %v2390
    %vm2398 = vweird.f32 %v2392
    %vm2399 = vmor %vm2397, %vm2398
    %v2400 = vsel %vm2399, %v2392, %v2396
    %v2401 = vand.u32 2147483647, %v2390
    %vm2402 = vcmp.eq.f32.partialorder %v2401, 8.507059e+37
    %v2403 = vand.u32 %v2390, 2147483648
    %v2404 = vor.u32 1.1754944e-38, %v2403
    %v2405 = vsel %vm2402, %v2404, %v2400
    %v2406 = vmul.f32 1.0, %v2405
    %v2407 = vrcp.pop %v2391
    %v2408 = vmul.f32 %v2391, %v2407
    %v2409 = vsub.f32 1.0, %v2408
    %v2410 = vmul.f32 %v2407, %v2409
    %v2411 = vadd.f32 %v2407, %v2410
    %vm2412 = vweird.f32 %v2391
    %vm2413 = vweird.f32 %v2407
    %vm2414 = vmor %vm2412, %vm2413
    %v2415 = vsel %vm2414, %v2407, %v2411
    %v2416 = vand.u32 2147483647, %v2391
    %vm2417 = vcmp.eq.f32.partialorder %v2416, 8.507059e+37
    %v2418 = vand.u32 %v2391, 2147483648
    %v2419 = vor.u32 1.1754944e-38, %v2418
    %v2420 = vsel %vm2417, %v2419, %v2415
    %v2421 = vmul.f32 1.0, %v2420
    %v2424 = vrot.slane %v2288, 3
    %v2425 = vrot.slane %v2328, 3
    %v2428 = vmul.f32 %v2360, %v2424
    %v2429 = vmul.f32 %v2375, %v2425
    %v2430 = vadd.f32 %v93, %v2428
    %v2431 = vadd.f32 %v94, %v2429
    %v2432 = vtanh.pop %v2430
    %v2433 = vtanh.pop %v2431
    %v2434 = vsub.f32 1.0, %v2406
    %v2435 = vsub.f32 1.0, %v2421
    %v2436 = vmul.f32 %v2434, %v2432
    %v2437 = vmul.f32 %v2435, %v2433
    %v2438 = vrot.slane %v2082, 7
    %v2439 = vrot.slane %v2083, 7
    %v2442 = vmul.f32 %v2406, %v2438
    %v2443 = vmul.f32 %v2421, %v2439
    %v2444 = vadd.f32 %v2436, %v2442
    %v2445 = vadd.f32 %v2437, %v2443
    %v2448 = vrot.slane %v2444, 5
    %v2449 = vrot.slane %v2445, 5
    %2452 = vmatpush.msra.mxu0 %v185
    %2453 = vmatpush.msra.mxu0 %v179
    %2454 = vmatpush.msra.mxu0 %v173
    %2455 = vmatpush.msra.mxu0 %v167
    %2456 = vmatpush.msra.mxu0 %v161
    %2457 = vmatpush.msra.mxu0 %v155
    %2458 = vmatpush.msra.mxu0 %v149
    %2459 = vmatpush.msra.mxu0 %v143
    %2460 = vmatpush.msra.mxu0 %v137
    %2461 = vmatpush.msra.mxu0 %v131
    %2462 = vmatpush.msra.mxu0 %v125
    %2463 = vmatpush.msra.mxu0 %v119
    %2464 = vmatpush.msra.mxu0 %v113
    %2465 = vmatpush.msra.mxu0 %v107
    %2466 = vmatpush.msra.mxu0 %v101
    %2467 = vmatpush.msra.mxu0 %v95
    %2468 = vmatmul.f32.gmra.mxu0 %v2448
    %v2469 = vpop.f32.mrf.mxu0
    %v2470 = vadd.f32 %v294, %v2469
    %2471 = vdwg.mxu0
    %2472 = vmatpush.msra.mxu0 %v281
    %2473 = vmatpush.msra.mxu0 %v275
    %2474 = vmatpush.msra.mxu0 %v269
    %2475 = vmatpush.msra.mxu0 %v263
    %2476 = vmatpush.msra.mxu0 %v257
    %2477 = vmatpush.msra.mxu0 %v251
    %2478 = vmatpush.msra.mxu0 %v245
    %2479 = vmatpush.msra.mxu0 %v239
    %2480 = vmatpush.msra.mxu0 %v233
    %2481 = vmatpush.msra.mxu0 %v227
    %2482 = vmatpush.msra.mxu0 %v221
    %2483 = vmatpush.msra.mxu0 %v215
    %2484 = vmatpush.msra.mxu0 %v209
    %2485 = vmatpush.msra.mxu0 %v203
    %2486 = vmatpush.msra.mxu0 %v197
    %2487 = vmatpush.msra.mxu0 %v191
    %2488 = vmatmul.f32.gmra.mxu0 %v2449
    %v2489 = vpop.f32.mrf.mxu0
    %v2490 = vadd.f32 %v2470, %v2489
    %2491 = vdwg.mxu0
    %2492 = vmatpush.msra.mxu0 %v186
    %2493 = vmatpush.msra.mxu0 %v180
    %2494 = vmatpush.msra.mxu0 %v174
    %2495 = vmatpush.msra.mxu0 %v168
    %2496 = vmatpush.msra.mxu0 %v162
    %2497 = vmatpush.msra.mxu0 %v156
    %2498 = vmatpush.msra.mxu0 %v150
    %2499 = vmatpush.msra.mxu0 %v144
    %2500 = vmatpush.msra.mxu0 %v138
    %2501 = vmatpush.msra.mxu0 %v132
    %2502 = vmatpush.msra.mxu0 %v126
    %2503 = vmatpush.msra.mxu0 %v120
    %2504 = vmatpush.msra.mxu0 %v114
    %2505 = vmatpush.msra.mxu0 %v108
    %2506 = vmatpush.msra.mxu0 %v102
    %2507 = vmatpush.msra.mxu0 %v96
    %2508 = vmatmul.f32.gmra.mxu0 %v2448
    %v2509 = vpop.f32.mrf.mxu0
    %v2510 = vadd.f32 %v295, %v2509
    %2511 = vdwg.mxu0
    %2512 = vmatpush.msra.mxu0 %v282
    %2513 = vmatpush.msra.mxu0 %v276
    %2514 = vmatpush.msra.mxu0 %v270
    %2515 = vmatpush.msra.mxu0 %v264
    %2516 = vmatpush.msra.mxu0 %v258
    %2517 = vmatpush.msra.mxu0 %v252
    %2518 = vmatpush.msra.mxu0 %v246
    %2519 = vmatpush.msra.mxu0 %v240
    %2520 = vmatpush.msra.mxu0 %v234
    %2521 = vmatpush.msra.mxu0 %v228
    %2522 = vmatpush.msra.mxu0 %v222
    %2523 = vmatpush.msra.mxu0 %v216
    %2524 = vmatpush.msra.mxu0 %v210
    %2525 = vmatpush.msra.mxu0 %v204
    %2526 = vmatpush.msra.mxu0 %v198
    %2527 = vmatpush.msra.mxu0 %v192
    %2528 = vmatmul.f32.gmra.mxu0 %v2449
    %v2529 = vpop.f32.mrf.mxu0
    %v2530 = vadd.f32 %v2510, %v2529
    %2531 = vdwg.mxu0
    %2532 = vmatpush.msra.mxu0 %v187
    %2533 = vmatpush.msra.mxu0 %v181
    %2534 = vmatpush.msra.mxu0 %v175
    %2535 = vmatpush.msra.mxu0 %v169
    %2536 = vmatpush.msra.mxu0 %v163
    %2537 = vmatpush.msra.mxu0 %v157
    %2538 = vmatpush.msra.mxu0 %v151
    %2539 = vmatpush.msra.mxu0 %v145
    %2540 = vmatpush.msra.mxu0 %v139
    %2541 = vmatpush.msra.mxu0 %v133
    %2542 = vmatpush.msra.mxu0 %v127
    %2543 = vmatpush.msra.mxu0 %v121
    %2544 = vmatpush.msra.mxu0 %v115
    %2545 = vmatpush.msra.mxu0 %v109
    %2546 = vmatpush.msra.mxu0 %v103
    %2547 = vmatpush.msra.mxu0 %v97
    %2548 = vmatmul.f32.gmra.mxu0 %v2448
    %v2549 = vpop.f32.mrf.mxu0
    %v2550 = vadd.f32 %v296, %v2549
    %2551 = vdwg.mxu0
    %2552 = vmatpush.msra.mxu0 %v283
    %2553 = vmatpush.msra.mxu0 %v277
    %2554 = vmatpush.msra.mxu0 %v271
    %2555 = vmatpush.msra.mxu0 %v265
    %2556 = vmatpush.msra.mxu0 %v259
    %2557 = vmatpush.msra.mxu0 %v253
    %2558 = vmatpush.msra.mxu0 %v247
    %2559 = vmatpush.msra.mxu0 %v241
    %2560 = vmatpush.msra.mxu0 %v235
    %2561 = vmatpush.msra.mxu0 %v229
    %2562 = vmatpush.msra.mxu0 %v223
    %2563 = vmatpush.msra.mxu0 %v217
    %2564 = vmatpush.msra.mxu0 %v211
    %2565 = vmatpush.msra.mxu0 %v205
    %2566 = vmatpush.msra.mxu0 %v199
    %2567 = vmatpush.msra.mxu0 %v193
    %2568 = vmatmul.f32.gmra.mxu0 %v2449
    %v2569 = vpop.f32.mrf.mxu0
    %v2570 = vadd.f32 %v2550, %v2569
    %2571 = vdwg.mxu0
    %2572 = vmatpush.msra.mxu0 %v188
    %2573 = vmatpush.msra.mxu0 %v182
    %2574 = vmatpush.msra.mxu0 %v176
    %2575 = vmatpush.msra.mxu0 %v170
    %2576 = vmatpush.msra.mxu0 %v164
    %2577 = vmatpush.msra.mxu0 %v158
    %2578 = vmatpush.msra.mxu0 %v152
    %2579 = vmatpush.msra.mxu0 %v146
    %2580 = vmatpush.msra.mxu0 %v140
    %2581 = vmatpush.msra.mxu0 %v134
    %2582 = vmatpush.msra.mxu0 %v128
    %2583 = vmatpush.msra.mxu0 %v122
    %2584 = vmatpush.msra.mxu0 %v116
    %2585 = vmatpush.msra.mxu0 %v110
    %2586 = vmatpush.msra.mxu0 %v104
    %2587 = vmatpush.msra.mxu0 %v98
    %2588 = vmatmul.f32.gmra.mxu0 %v2448
    %v2589 = vpop.f32.mrf.mxu0
    %v2590 = vadd.f32 %v297, %v2589
    %2591 = vdwg.mxu0
    %2592 = vmatpush.msra.mxu0 %v284
    %2593 = vmatpush.msra.mxu0 %v278
    %2594 = vmatpush.msra.mxu0 %v272
    %2595 = vmatpush.msra.mxu0 %v266
    %2596 = vmatpush.msra.mxu0 %v260
    %2597 = vmatpush.msra.mxu0 %v254
    %2598 = vmatpush.msra.mxu0 %v248
    %2599 = vmatpush.msra.mxu0 %v242
    %2600 = vmatpush.msra.mxu0 %v236
    %2601 = vmatpush.msra.mxu0 %v230
    %2602 = vmatpush.msra.mxu0 %v224
    %2603 = vmatpush.msra.mxu0 %v218
    %2604 = vmatpush.msra.mxu0 %v212
    %2605 = vmatpush.msra.mxu0 %v206
    %2606 = vmatpush.msra.mxu0 %v200
    %2607 = vmatpush.msra.mxu0 %v194
    %2608 = vmatmul.f32.gmra.mxu0 %v2449
    %v2609 = vpop.f32.mrf.mxu0
    %v2610 = vadd.f32 %v2590, %v2609
    %2611 = vdwg.mxu0
    %2612 = vmatpush.msra.mxu0 %v189
    %2613 = vmatpush.msra.mxu0 %v183
    %2614 = vmatpush.msra.mxu0 %v177
    %2615 = vmatpush.msra.mxu0 %v171
    %2616 = vmatpush.msra.mxu0 %v165
    %2617 = vmatpush.msra.mxu0 %v159
    %2618 = vmatpush.msra.mxu0 %v153
    %2619 = vmatpush.msra.mxu0 %v147
    %2620 = vmatpush.msra.mxu0 %v141
    %2621 = vmatpush.msra.mxu0 %v135
    %2622 = vmatpush.msra.mxu0 %v129
    %2623 = vmatpush.msra.mxu0 %v123
    %2624 = vmatpush.msra.mxu0 %v117
    %2625 = vmatpush.msra.mxu0 %v111
    %2626 = vmatpush.msra.mxu0 %v105
    %2627 = vmatpush.msra.mxu0 %v99
    %2628 = vmatmul.f32.gmra.mxu0 %v2448
    %v2629 = vpop.f32.mrf.mxu0
    %v2630 = vadd.f32 %v298, %v2629
    %2631 = vdwg.mxu0
    %2632 = vmatpush.msra.mxu0 %v285
    %2633 = vmatpush.msra.mxu0 %v279
    %2634 = vmatpush.msra.mxu0 %v273
    %2635 = vmatpush.msra.mxu0 %v267
    %2636 = vmatpush.msra.mxu0 %v261
    %2637 = vmatpush.msra.mxu0 %v255
    %2638 = vmatpush.msra.mxu0 %v249
    %2639 = vmatpush.msra.mxu0 %v243
    %2640 = vmatpush.msra.mxu0 %v237
    %2641 = vmatpush.msra.mxu0 %v231
    %2642 = vmatpush.msra.mxu0 %v225
    %2643 = vmatpush.msra.mxu0 %v219
    %2644 = vmatpush.msra.mxu0 %v213
    %2645 = vmatpush.msra.mxu0 %v207
    %2646 = vmatpush.msra.mxu0 %v201
    %2647 = vmatpush.msra.mxu0 %v195
    %2648 = vmatmul.f32.gmra.mxu0 %v2449
    %v2649 = vpop.f32.mrf.mxu0
    %v2650 = vadd.f32 %v2630, %v2649
    %2651 = vdwg.mxu0
    %2652 = vmatpush.msra.mxu0 %v190
    %2653 = vmatpush.msra.mxu0 %v184
    %2654 = vmatpush.msra.mxu0 %v178
    %2655 = vmatpush.msra.mxu0 %v172
    %2656 = vmatpush.msra.mxu0 %v166
    %2657 = vmatpush.msra.mxu0 %v160
    %2658 = vmatpush.msra.mxu0 %v154
    %2659 = vmatpush.msra.mxu0 %v148
    %2660 = vmatpush.msra.mxu0 %v142
    %2661 = vmatpush.msra.mxu0 %v136
    %2662 = vmatpush.msra.mxu0 %v130
    %2663 = vmatpush.msra.mxu0 %v124
    %2664 = vmatpush.msra.mxu0 %v118
    %2665 = vmatpush.msra.mxu0 %v112
    %2666 = vmatpush.msra.mxu0 %v106
    %2667 = vmatpush.msra.mxu0 %v100
    %2668 = vmatmul.f32.gmra.mxu0 %v2448
    %v2669 = vpop.f32.mrf.mxu0
    %v2670 = vadd.f32 %v299, %v2669
    %2671 = vdwg.mxu0
    %2672 = vmatpush.msra.mxu0 %v286
    %2673 = vmatpush.msra.mxu0 %v280
    %2674 = vmatpush.msra.mxu0 %v274
    %2675 = vmatpush.msra.mxu0 %v268
    %2676 = vmatpush.msra.mxu0 %v262
    %2677 = vmatpush.msra.mxu0 %v256
    %2678 = vmatpush.msra.mxu0 %v250
    %2679 = vmatpush.msra.mxu0 %v244
    %2680 = vmatpush.msra.mxu0 %v238
    %2681 = vmatpush.msra.mxu0 %v232
    %2682 = vmatpush.msra.mxu0 %v226
    %2683 = vmatpush.msra.mxu0 %v220
    %2684 = vmatpush.msra.mxu0 %v214
    %2685 = vmatpush.msra.mxu0 %v208
    %2686 = vmatpush.msra.mxu0 %v202
    %2687 = vmatpush.msra.mxu0 %v196
    %2688 = vmatmul.f32.gmra.mxu0 %v2449
    %v2689 = vpop.f32.mrf.mxu0
    %v2690 = vadd.f32 %v2670, %v2689
    %2691 = vdwg.mxu0
    %v2694 = vrot.slane %v2490, 2
    %v2695 = vrot.slane %v2530, 2
    %v2698 = vadd.f32 %v89, %v2694
    %v2699 = vadd.f32 %v90, %v2695
    %v2700 = vxor.u32 %v2698, 2147483648
    %v2701 = vxor.u32 %v2699, 2147483648
    %v2702 = vmul.f32 %v2700, 1.442695
    %v2703 = vpow.pop %v2702
    %v2704 = vmul.f32 %v2701, 1.442695
    %v2705 = vpow.pop %v2704
    %v2706 = vadd.f32 %v2703, 1.0
    %v2707 = vadd.f32 %v2705, 1.0
    %v2708 = vrcp.pop %v2706
    %v2709 = vmul.f32 %v2706, %v2708
    %v2710 = vsub.f32 1.0, %v2709
    %v2711 = vmul.f32 %v2708, %v2710
    %v2712 = vadd.f32 %v2708, %v2711
    %vm2713 = vweird.f32 %v2706
    %vm2714 = vweird.f32 %v2708
    %vm2715 = vmor %vm2713, %vm2714
    %v2716 = vsel %vm2715, %v2708, %v2712
    %v2717 = vand.u32 2147483647, %v2706
    %vm2718 = vcmp.eq.f32.partialorder %v2717, 8.507059e+37
    %v2719 = vand.u32 %v2706, 2147483648
    %v2720 = vor.u32 1.1754944e-38, %v2719
    %v2721 = vsel %vm2718, %v2720, %v2716
    %v2722 = vmul.f32 1.0, %v2721
    %v2723 = vrcp.pop %v2707
    %v2724 = vmul.f32 %v2707, %v2723
    %v2725 = vsub.f32 1.0, %v2724
    %v2726 = vmul.f32 %v2723, %v2725
    %v2727 = vadd.f32 %v2723, %v2726
    %vm2728 = vweird.f32 %v2707
    %vm2729 = vweird.f32 %v2723
    %vm2730 = vmor %vm2728, %vm2729
    %v2731 = vsel %vm2730, %v2723, %v2727
    %v2732 = vand.u32 2147483647, %v2707
    %vm2733 = vcmp.eq.f32.partialorder %v2732, 8.507059e+37
    %v2734 = vand.u32 %v2707, 2147483648
    %v2735 = vor.u32 1.1754944e-38, %v2734
    %v2736 = vsel %vm2733, %v2735, %v2731
    %v2737 = vmul.f32 1.0, %v2736
    %v2740 = vrot.slane %v2570, 2
    %v2741 = vrot.slane %v2610, 2
    %v2744 = vadd.f32 %v91, %v2740
    %v2745 = vadd.f32 %v92, %v2741
    %v2746 = vxor.u32 %v2744, 2147483648
    %v2747 = vxor.u32 %v2745, 2147483648
    %v2748 = vmul.f32 %v2746, 1.442695
    %v2749 = vpow.pop %v2748
    %v2750 = vmul.f32 %v2747, 1.442695
    %v2751 = vpow.pop %v2750
    %v2752 = vadd.f32 %v2749, 1.0
    %v2753 = vadd.f32 %v2751, 1.0
    %v2754 = vrcp.pop %v2752
    %v2755 = vmul.f32 %v2752, %v2754
    %v2756 = vsub.f32 1.0, %v2755
    %v2757 = vmul.f32 %v2754, %v2756
    %v2758 = vadd.f32 %v2754, %v2757
    %vm2759 = vweird.f32 %v2752
    %vm2760 = vweird.f32 %v2754
    %vm2761 = vmor %vm2759, %vm2760
    %v2762 = vsel %vm2761, %v2754, %v2758
    %v2763 = vand.u32 2147483647, %v2752
    %vm2764 = vcmp.eq.f32.partialorder %v2763, 8.507059e+37
    %v2765 = vand.u32 %v2752, 2147483648
    %v2766 = vor.u32 1.1754944e-38, %v2765
    %v2767 = vsel %vm2764, %v2766, %v2762
    %v2768 = vmul.f32 1.0, %v2767
    %v2769 = vrcp.pop %v2753
    %v2770 = vmul.f32 %v2753, %v2769
    %v2771 = vsub.f32 1.0, %v2770
    %v2772 = vmul.f32 %v2769, %v2771
    %v2773 = vadd.f32 %v2769, %v2772
    %vm2774 = vweird.f32 %v2753
    %vm2775 = vweird.f32 %v2769
    %vm2776 = vmor %vm2774, %vm2775
    %v2777 = vsel %vm2776, %v2769, %v2773
    %v2778 = vand.u32 2147483647, %v2753
    %vm2779 = vcmp.eq.f32.partialorder %v2778, 8.507059e+37
    %v2780 = vand.u32 %v2753, 2147483648
    %v2781 = vor.u32 1.1754944e-38, %v2780
    %v2782 = vsel %vm2779, %v2781, %v2777
    %v2783 = vmul.f32 1.0, %v2782
    %v2786 = vrot.slane %v2650, 2
    %v2787 = vrot.slane %v2690, 2
    %v2790 = vmul.f32 %v2722, %v2786
    %v2791 = vmul.f32 %v2737, %v2787
    %v2792 = vadd.f32 %v93, %v2790
    %v2793 = vadd.f32 %v94, %v2791
    %v2794 = vtanh.pop %v2792
    %v2795 = vtanh.pop %v2793
    %v2796 = vsub.f32 1.0, %v2768
    %v2797 = vsub.f32 1.0, %v2783
    %v2798 = vmul.f32 %v2796, %v2794
    %v2799 = vmul.f32 %v2797, %v2795
    %v2800 = vrot.slane %v2444, 7
    %v2801 = vrot.slane %v2445, 7
    %v2804 = vmul.f32 %v2768, %v2800
    %v2805 = vmul.f32 %v2783, %v2801
    %v2806 = vadd.f32 %v2798, %v2804
    %v2807 = vadd.f32 %v2799, %v2805
    %v2810 = vrot.slane %v2806, 6
    %v2811 = vrot.slane %v2807, 6
    %2814 = vmatpush.msra.mxu0 %v185
    %2815 = vmatpush.msra.mxu0 %v179
    %2816 = vmatpush.msra.mxu0 %v173
    %2817 = vmatpush.msra.mxu0 %v167
    %2818 = vmatpush.msra.mxu0 %v161
    %2819 = vmatpush.msra.mxu0 %v155
    %2820 = vmatpush.msra.mxu0 %v149
    %2821 = vmatpush.msra.mxu0 %v143
    %2822 = vmatpush.msra.mxu0 %v137
    %2823 = vmatpush.msra.mxu0 %v131
    %2824 = vmatpush.msra.mxu0 %v125
    %2825 = vmatpush.msra.mxu0 %v119
    %2826 = vmatpush.msra.mxu0 %v113
    %2827 = vmatpush.msra.mxu0 %v107
    %2828 = vmatpush.msra.mxu0 %v101
    %2829 = vmatpush.msra.mxu0 %v95
    %2830 = vmatmul.f32.gmra.mxu0 %v2810
    %v2831 = vpop.f32.mrf.mxu0
    %v2832 = vadd.f32 %v294, %v2831
    %2833 = vdwg.mxu0
    %2834 = vmatpush.msra.mxu0 %v281
    %2835 = vmatpush.msra.mxu0 %v275
    %2836 = vmatpush.msra.mxu0 %v269
    %2837 = vmatpush.msra.mxu0 %v263
    %2838 = vmatpush.msra.mxu0 %v257
    %2839 = vmatpush.msra.mxu0 %v251
    %2840 = vmatpush.msra.mxu0 %v245
    %2841 = vmatpush.msra.mxu0 %v239
    %2842 = vmatpush.msra.mxu0 %v233
    %2843 = vmatpush.msra.mxu0 %v227
    %2844 = vmatpush.msra.mxu0 %v221
    %2845 = vmatpush.msra.mxu0 %v215
    %2846 = vmatpush.msra.mxu0 %v209
    %2847 = vmatpush.msra.mxu0 %v203
    %2848 = vmatpush.msra.mxu0 %v197
    %2849 = vmatpush.msra.mxu0 %v191
    %2850 = vmatmul.f32.gmra.mxu0 %v2811
    %v2851 = vpop.f32.mrf.mxu0
    %v2852 = vadd.f32 %v2832, %v2851
    %2853 = vdwg.mxu0
    %2854 = vmatpush.msra.mxu0 %v186
    %2855 = vmatpush.msra.mxu0 %v180
    %2856 = vmatpush.msra.mxu0 %v174
    %2857 = vmatpush.msra.mxu0 %v168
    %2858 = vmatpush.msra.mxu0 %v162
    %2859 = vmatpush.msra.mxu0 %v156
    %2860 = vmatpush.msra.mxu0 %v150
    %2861 = vmatpush.msra.mxu0 %v144
    %2862 = vmatpush.msra.mxu0 %v138
    %2863 = vmatpush.msra.mxu0 %v132
    %2864 = vmatpush.msra.mxu0 %v126
    %2865 = vmatpush.msra.mxu0 %v120
    %2866 = vmatpush.msra.mxu0 %v114
    %2867 = vmatpush.msra.mxu0 %v108
    %2868 = vmatpush.msra.mxu0 %v102
    %2869 = vmatpush.msra.mxu0 %v96
    %2870 = vmatmul.f32.gmra.mxu0 %v2810
    %v2871 = vpop.f32.mrf.mxu0
    %v2872 = vadd.f32 %v295, %v2871
    %2873 = vdwg.mxu0
    %2874 = vmatpush.msra.mxu0 %v282
    %2875 = vmatpush.msra.mxu0 %v276
    %2876 = vmatpush.msra.mxu0 %v270
    %2877 = vmatpush.msra.mxu0 %v264
    %2878 = vmatpush.msra.mxu0 %v258
    %2879 = vmatpush.msra.mxu0 %v252
    %2880 = vmatpush.msra.mxu0 %v246
    %2881 = vmatpush.msra.mxu0 %v240
    %2882 = vmatpush.msra.mxu0 %v234
    %2883 = vmatpush.msra.mxu0 %v228
    %2884 = vmatpush.msra.mxu0 %v222
    %2885 = vmatpush.msra.mxu0 %v216
    %2886 = vmatpush.msra.mxu0 %v210
    %2887 = vmatpush.msra.mxu0 %v204
    %2888 = vmatpush.msra.mxu0 %v198
    %2889 = vmatpush.msra.mxu0 %v192
    %2890 = vmatmul.f32.gmra.mxu0 %v2811
    %v2891 = vpop.f32.mrf.mxu0
    %v2892 = vadd.f32 %v2872, %v2891
    %2893 = vdwg.mxu0
    %2894 = vmatpush.msra.mxu0 %v187
    %2895 = vmatpush.msra.mxu0 %v181
    %2896 = vmatpush.msra.mxu0 %v175
    %2897 = vmatpush.msra.mxu0 %v169
    %2898 = vmatpush.msra.mxu0 %v163
    %2899 = vmatpush.msra.mxu0 %v157
    %2900 = vmatpush.msra.mxu0 %v151
    %2901 = vmatpush.msra.mxu0 %v145
    %2902 = vmatpush.msra.mxu0 %v139
    %2903 = vmatpush.msra.mxu0 %v133
    %2904 = vmatpush.msra.mxu0 %v127
    %2905 = vmatpush.msra.mxu0 %v121
    %2906 = vmatpush.msra.mxu0 %v115
    %2907 = vmatpush.msra.mxu0 %v109
    %2908 = vmatpush.msra.mxu0 %v103
    %2909 = vmatpush.msra.mxu0 %v97
    %2910 = vmatmul.f32.gmra.mxu0 %v2810
    %v2911 = vpop.f32.mrf.mxu0
    %v2912 = vadd.f32 %v296, %v2911
    %2913 = vdwg.mxu0
    %2914 = vmatpush.msra.mxu0 %v283
    %2915 = vmatpush.msra.mxu0 %v277
    %2916 = vmatpush.msra.mxu0 %v271
    %2917 = vmatpush.msra.mxu0 %v265
    %2918 = vmatpush.msra.mxu0 %v259
    %2919 = vmatpush.msra.mxu0 %v253
    %2920 = vmatpush.msra.mxu0 %v247
    %2921 = vmatpush.msra.mxu0 %v241
    %2922 = vmatpush.msra.mxu0 %v235
    %2923 = vmatpush.msra.mxu0 %v229
    %2924 = vmatpush.msra.mxu0 %v223
    %2925 = vmatpush.msra.mxu0 %v217
    %2926 = vmatpush.msra.mxu0 %v211
    %2927 = vmatpush.msra.mxu0 %v205
    %2928 = vmatpush.msra.mxu0 %v199
    %2929 = vmatpush.msra.mxu0 %v193
    %2930 = vmatmul.f32.gmra.mxu0 %v2811
    %v2931 = vpop.f32.mrf.mxu0
    %v2932 = vadd.f32 %v2912, %v2931
    %2933 = vdwg.mxu0
    %2934 = vmatpush.msra.mxu0 %v188
    %2935 = vmatpush.msra.mxu0 %v182
    %2936 = vmatpush.msra.mxu0 %v176
    %2937 = vmatpush.msra.mxu0 %v170
    %2938 = vmatpush.msra.mxu0 %v164
    %2939 = vmatpush.msra.mxu0 %v158
    %2940 = vmatpush.msra.mxu0 %v152
    %2941 = vmatpush.msra.mxu0 %v146
    %2942 = vmatpush.msra.mxu0 %v140
    %2943 = vmatpush.msra.mxu0 %v134
    %2944 = vmatpush.msra.mxu0 %v128
    %2945 = vmatpush.msra.mxu0 %v122
    %2946 = vmatpush.msra.mxu0 %v116
    %2947 = vmatpush.msra.mxu0 %v110
    %2948 = vmatpush.msra.mxu0 %v104
    %2949 = vmatpush.msra.mxu0 %v98
    %2950 = vmatmul.f32.gmra.mxu0 %v2810
    %v2951 = vpop.f32.mrf.mxu0
    %v2952 = vadd.f32 %v297, %v2951
    %2953 = vdwg.mxu0
    %2954 = vmatpush.msra.mxu0 %v284
    %2955 = vmatpush.msra.mxu0 %v278
    %2956 = vmatpush.msra.mxu0 %v272
    %2957 = vmatpush.msra.mxu0 %v266
    %2958 = vmatpush.msra.mxu0 %v260
    %2959 = vmatpush.msra.mxu0 %v254
    %2960 = vmatpush.msra.mxu0 %v248
    %2961 = vmatpush.msra.mxu0 %v242
    %2962 = vmatpush.msra.mxu0 %v236
    %2963 = vmatpush.msra.mxu0 %v230
    %2964 = vmatpush.msra.mxu0 %v224
    %2965 = vmatpush.msra.mxu0 %v218
    %2966 = vmatpush.msra.mxu0 %v212
    %2967 = vmatpush.msra.mxu0 %v206
    %2968 = vmatpush.msra.mxu0 %v200
    %2969 = vmatpush.msra.mxu0 %v194
    %2970 = vmatmul.f32.gmra.mxu0 %v2811
    %v2971 = vpop.f32.mrf.mxu0
    %v2972 = vadd.f32 %v2952, %v2971
    %2973 = vdwg.mxu0
    %2974 = vmatpush.msra.mxu0 %v189
    %2975 = vmatpush.msra.mxu0 %v183
    %2976 = vmatpush.msra.mxu0 %v177
    %2977 = vmatpush.msra.mxu0 %v171
    %2978 = vmatpush.msra.mxu0 %v165
    %2979 = vmatpush.msra.mxu0 %v159
    %2980 = vmatpush.msra.mxu0 %v153
    %2981 = vmatpush.msra.mxu0 %v147
    %2982 = vmatpush.msra.mxu0 %v141
    %2983 = vmatpush.msra.mxu0 %v135
    %2984 = vmatpush.msra.mxu0 %v129
    %2985 = vmatpush.msra.mxu0 %v123
    %2986 = vmatpush.msra.mxu0 %v117
    %2987 = vmatpush.msra.mxu0 %v111
    %2988 = vmatpush.msra.mxu0 %v105
    %2989 = vmatpush.msra.mxu0 %v99
    %2990 = vmatmul.f32.gmra.mxu0 %v2810
    %v2991 = vpop.f32.mrf.mxu0
    %v2992 = vadd.f32 %v298, %v2991
    %2993 = vdwg.mxu0
    %2994 = vmatpush.msra.mxu0 %v285
    %2995 = vmatpush.msra.mxu0 %v279
    %2996 = vmatpush.msra.mxu0 %v273
    %2997 = vmatpush.msra.mxu0 %v267
    %2998 = vmatpush.msra.mxu0 %v261
    %2999 = vmatpush.msra.mxu0 %v255
    %3000 = vmatpush.msra.mxu0 %v249
    %3001 = vmatpush.msra.mxu0 %v243
    %3002 = vmatpush.msra.mxu0 %v237
    %3003 = vmatpush.msra.mxu0 %v231
    %3004 = vmatpush.msra.mxu0 %v225
    %3005 = vmatpush.msra.mxu0 %v219
    %3006 = vmatpush.msra.mxu0 %v213
    %3007 = vmatpush.msra.mxu0 %v207
    %3008 = vmatpush.msra.mxu0 %v201
    %3009 = vmatpush.msra.mxu0 %v195
    %3010 = vmatmul.f32.gmra.mxu0 %v2811
    %v3011 = vpop.f32.mrf.mxu0
    %v3012 = vadd.f32 %v2992, %v3011
    %3013 = vdwg.mxu0
    %3014 = vmatpush.msra.mxu0 %v190
    %3015 = vmatpush.msra.mxu0 %v184
    %3016 = vmatpush.msra.mxu0 %v178
    %3017 = vmatpush.msra.mxu0 %v172
    %3018 = vmatpush.msra.mxu0 %v166
    %3019 = vmatpush.msra.mxu0 %v160
    %3020 = vmatpush.msra.mxu0 %v154
    %3021 = vmatpush.msra.mxu0 %v148
    %3022 = vmatpush.msra.mxu0 %v142
    %3023 = vmatpush.msra.mxu0 %v136
    %3024 = vmatpush.msra.mxu0 %v130
    %3025 = vmatpush.msra.mxu0 %v124
    %3026 = vmatpush.msra.mxu0 %v118
    %3027 = vmatpush.msra.mxu0 %v112
    %3028 = vmatpush.msra.mxu0 %v106
    %3029 = vmatpush.msra.mxu0 %v100
    %3030 = vmatmul.f32.gmra.mxu0 %v2810
    %v3031 = vpop.f32.mrf.mxu0
    %v3032 = vadd.f32 %v299, %v3031
    %3033 = vdwg.mxu0
    %3034 = vmatpush.msra.mxu0 %v286
    %3035 = vmatpush.msra.mxu0 %v280
    %3036 = vmatpush.msra.mxu0 %v274
    %3037 = vmatpush.msra.mxu0 %v268
    %3038 = vmatpush.msra.mxu0 %v262
    %3039 = vmatpush.msra.mxu0 %v256
    %3040 = vmatpush.msra.mxu0 %v250
    %3041 = vmatpush.msra.mxu0 %v244
    %3042 = vmatpush.msra.mxu0 %v238
    %3043 = vmatpush.msra.mxu0 %v232
    %3044 = vmatpush.msra.mxu0 %v226
    %3045 = vmatpush.msra.mxu0 %v220
    %3046 = vmatpush.msra.mxu0 %v214
    %3047 = vmatpush.msra.mxu0 %v208
    %3048 = vmatpush.msra.mxu0 %v202
    %3049 = vmatpush.msra.mxu0 %v196
    %3050 = vmatmul.f32.gmra.mxu0 %v2811
    %v3051 = vpop.f32.mrf.mxu0
    %v3052 = vadd.f32 %v3032, %v3051
    %3053 = vdwg.mxu0
    %v3056 = vrot.slane %v2852, 1
    %v3057 = vrot.slane %v2892, 1
    %v3060 = vadd.f32 %v89, %v3056
    %v3061 = vadd.f32 %v90, %v3057
    %v3062 = vxor.u32 %v3060, 2147483648
    %v3063 = vxor.u32 %v3061, 2147483648
    %v3064 = vmul.f32 %v3062, 1.442695
    %v3065 = vpow.pop %v3064
    %v3066 = vmul.f32 %v3063, 1.442695
    %v3067 = vpow.pop %v3066
    %v3068 = vadd.f32 %v3065, 1.0
    %v3069 = vadd.f32 %v3067, 1.0
    %v3070 = vrcp.pop %v3068
    %v3071 = vmul.f32 %v3068, %v3070
    %v3072 = vsub.f32 1.0, %v3071
    %v3073 = vmul.f32 %v3070, %v3072
    %v3074 = vadd.f32 %v3070, %v3073
    %vm3075 = vweird.f32 %v3068
    %vm3076 = vweird.f32 %v3070
    %vm3077 = vmor %vm3075, %vm3076
    %v3078 = vsel %vm3077, %v3070, %v3074
    %v3079 = vand.u32 2147483647, %v3068
    %vm3080 = vcmp.eq.f32.partialorder %v3079, 8.507059e+37
    %v3081 = vand.u32 %v3068, 2147483648
    %v3082 = vor.u32 1.1754944e-38, %v3081
    %v3083 = vsel %vm3080, %v3082, %v3078
    %v3084 = vmul.f32 1.0, %v3083
    %v3085 = vrcp.pop %v3069
    %v3086 = vmul.f32 %v3069, %v3085
    %v3087 = vsub.f32 1.0, %v3086
    %v3088 = vmul.f32 %v3085, %v3087
    %v3089 = vadd.f32 %v3085, %v3088
    %vm3090 = vweird.f32 %v3069
    %vm3091 = vweird.f32 %v3085
    %vm3092 = vmor %vm3090, %vm3091
    %v3093 = vsel %vm3092, %v3085, %v3089
    %v3094 = vand.u32 2147483647, %v3069
    %vm3095 = vcmp.eq.f32.partialorder %v3094, 8.507059e+37
    %v3096 = vand.u32 %v3069, 2147483648
    %v3097 = vor.u32 1.1754944e-38, %v3096
    %v3098 = vsel %vm3095, %v3097, %v3093
    %v3099 = vmul.f32 1.0, %v3098
    %v3102 = vrot.slane %v2932, 1
    %v3103 = vrot.slane %v2972, 1
    %v3106 = vadd.f32 %v91, %v3102
    %v3107 = vadd.f32 %v92, %v3103
    %v3108 = vxor.u32 %v3106, 2147483648
    %v3109 = vxor.u32 %v3107, 2147483648
    %v3110 = vmul.f32 %v3108, 1.442695
    %v3111 = vpow.pop %v3110
    %v3112 = vmul.f32 %v3109, 1.442695
    %v3113 = vpow.pop %v3112
    %v3114 = vadd.f32 %v3111, 1.0
    %v3115 = vadd.f32 %v3113, 1.0
    %v3116 = vrcp.pop %v3114
    %v3117 = vmul.f32 %v3114, %v3116
    %v3118 = vsub.f32 1.0, %v3117
    %v3119 = vmul.f32 %v3116, %v3118
    %v3120 = vadd.f32 %v3116, %v3119
    %vm3121 = vweird.f32 %v3114
    %vm3122 = vweird.f32 %v3116
    %vm3123 = vmor %vm3121, %vm3122
    %v3124 = vsel %vm3123, %v3116, %v3120
    %v3125 = vand.u32 2147483647, %v3114
    %vm3126 = vcmp.eq.f32.partialorder %v3125, 8.507059e+37
    %v3127 = vand.u32 %v3114, 2147483648
    %v3128 = vor.u32 1.1754944e-38, %v3127
    %v3129 = vsel %vm3126, %v3128, %v3124
    %v3130 = vmul.f32 1.0, %v3129
    %v3131 = vrcp.pop %v3115
    %v3132 = vmul.f32 %v3115, %v3131
    %v3133 = vsub.f32 1.0, %v3132
    %v3134 = vmul.f32 %v3131, %v3133
    %v3135 = vadd.f32 %v3131, %v3134
    %vm3136 = vweird.f32 %v3115
    %vm3137 = vweird.f32 %v3131
    %vm3138 = vmor %vm3136, %vm3137
    %v3139 = vsel %vm3138, %v3131, %v3135
    %v3140 = vand.u32 2147483647, %v3115
    %vm3141 = vcmp.eq.f32.partialorder %v3140, 8.507059e+37
    %v3142 = vand.u32 %v3115, 2147483648
    %v3143 = vor.u32 1.1754944e-38, %v3142
    %v3144 = vsel %vm3141, %v3143, %v3139
    %v3145 = vmul.f32 1.0, %v3144
    %v3148 = vrot.slane %v3012, 1
    %v3149 = vrot.slane %v3052, 1
    %v3152 = vmul.f32 %v3084, %v3148
    %v3153 = vmul.f32 %v3099, %v3149
    %v3154 = vadd.f32 %v93, %v3152
    %v3155 = vadd.f32 %v94, %v3153
    %v3156 = vtanh.pop %v3154
    %v3157 = vtanh.pop %v3155
    %v3158 = vsub.f32 1.0, %v3130
    %v3159 = vsub.f32 1.0, %v3145
    %v3160 = vmul.f32 %v3158, %v3156
    %v3161 = vmul.f32 %v3159, %v3157
    %v3162 = vrot.slane %v2806, 7
    %v3163 = vrot.slane %v2807, 7
    %v3166 = vmul.f32 %v3130, %v3162
    %v3167 = vmul.f32 %v3145, %v3163
    %v3168 = vadd.f32 %v3160, %v3166
    %v3169 = vadd.f32 %v3161, %v3167
    %vm3170 = vcmask 1040384
    %v3171 = vsel %vm3170, %v638, %v996
    %v3172 = vsel %vm3170, %v639, %v997
    %vm3173 = vcmask 1041408
    %v3174 = vsel %vm3173, %v3171, %v1358
    %v3175 = vsel %vm3173, %v3172, %v1359
    %vm3176 = vcmask 1042432
    %v3177 = vsel %vm3176, %v3174, %v1720
    %v3178 = vsel %vm3176, %v3175, %v1721
    %vm3179 = vcmask 1043456
    %v3180 = vsel %vm3179, %v3177, %v2082
    %v3181 = vsel %vm3179, %v3178, %v2083
    %vm3182 = vcmask 1044480
    %v3183 = vsel %vm3182, %v3180, %v2444
    %v3184 = vsel %vm3182, %v3181, %v2445
    %vm3185 = vcmask 1045504
    %v3186 = vsel %vm3185, %v3183, %v2806
    %v3187 = vsel %vm3185, %v3184, %v2807
    %vm3188 = vcmask 1046528
    %v3189 = vsel %vm3188, %v3186, %v3168
    %v3190 = vsel %vm3188, %v3187, %v3169
    %3191 = vst [vmem:[#allocation10] sm:$0xff] %v3189
    %3192 = vst [vmem:[#allocation10 + $0x8] sm:$0xff] %v3190
    %3195 = vst [vmem:[#allocation1] sm:$0xff] %v3168
    %3196 = vst [vmem:[#allocation1 + $0x9] sm:$0xff] %v3169
    %s3197 = scalar_lea.vmem [#allocation1], 7
    %v3198 = vld [vmem:[%s3197] ss:$9 sm:$0xff]
    %v3200 = vlaneseq
    %vm3201 = vcmp.ge.s32.totalorder %v3200, 0
    %vm3202 = vcmp.lt.s32.totalorder %v3200, 256
    %vm3203 = vmand %vm3201, %vm3202
    %3204 = vst.msk [vmem:[#allocation11] sm:$0x3] %vm3203, %v3198
    // Predicated region
    $region38: #{tpu_custom_call.1} parent=1 // pred_check
      _
    $region39: #{tpu_custom_call.1} parent=1 // pred_check_branch
      %3206 = sbr.rel (0) target = $region41
    $region40: #{tpu_custom_call.1} parent=1 // pred_region
      %3208 = vsyncadd [#allocation4], 0
      %s3210 = sshll.u32 [#allocation10], 4
      %s3211 = int_to_ptr.vmem [resolvable:$true] %s3210
      %s3212 = sshll.u32 %s4, 4
      %s3213 = int_to_ptr.hbm [resolvable:$true] %s3212
      %3215 = dma.vmem_to_hbm [thread:$0]  %s3211, 256, %s3213, [#allocation4]
    $region41: #{tpu_custom_call.1} parent=1 // pred_fallthru
      _
    // Predicated region
    $region42: #{tpu_custom_call.1} parent=1 // pred_check
      _
    $region43: #{tpu_custom_call.1} parent=1 // pred_check_branch
      %3217 = sbr.rel (0) target = $region45
    $region44: #{tpu_custom_call.1} parent=1 // pred_region
      %3219 = vsyncadd [#allocation12], 0
      %s3221 = sshll.u32 [#allocation11], 4
      %s3222 = int_to_ptr.vmem [resolvable:$true] %s3221
      %s3223 = sshll.u32 %s5, 4
      %s3224 = int_to_ptr.hbm [resolvable:$true] %s3223
      %3226 = dma.vmem_to_hbm [thread:$0]  %s3222, 32, %s3224, [#allocation12]
    $region45: #{tpu_custom_call.1} parent=1 // pred_fallthru
      _
    // Predicated region
    $region46: #{tpu_custom_call.1} parent=1 // pred_check
      _
    $region47: #{tpu_custom_call.1} parent=1 // pred_check_branch
      %3228 = sbr.rel (0) target = $region49
    $region48: #{tpu_custom_call.1} parent=1 // pred_region
      %3230 = dma.done [#allocation4], 256
    $region49: #{tpu_custom_call.1} parent=1 // pred_fallthru
      _
    // Predicated region
    $region50: #{tpu_custom_call.1} parent=1 // pred_check
      _
    $region51: #{tpu_custom_call.1} parent=1 // pred_check_branch
      %3232 = sbr.rel (0) target = $region53
    $region52: #{tpu_custom_call.1} parent=1 // pred_region
      %3234 = dma.done [#allocation12], 32
    $region53: #{tpu_custom_call.1} parent=1 // pred_fallthru
      _
    %3235 = vsyncpa [#allocation3], 1
    %3236 = vsyncpa [#allocation6], 1
    %3237 = vsyncpa [#allocation9], 1
    %3238 = vsyncpa [#allocation4], 1
    %3239 = vsyncpa [#allocation12], 1

</llo_original>
